<compile_context>
chip_gen: v7x
topology: tpu7x:2x2x1
jax: 0.10.0
libtpu: 0.0.40
codegen_flags: <defaults>
</compile_context>

<pallas_src>
import jax
import jax.numpy as jnp
from jax import lax
from jax.experimental import pallas as pl
from jax.experimental.pallas import tpu as pltpu

# ----- model hyper-parameters (match the nn.Module defaults) -----
INPUT_SIZE = 1
HIDDEN = 8
NUM_CLASSES = 3
F1, F2, F3 = 128, 256, 128          # cnn_filters
K1, K2, K3 = 8, 5, 3                # kernel sizes
PL1, PL2, PL3 = 3, 2, 1             # left pads ('same'; even K puts the extra pad on the right)
BN_EPS = 1e-5
HALO = 16                           # bf16 pad-scratch left halo = one packed (16,128) tile group


def lstm_fcn_kernel(xw_ref,          # (L, B, 4H)   f32  per-step x*W_ih + bias (gate-fusion scaled)
                    whh_ref,         # (H, 4H)      f32  recurrent weights (gate-fusion scaled cols)
                    xcol1_ref,       # (B*L, K1)    bf16 conv1 im2col of the zero-padded input
                    w1_ref,          # (K1, F1)     bf16 conv1 weights * BN1 scale
                    t1_ref,          # (1, F1)      f32  folded conv1-bias + BN1 shift
                    w2_ref,          # (K2, F1, F2) bf16 conv2 per-tap weights * BN2 scale
                    t2_ref,          # (1, F2)      f32
                    w3_ref,          # (K3, F2, F3) bf16 conv3 per-tap weights * BN3 scale
                    t3_ref,          # (1, F3)      f32
                    wfh_ref,         # (H, NC)      f32  fc weights for the LSTM features
                    wfc_ref,         # (F3, NC)     f32  fc weights for GAP features (1/L folded in)
                    bf_ref,          # (1, NC)      f32
                    out_ref,         # (B, NC)      f32
                    pad2_ref,        # VMEM (B, LP2, F1) bf16  zero-padded conv1 activations
                    pad3_ref):       # VMEM (B, LP3, F2) bf16  zero-padded conv2 activations
    L, B, H4 = xw_ref.shape
    H = H4 // 4
    BL = B * L
    LP2 = pad2_ref.shape[1]
    LP3 = pad3_ref.shape[1]
    f32 = jnp.float32
    bf16 = jnp.bfloat16

    # ---------------- FCN branch: (conv 'same' -> BN(eval) -> ReLU) x3, batch folded into M ----------------
    # conv1 (in_channels == 1): single (B*L, K1) @ (K1, F1) MXU matmul; BN1 scale folded into w1.
    a1 = jnp.dot(xcol1_ref[...], w1_ref[...], preferred_element_type=f32)          # (BL, F1)
    c1 = jnp.maximum(a1 + t1_ref[...], 0.0)

    # conv2: K2 tap-accumulating matmuls over shifted reads of the bf16 pad scratch (cast once).
    pad2_ref[:, 0:HALO, :] = jnp.zeros((B, HALO, F1), bf16)                        # left halo (full tiles)
    pad2_ref[:, HALO + L:LP2, :] = jnp.zeros((B, LP2 - HALO - L, F1), bf16)        # right halo (full tiles)
    pad2_ref[:, HALO:HALO + L, :] = c1.astype(bf16).reshape(B, L, F1)              # tile-aligned main store
    acc2 = None
    for t in range(K2):
        lhs = pad2_ref[:, HALO - PL2 + t:HALO - PL2 + t + L, :].reshape(BL, F1)
        p = jnp.dot(lhs, w2_ref[t], preferred_element_type=f32)                    # (BL, F2)
        acc2 = p if acc2 is None else acc2 + p
    c2 = jnp.maximum(acc2 + t2_ref[...], 0.0)

    # conv3: same pattern, K3 taps.
    pad3_ref[:, 0:HALO, :] = jnp.zeros((B, HALO, F2), bf16)
    pad3_ref[:, HALO + L:LP3, :] = jnp.zeros((B, LP3 - HALO - L, F2), bf16)
    pad3_ref[:, HALO:HALO + L, :] = c2.astype(bf16).reshape(B, L, F2)
    acc3 = None
    for t in range(K3):
        lhs = pad3_ref[:, HALO - PL3 + t:HALO - PL3 + t + L, :].reshape(BL, F2)
        p = jnp.dot(lhs, w3_ref[t], preferred_element_type=f32)                    # (BL, F3)
        acc3 = p if acc3 is None else acc3 + p
    c3 = jnp.maximum(acc3 + t3_ref[...], 0.0)

    # global average pooling over time (1/L folded into wfc, so a plain sum suffices).
    gap_sum = jnp.sum(c3.reshape(B, L, F3), axis=1)                                # (B, F3)

    # ---------------- LSTM branch (fully unrolled; L static and small) ----------------
    # TODO(synk): if L grows to >=64, switch to lax.fori_loop(..., unroll=4) to bound live ranges.
    whh_b = jnp.broadcast_to(whh_ref[...][None, :, :], (B, H, 4 * H))              # hoisted constant
    h = jnp.zeros((B, H), f32)
    c = jnp.zeros((B, H), f32)
    for t in range(L):
        if t == 0:
            pre = xw_ref[0]                                                        # h == 0 at step 0
        else:
            # (B,H)@(H,4H) on the VPU/XLU: keeps the latency-critical serial steps out of the
            # in-order MXU result FIFO that the big conv matmuls are draining (v5e/v6e).
            hw = jnp.sum(h[:, :, None] * whh_b, axis=1)                            # (B, 4H)
            pre = xw_ref[t] + hw
        # One EUP launch for all four gates: sigma(x) = 0.5*tanh(x/2)+0.5; the 1/2 is folded
        # exactly into the i/f/o columns of xw/whh in the wrapper, the g column is untouched,
        # so th[:, 2H:3H] is exactly tanh(g_pre).
        th = jnp.tanh(pre)                                                         # (B, 4H)
        sg = 0.5 * th + 0.5                                                        # sigmoid(i), sigmoid(f), sigmoid(o)
        c = sg[:, H:2 * H] * c + sg[:, 0:H] * th[:, 2 * H:3 * H]
        h = sg[:, 3 * H:4 * H] * jnp.tanh(c)
    # Dropout(p=0.8) is identity in eval/inference mode.

    # ---------------- head: fc(concat([h_last, gap])) as a split matmul ----------------
    out_ref[...] = (jnp.dot(h, wfh_ref[...], preferred_element_type=f32)
                    + jnp.dot(gap_sum, wfc_ref[...], preferred_element_type=f32)
                    + bf_ref[...])


def _round_up(v, m):
    return ((v + m - 1) // m) * m


def lstm_fcn_pallas(x, params):
    """x: (B, L, 1) float32 (batch_first, as in the PyTorch module)."""
    B, L, I = x.shape
    assert I == INPUT_SIZE == 1
    H = HIDDEN
    f32 = jnp.float32
    bf16 = jnp.bfloat16
    x = x.astype(f32)

    PR2 = K2 - 1 - PL2
    PR3 = K3 - 1 - PL3
    LP2 = HALO + _round_up(L + PR2, HALO)
    LP3 = HALO + _round_up(L + PR3, HALO)

    # ----- LSTM parameter prep: gate-fusion scaling + per-step input table -----
    # sigma(x) = 0.5*tanh(x/2)+0.5 -> halve the i/f/o gate pre-activations; g column stays.
    gs = jnp.concatenate([jnp.full((2 * H,), 0.5, f32),
                          jnp.ones((H,), f32),
                          jnp.full((H,), 0.5, f32)])                               # (4H,)
    wih_row = params["w_ih"][:, 0].astype(f32)                                     # (4H,), INPUT_SIZE == 1
    b_l = (params["b_ih"] + params["b_hh"]).astype(f32)                            # (4H,)
    # xw[t, b, :] = gs * (x[b, t] * w_ih + b)  -> clean (B, 4H) lane layout per step.
    xw = gs[None, None, :] * (jnp.transpose(x[:, :, 0])[:, :, None] * wih_row[None, None, :]
                              + b_l[None, None, :])                                # (L, B, 4H)
    whh = (jnp.transpose(params["w_hh"]) * gs[None, :]).astype(f32)                # (H, 4H)

    # ----- conv1 im2col of the zero-padded input (layout plumbing only, no compute) -----
    x_p = jnp.pad(x[:, :, 0], ((0, 0), (PL1, K1 - 1 - PL1)))                       # (B, L+K1-1)
    xcol1 = jnp.stack([x_p[:, t:t + L] for t in range(K1)], axis=-1)               # (B, L, K1)
    xcol1 = xcol1.reshape(B * L, K1).astype(bf16)

    # ----- fold conv bias + eval-mode BatchNorm into per-channel scale/shift (exact) -----
    def fold_bn(conv_b, gamma, beta, mean, var):
        scale = gamma / jnp.sqrt(var + BN_EPS)
        shift = beta + (conv_b - mean) * scale
        return scale.astype(f32), shift[None, :].astype(f32)

    s1, t1 = fold_bn(params["conv1_b"], params["bn1_g"], params["bn1_b"],
                     params["bn1_m"], params["bn1_v"])
    s2, t2 = fold_bn(params["conv2_b"], params["bn2_g"], params["bn2_b"],
                     params["bn2_m"], params["bn2_v"])
    s3, t3 = fold_bn(params["conv3_b"], params["bn3_g"], params["bn3_b"],
                     params["bn3_m"], params["bn3_v"])

    # BN scale folded into the output channels of the conv weights; bf16 for the MXU.
    w1 = (jnp.transpose(params["conv1_w"][:, 0, :]) * s1[None, :]).astype(bf16)            # (K1, F1)
    w2 = (jnp.transpose(params["conv2_w"], (2, 1, 0)) * s2[None, None, :]).astype(bf16)    # (K2, F1, F2)
    w3 = (jnp.transpose(params["conv3_w"], (2, 1, 0)) * s3[None, None, :]).astype(bf16)    # (K3, F2, F3)

    wfh = jnp.transpose(params["fc_w"][:, :H]).astype(f32)                         # (H, NC)
    wfc = (jnp.transpose(params["fc_w"][:, H:]) / L).astype(f32)                   # (F3, NC), GAP 1/L folded
    bf = params["fc_b"][None, :].astype(f32)                                       # (1, NC)

    inputs = (xw, whh, xcol1, w1, t1, w2, t2, w3, t3, wfh, wfc, bf)
    vmem = pl.BlockSpec(memory_space=pltpu.MemorySpace.VMEM)

    return pl.pallas_call(
        lstm_fcn_kernel,
        out_shape=jax.ShapeDtypeStruct((B, NUM_CLASSES), f32),
        in_specs=[vmem] * len(inputs),
        out_specs=vmem,
        scratch_shapes=[
            pltpu.VMEM((B, LP2, F1), bf16),
            pltpu.VMEM((B, LP3, F2), bf16),
        ],
    )(*inputs)


# ---------------- pure-JAX reference (independent path, for validation) ----------------
def lstm_fcn_reference(x, params):
    B, L, _ = x.shape
    H = HIDDEN
    b = params["b_ih"] + params["b_hh"]
    h = jnp.zeros((B, H), jnp.float32)
    c = jnp.zeros((B, H), jnp.float32)
    for t in range(L):
        gates = x[:, t, :] @ params["w_ih"].T + h @ params["w_hh"].T + b
        i = jax.nn.sigmoid(gates[:, :H])
        f = jax.nn.sigmoid(gates[:, H:2 * H])
        g = jnp.tanh(gates[:, 2 * H:3 * H])
        o = jax.nn.sigmoid(gates[:, 3 * H:])
        c = f * c + i * g
        h = o * jnp.tanh(c)
    h_last = h

    def conv_bn_relu(inp, w, bias, gamma, beta, mean, var, pad_l, pad_r):
        xp = jnp.pad(inp, ((0, 0), (0, 0), (pad_l, pad_r)))
        y = lax.conv_general_dilated(xp, w, (1,), "VALID",
                                     dimension_numbers=("NCH", "OIH", "NCH"),
                                     precision=lax.Precision.HIGHEST)
        y = y + bias[None, :, None]
        y = ((y - mean[None, :, None]) / jnp.sqrt(var + BN_EPS)[None, :, None]
             * gamma[None, :, None] + beta[None, :, None])
        return jnp.maximum(y, 0.0)

    xc = jnp.transpose(x, (0, 2, 1))                                               # (B, 1, L)
    c1 = conv_bn_relu(xc, params["conv1_w"], params["conv1_b"],
                      params["bn1_g"], params["bn1_b"], params["bn1_m"], params["bn1_v"], 3, 4)
    c2 = conv_bn_relu(c1, params["conv2_w"], params["conv2_b"],
                      params["bn2_g"], params["bn2_b"], params["bn2_m"], params["bn2_v"], 2, 2)
    c3 = conv_bn_relu(c2, params["conv3_w"], params["conv3_b"],
                      params["bn3_g"], params["bn3_b"], params["bn3_m"], params["bn3_v"], 1, 1)
    gap = jnp.mean(c3, axis=2)                                                     # (B, F3)
    combined = jnp.concatenate([h_last, gap], axis=1)
    return combined @ params["fc_w"].T + params["fc_b"]


def init_params(key):
    ks = jax.random.split(key, 24)

    def nrm(k, shape, scale):
        return scale * jax.random.normal(k, shape, jnp.float32)

    p = {}
    p["w_ih"] = nrm(ks[0], (4 * HIDDEN, INPUT_SIZE), 0.3)
    p["w_hh"] = nrm(ks[1], (4 * HIDDEN, HIDDEN), 0.3)
    p["b_ih"] = nrm(ks[2], (4 * HIDDEN,), 0.1)
    p["b_hh"] = nrm(ks[3], (4 * HIDDEN,), 0.1)
    p["conv1_w"] = nrm(ks[4], (F1, 1, K1), 0.2)
    p["conv1_b"] = nrm(ks[5], (F1,), 0.1)
    p["bn1_g"] = 1.0 + nrm(ks[6], (F1,), 0.1)
    p["bn1_b"] = nrm(ks[7], (F1,), 0.1)
    p["bn1_m"] = nrm(ks[8], (F1,), 0.1)
    p["bn1_v"] = jax.random.uniform(ks[9], (F1,), jnp.float32, 0.5, 1.5)
    p["conv2_w"] = nrm(ks[10], (F2, F1, K2), 0.05)
    p["conv2_b"] = nrm(ks[11], (F2,), 0.1)
    p["bn2_g"] = 1.0 + nrm(ks[12], (F2,), 0.1)
    p["bn2_b"] = nrm(ks[13], (F2,), 0.1)
    p["bn2_m"] = nrm(ks[14], (F2,), 0.1)
    p["bn2_v"] = jax.random.uniform(ks[15], (F2,), jnp.float32, 0.5, 1.5)
    p["conv3_w"] = nrm(ks[16], (F3, F2, K3), 0.05)
    p["conv3_b"] = nrm(ks[17], (F3,), 0.1)
    p["bn3_g"] = 1.0 + nrm(ks[18], (F3,), 0.1)
    p["bn3_b"] = nrm(ks[19], (F3,), 0.1)
    p["bn3_m"] = nrm(ks[20], (F3,), 0.1)
    p["bn3_v"] = jax.random.uniform(ks[21], (F3,), jnp.float32, 0.5, 1.5)
    p["conv3_w"] = p["conv3_w"]
    p["fc_w"] = nrm(ks[22], (NUM_CLASSES, HIDDEN + F3), 0.1)
    p["fc_b"] = nrm(ks[23], (NUM_CLASSES,), 0.1)
    return p


if __name__ == "__main__":
    key = jax.random.PRNGKey(0)
    pkey, xkey = jax.random.split(key)
    params = init_params(pkey)

    B, L = 2, 16
    x = jax.random.normal(xkey, (B, L, INPUT_SIZE), jnp.float32)

    out = lstm_fcn_pallas(x, params)
    out = jax.block_until_ready(out)

    ref = lstm_fcn_reference(x, params)
    assert out.shape == (B, NUM_CLASSES)
    assert bool(jnp.all(jnp.isfinite(out)))
    assert bool(jnp.allclose(out, ref, rtol=3e-2, atol=3e-2))

    print("KERNEL_OK")
</pallas_src>

<mosaic_0001>
module attributes {stable_mosaic.version = 11 : i64} {
  func.func @lstm_fcn_kernel(%arg0: memref<16x2x32xf32, #tpu.memory_space<vmem>>, %arg1: memref<8x32xf32, #tpu.memory_space<vmem>>, %arg2: memref<32x8xbf16, #tpu.memory_space<vmem>>, %arg3: memref<8x128xbf16, #tpu.memory_space<vmem>>, %arg4: memref<1x128xf32, #tpu.memory_space<vmem>>, %arg5: memref<5x128x256xbf16, #tpu.memory_space<vmem>>, %arg6: memref<1x256xf32, #tpu.memory_space<vmem>>, %arg7: memref<3x256x128xbf16, #tpu.memory_space<vmem>>, %arg8: memref<1x128xf32, #tpu.memory_space<vmem>>, %arg9: memref<8x3xf32, #tpu.memory_space<vmem>>, %arg10: memref<128x3xf32, #tpu.memory_space<vmem>>, %arg11: memref<1x3xf32, #tpu.memory_space<vmem>>, %arg12: memref<2x3xf32, #tpu.memory_space<vmem>>, %arg13: memref<2x48x128xbf16, #tpu.memory_space<vmem>>, %arg14: memref<2x48x256xbf16, #tpu.memory_space<vmem>>) attributes {dimension_semantics = [], scalar_prefetch = 0 : i64, scratch_operands = 2 : i64, tpu.core_type = #tpu.core_type<tc>} {
    %c0 = arith.constant 0 : index
    %c0_0 = arith.constant 0 : index
    %0 = vector.load %arg2[%c0, %c0_0] : memref<32x8xbf16, #tpu.memory_space<vmem>>, vector<32x8xbf16>
    %c0_1 = arith.constant 0 : index
    %c0_2 = arith.constant 0 : index
    %1 = vector.load %arg3[%c0_1, %c0_2] : memref<8x128xbf16, #tpu.memory_space<vmem>>, vector<8x128xbf16>
    %cst = arith.constant dense<0.000000e+00> : vector<32x128xf32>
    %2 = tpu.matmul %0, %1, %cst {dimension_numbers = #tpu.dot_dimension_numbers<[1], [0], [0], [1], [0, 0, 1, 1], [], []>} : vector<32x8xbf16>, vector<8x128xbf16>, vector<32x128xf32> -> vector<32x128xf32>
    %c0_3 = arith.constant 0 : index
    %c0_4 = arith.constant 0 : index
    %3 = vector.load %arg4[%c0_3, %c0_4] : memref<1x128xf32, #tpu.memory_space<vmem>>, vector<1x128xf32>
    %4 = vector.broadcast %3 : vector<1x128xf32> to vector<32x128xf32>
    %5 = arith.addf %2, %4 : vector<32x128xf32>
    %cst_5 = arith.constant 0.000000e+00 : f32
    %6 = vector.broadcast %cst_5 : f32 to vector<32x128xf32>
    %7 = arith.maximumf %5, %6 : vector<32x128xf32>
    %cst_6 = arith.constant 0.000000e+00 : bf16
    %8 = vector.broadcast %cst_6 : bf16 to vector<2x16x128xbf16>
    %c0_7 = arith.constant 0 : index
    %c0_8 = arith.constant 0 : index
    %c0_9 = arith.constant 0 : index
    %9 = vector.load %arg13[%c0_7, %c0_8, %c0_9] : memref<2x48x128xbf16, #tpu.memory_space<vmem>>, vector<2x16x128xbf16>
    tpu.vector_store %arg13[%c0_7, %c0_8, %c0_9], %8 {strides = array<i32>} : memref<2x48x128xbf16, #tpu.memory_space<vmem>>, vector<2x16x128xbf16>,
    %cst_10 = arith.constant 0.000000e+00 : bf16
    %10 = vector.broadcast %cst_10 : bf16 to vector<2x16x128xbf16>
    %c0_11 = arith.constant 0 : index
    %c32 = arith.constant 32 : index
    %c0_12 = arith.constant 0 : index
    %11 = vector.load %arg13[%c0_11, %c32, %c0_12] : memref<2x48x128xbf16, #tpu.memory_space<vmem>>, vector<2x16x128xbf16>
    tpu.vector_store %arg13[%c0_11, %c32, %c0_12], %10 {strides = array<i32>} : memref<2x48x128xbf16, #tpu.memory_space<vmem>>, vector<2x16x128xbf16>,
    %12 = arith.truncf %7 : vector<32x128xf32> to vector<32x128xbf16>
    %13 = vector.shape_cast %12 : vector<32x128xbf16> to vector<2x16x128xbf16>
    %c0_13 = arith.constant 0 : index
    %c16 = arith.constant 16 : index
    %c0_14 = arith.constant 0 : index
    %14 = vector.load %arg13[%c0_13, %c16, %c0_14] : memref<2x48x128xbf16, #tpu.memory_space<vmem>>, vector<2x16x128xbf16>
    tpu.vector_store %arg13[%c0_13, %c16, %c0_14], %13 {strides = array<i32>} : memref<2x48x128xbf16, #tpu.memory_space<vmem>>, vector<2x16x128xbf16>,
    %c0_15 = arith.constant 0 : index
    %c14 = arith.constant 14 : index
    %c0_16 = arith.constant 0 : index
    %15 = vector.load %arg13[%c0_15, %c14, %c0_16] : memref<2x48x128xbf16, #tpu.memory_space<vmem>>, vector<2x16x128xbf16>
    %16 = vector.shape_cast %15 : vector<2x16x128xbf16> to vector<32x128xbf16>
    %c0_17 = arith.constant 0 : index
    %c0_18 = arith.constant 0 : index
    %c0_19 = arith.constant 0 : index
    %17 = vector.load %arg5[%c0_17, %c0_18, %c0_19] : memref<5x128x256xbf16, #tpu.memory_space<vmem>>, vector<1x128x256xbf16>
    %18 = vector.shape_cast %17 : vector<1x128x256xbf16> to vector<128x256xbf16>
    %cst_20 = arith.constant dense<0.000000e+00> : vector<32x256xf32>
    %19 = tpu.matmul %16, %18, %cst_20 {dimension_numbers = #tpu.dot_dimension_numbers<[1], [0], [0], [1], [0, 0, 1, 1], [], []>} : vector<32x128xbf16>, vector<128x256xbf16>, vector<32x256xf32> -> vector<32x256xf32>
    %c0_21 = arith.constant 0 : index
    %c15 = arith.constant 15 : index
    %c0_22 = arith.constant 0 : index
    %20 = vector.load %arg13[%c0_21, %c15, %c0_22] : memref<2x48x128xbf16, #tpu.memory_space<vmem>>, vector<2x16x128xbf16>
    %21 = vector.shape_cast %20 : vector<2x16x128xbf16> to vector<32x128xbf16>
    %c1 = arith.constant 1 : index
    %c0_23 = arith.constant 0 : index
    %c0_24 = arith.constant 0 : index
    %22 = vector.load %arg5[%c1, %c0_23, %c0_24] : memref<5x128x256xbf16, #tpu.memory_space<vmem>>, vector<1x128x256xbf16>
    %23 = vector.shape_cast %22 : vector<1x128x256xbf16> to vector<128x256xbf16>
    %cst_25 = arith.constant dense<0.000000e+00> : vector<32x256xf32>
    %24 = tpu.matmul %21, %23, %cst_25 {dimension_numbers = #tpu.dot_dimension_numbers<[1], [0], [0], [1], [0, 0, 1, 1], [], []>} : vector<32x128xbf16>, vector<128x256xbf16>, vector<32x256xf32> -> vector<32x256xf32>
    %25 = arith.addf %19, %24 : vector<32x256xf32>
    %c0_26 = arith.constant 0 : index
    %c16_27 = arith.constant 16 : index
    %c0_28 = arith.constant 0 : index
    %26 = vector.load %arg13[%c0_26, %c16_27, %c0_28] : memref<2x48x128xbf16, #tpu.memory_space<vmem>>, vector<2x16x128xbf16>
    %27 = vector.shape_cast %26 : vector<2x16x128xbf16> to vector<32x128xbf16>
    %c2 = arith.constant 2 : index
    %c0_29 = arith.constant 0 : index
    %c0_30 = arith.constant 0 : index
    %28 = vector.load %arg5[%c2, %c0_29, %c0_30] : memref<5x128x256xbf16, #tpu.memory_space<vmem>>, vector<1x128x256xbf16>
    %29 = vector.shape_cast %28 : vector<1x128x256xbf16> to vector<128x256xbf16>
    %cst_31 = arith.constant dense<0.000000e+00> : vector<32x256xf32>
    %30 = tpu.matmul %27, %29, %cst_31 {dimension_numbers = #tpu.dot_dimension_numbers<[1], [0], [0], [1], [0, 0, 1, 1], [], []>} : vector<32x128xbf16>, vector<128x256xbf16>, vector<32x256xf32> -> vector<32x256xf32>
    %31 = arith.addf %25, %30 : vector<32x256xf32>
    %c0_32 = arith.constant 0 : index
    %c17 = arith.constant 17 : index
    %c0_33 = arith.constant 0 : index
    %32 = vector.load %arg13[%c0_32, %c17, %c0_33] : memref<2x48x128xbf16, #tpu.memory_space<vmem>>, vector<2x16x128xbf16>
    %33 = vector.shape_cast %32 : vector<2x16x128xbf16> to vector<32x128xbf16>
    %c3 = arith.constant 3 : index
    %c0_34 = arith.constant 0 : index
    %c0_35 = arith.constant 0 : index
    %34 = vector.load %arg5[%c3, %c0_34, %c0_35] : memref<5x128x256xbf16, #tpu.memory_space<vmem>>, vector<1x128x256xbf16>
    %35 = vector.shape_cast %34 : vector<1x128x256xbf16> to vector<128x256xbf16>
    %cst_36 = arith.constant dense<0.000000e+00> : vector<32x256xf32>
    %36 = tpu.matmul %33, %35, %cst_36 {dimension_numbers = #tpu.dot_dimension_numbers<[1], [0], [0], [1], [0, 0, 1, 1], [], []>} : vector<32x128xbf16>, vector<128x256xbf16>, vector<32x256xf32> -> vector<32x256xf32>
    %37 = arith.addf %31, %36 : vector<32x256xf32>
    %c0_37 = arith.constant 0 : index
    %c18 = arith.constant 18 : index
    %c0_38 = arith.constant 0 : index
    %38 = vector.load %arg13[%c0_37, %c18, %c0_38] : memref<2x48x128xbf16, #tpu.memory_space<vmem>>, vector<2x16x128xbf16>
    %39 = vector.shape_cast %38 : vector<2x16x128xbf16> to vector<32x128xbf16>
    %c4 = arith.constant 4 : index
    %c0_39 = arith.constant 0 : index
    %c0_40 = arith.constant 0 : index
    %40 = vector.load %arg5[%c4, %c0_39, %c0_40] : memref<5x128x256xbf16, #tpu.memory_space<vmem>>, vector<1x128x256xbf16>
    %41 = vector.shape_cast %40 : vector<1x128x256xbf16> to vector<128x256xbf16>
    %cst_41 = arith.constant dense<0.000000e+00> : vector<32x256xf32>
    %42 = tpu.matmul %39, %41, %cst_41 {dimension_numbers = #tpu.dot_dimension_numbers<[1], [0], [0], [1], [0, 0, 1, 1], [], []>} : vector<32x128xbf16>, vector<128x256xbf16>, vector<32x256xf32> -> vector<32x256xf32>
    %43 = arith.addf %37, %42 : vector<32x256xf32>
    %c0_42 = arith.constant 0 : index
    %c0_43 = arith.constant 0 : index
    %44 = vector.load %arg6[%c0_42, %c0_43] : memref<1x256xf32, #tpu.memory_space<vmem>>, vector<1x256xf32>
    %45 = vector.broadcast %44 : vector<1x256xf32> to vector<32x256xf32>
    %46 = arith.addf %43, %45 : vector<32x256xf32>
    %cst_44 = arith.constant 0.000000e+00 : f32
    %47 = vector.broadcast %cst_44 : f32 to vector<32x256xf32>
    %48 = arith.maximumf %46, %47 : vector<32x256xf32>
    %cst_45 = arith.constant 0.000000e+00 : bf16
    %49 = vector.broadcast %cst_45 : bf16 to vector<2x16x256xbf16>
    %c0_46 = arith.constant 0 : index
    %c0_47 = arith.constant 0 : index
    %c0_48 = arith.constant 0 : index
    %50 = vector.load %arg14[%c0_46, %c0_47, %c0_48] : memref<2x48x256xbf16, #tpu.memory_space<vmem>>, vector<2x16x256xbf16>
    tpu.vector_store %arg14[%c0_46, %c0_47, %c0_48], %49 {strides = array<i32>} : memref<2x48x256xbf16, #tpu.memory_space<vmem>>, vector<2x16x256xbf16>,
    %cst_49 = arith.constant 0.000000e+00 : bf16
    %51 = vector.broadcast %cst_49 : bf16 to vector<2x16x256xbf16>
    %c0_50 = arith.constant 0 : index
    %c32_51 = arith.constant 32 : index
    %c0_52 = arith.constant 0 : index
    %52 = vector.load %arg14[%c0_50, %c32_51, %c0_52] : memref<2x48x256xbf16, #tpu.memory_space<vmem>>, vector<2x16x256xbf16>
    tpu.vector_store %arg14[%c0_50, %c32_51, %c0_52], %51 {strides = array<i32>} : memref<2x48x256xbf16, #tpu.memory_space<vmem>>, vector<2x16x256xbf16>,
    %53 = arith.truncf %48 : vector<32x256xf32> to vector<32x256xbf16>
    %54 = vector.shape_cast %53 : vector<32x256xbf16> to vector<2x16x256xbf16>
    %c0_53 = arith.constant 0 : index
    %c16_54 = arith.constant 16 : index
    %c0_55 = arith.constant 0 : index
    %55 = vector.load %arg14[%c0_53, %c16_54, %c0_55] : memref<2x48x256xbf16, #tpu.memory_space<vmem>>, vector<2x16x256xbf16>
    tpu.vector_store %arg14[%c0_53, %c16_54, %c0_55], %54 {strides = array<i32>} : memref<2x48x256xbf16, #tpu.memory_space<vmem>>, vector<2x16x256xbf16>,
    %c0_56 = arith.constant 0 : index
    %c15_57 = arith.constant 15 : index
    %c0_58 = arith.constant 0 : index
    %56 = vector.load %arg14[%c0_56, %c15_57, %c0_58] : memref<2x48x256xbf16, #tpu.memory_space<vmem>>, vector<2x16x256xbf16>
    %57 = vector.shape_cast %56 : vector<2x16x256xbf16> to vector<32x256xbf16>
    %c0_59 = arith.constant 0 : index
    %c0_60 = arith.constant 0 : index
    %c0_61 = arith.constant 0 : index
    %58 = vector.load %arg7[%c0_59, %c0_60, %c0_61] : memref<3x256x128xbf16, #tpu.memory_space<vmem>>, vector<1x256x128xbf16>
    %59 = vector.shape_cast %58 : vector<1x256x128xbf16> to vector<256x128xbf16>
    %cst_62 = arith.constant dense<0.000000e+00> : vector<32x128xf32>
    %60 = tpu.matmul %57, %59, %cst_62 {dimension_numbers = #tpu.dot_dimension_numbers<[1], [0], [0], [1], [0, 0, 1, 1], [], []>} : vector<32x256xbf16>, vector<256x128xbf16>, vector<32x128xf32> -> vector<32x128xf32>
    %c0_63 = arith.constant 0 : index
    %c16_64 = arith.constant 16 : index
    %c0_65 = arith.constant 0 : index
    %61 = vector.load %arg14[%c0_63, %c16_64, %c0_65] : memref<2x48x256xbf16, #tpu.memory_space<vmem>>, vector<2x16x256xbf16>
    %62 = vector.shape_cast %61 : vector<2x16x256xbf16> to vector<32x256xbf16>
    %c1_66 = arith.constant 1 : index
    %c0_67 = arith.constant 0 : index
    %c0_68 = arith.constant 0 : index
    %63 = vector.load %arg7[%c1_66, %c0_67, %c0_68] : memref<3x256x128xbf16, #tpu.memory_space<vmem>>, vector<1x256x128xbf16>
    %64 = vector.shape_cast %63 : vector<1x256x128xbf16> to vector<256x128xbf16>
    %cst_69 = arith.constant dense<0.000000e+00> : vector<32x128xf32>
    %65 = tpu.matmul %62, %64, %cst_69 {dimension_numbers = #tpu.dot_dimension_numbers<[1], [0], [0], [1], [0, 0, 1, 1], [], []>} : vector<32x256xbf16>, vector<256x128xbf16>, vector<32x128xf32> -> vector<32x128xf32>
    %66 = arith.addf %60, %65 : vector<32x128xf32>
    %c0_70 = arith.constant 0 : index
    %c17_71 = arith.constant 17 : index
    %c0_72 = arith.constant 0 : index
    %67 = vector.load %arg14[%c0_70, %c17_71, %c0_72] : memref<2x48x256xbf16, #tpu.memory_space<vmem>>, vector<2x16x256xbf16>
    %68 = vector.shape_cast %67 : vector<2x16x256xbf16> to vector<32x256xbf16>
    %c2_73 = arith.constant 2 : index
    %c0_74 = arith.constant 0 : index
    %c0_75 = arith.constant 0 : index
    %69 = vector.load %arg7[%c2_73, %c0_74, %c0_75] : memref<3x256x128xbf16, #tpu.memory_space<vmem>>, vector<1x256x128xbf16>
    %70 = vector.shape_cast %69 : vector<1x256x128xbf16> to vector<256x128xbf16>
    %cst_76 = arith.constant dense<0.000000e+00> : vector<32x128xf32>
    %71 = tpu.matmul %68, %70, %cst_76 {dimension_numbers = #tpu.dot_dimension_numbers<[1], [0], [0], [1], [0, 0, 1, 1], [], []>} : vector<32x256xbf16>, vector<256x128xbf16>, vector<32x128xf32> -> vector<32x128xf32>
    %72 = arith.addf %66, %71 : vector<32x128xf32>
    %c0_77 = arith.constant 0 : index
    %c0_78 = arith.constant 0 : index
    %73 = vector.load %arg8[%c0_77, %c0_78] : memref<1x128xf32, #tpu.memory_space<vmem>>, vector<1x128xf32>
    %74 = vector.broadcast %73 : vector<1x128xf32> to vector<32x128xf32>
    %75 = arith.addf %72, %74 : vector<32x128xf32>
    %cst_79 = arith.constant 0.000000e+00 : f32
    %76 = vector.broadcast %cst_79 : f32 to vector<32x128xf32>
    %77 = arith.maximumf %75, %76 : vector<32x128xf32>
    %78 = vector.shape_cast %77 : vector<32x128xf32> to vector<2x16x128xf32>
    %cst_80 = arith.constant dense<0.000000e+00> : vector<2x128xf32>
    %79 = vector.multi_reduction <add>, %78, %cst_80 [1] : vector<2x16x128xf32> to vector<2x128xf32>
    %c0_81 = arith.constant 0 : index
    %c0_82 = arith.constant 0 : index
    %80 = vector.load %arg1[%c0_81, %c0_82] : memref<8x32xf32, #tpu.memory_space<vmem>>, vector<8x32xf32>
    %81 = vector.shape_cast %80 : vector<8x32xf32> to vector<1x8x32xf32>
    %82 = vector.shape_cast %81 : vector<1x8x32xf32> to vector<1x8x32xf32>
    %83 = vector.broadcast %82 : vector<1x8x32xf32> to vector<2x8x32xf32>
    %cst_83 = arith.constant 0.000000e+00 : f32
    %84 = vector.broadcast %cst_83 : f32 to vector<2x8xf32>
    %c0_84 = arith.constant 0 : index
    %c0_85 = arith.constant 0 : index
    %c0_86 = arith.constant 0 : index
    %85 = vector.load %arg0[%c0_84, %c0_85, %c0_86] : memref<16x2x32xf32, #tpu.memory_space<vmem>>, vector<1x2x32xf32>
    %86 = vector.shape_cast %85 : vector<1x2x32xf32> to vector<2x32xf32>
    %87 = math.tanh %86 : vector<2x32xf32>
    %cst_87 = arith.constant 5.000000e-01 : f32
    %88 = vector.broadcast %cst_87 : f32 to vector<2x32xf32>
    %89 = arith.mulf %88, %87 : vector<2x32xf32>
    %cst_88 = arith.constant 5.000000e-01 : f32
    %90 = vector.broadcast %cst_88 : f32 to vector<2x32xf32>
    %91 = arith.addf %89, %90 : vector<2x32xf32>
    %92 = vector.extract_strided_slice %91 {offsets = [0, 8], sizes = [2, 8], strides = [1, 1]} : vector<2x32xf32> to vector<2x8xf32>
    %93 = arith.mulf %92, %84 : vector<2x8xf32>
    %94 = vector.extract_strided_slice %91 {offsets = [0, 0], sizes = [2, 8], strides = [1, 1]} : vector<2x32xf32> to vector<2x8xf32>
    %95 = vector.extract_strided_slice %87 {offsets = [0, 16], sizes = [2, 8], strides = [1, 1]} : vector<2x32xf32> to vector<2x8xf32>
    %96 = arith.mulf %94, %95 : vector<2x8xf32>
    %97 = arith.addf %93, %96 : vector<2x8xf32>
    %98 = vector.extract_strided_slice %91 {offsets = [0, 24], sizes = [2, 8], strides = [1, 1]} : vector<2x32xf32> to vector<2x8xf32>
    %99 = math.tanh %97 : vector<2x8xf32>
    %100 = arith.mulf %98, %99 : vector<2x8xf32>
    %101 = vector.shape_cast %100 : vector<2x8xf32> to vector<2x8x1xf32>
    %102 = vector.broadcast %101 : vector<2x8x1xf32> to vector<2x8x32xf32>
    %103 = arith.mulf %102, %83 : vector<2x8x32xf32>
    %cst_89 = arith.constant dense<0.000000e+00> : vector<2x32xf32>
    %104 = vector.multi_reduction <add>, %103, %cst_89 [1] : vector<2x8x32xf32> to vector<2x32xf32>
    %c1_90 = arith.constant 1 : index
    %c0_91 = arith.constant 0 : index
    %c0_92 = arith.constant 0 : index
    %105 = vector.load %arg0[%c1_90, %c0_91, %c0_92] : memref<16x2x32xf32, #tpu.memory_space<vmem>>, vector<1x2x32xf32>
    %106 = vector.shape_cast %105 : vector<1x2x32xf32> to vector<2x32xf32>
    %107 = arith.addf %106, %104 : vector<2x32xf32>
    %108 = math.tanh %107 : vector<2x32xf32>
    %cst_93 = arith.constant 5.000000e-01 : f32
    %109 = vector.broadcast %cst_93 : f32 to vector<2x32xf32>
    %110 = arith.mulf %109, %108 : vector<2x32xf32>
    %cst_94 = arith.constant 5.000000e-01 : f32
    %111 = vector.broadcast %cst_94 : f32 to vector<2x32xf32>
    %112 = arith.addf %110, %111 : vector<2x32xf32>
    %113 = vector.extract_strided_slice %112 {offsets = [0, 8], sizes = [2, 8], strides = [1, 1]} : vector<2x32xf32> to vector<2x8xf32>
    %114 = arith.mulf %113, %97 : vector<2x8xf32>
    %115 = vector.extract_strided_slice %112 {offsets = [0, 0], sizes = [2, 8], strides = [1, 1]} : vector<2x32xf32> to vector<2x8xf32>
    %116 = vector.extract_strided_slice %108 {offsets = [0, 16], sizes = [2, 8], strides = [1, 1]} : vector<2x32xf32> to vector<2x8xf32>
    %117 = arith.mulf %115, %116 : vector<2x8xf32>
    %118 = arith.addf %114, %117 : vector<2x8xf32>
    %119 = vector.extract_strided_slice %112 {offsets = [0, 24], sizes = [2, 8], strides = [1, 1]} : vector<2x32xf32> to vector<2x8xf32>
    %120 = math.tanh %118 : vector<2x8xf32>
    %121 = arith.mulf %119, %120 : vector<2x8xf32>
    %122 = vector.shape_cast %121 : vector<2x8xf32> to vector<2x8x1xf32>
    %123 = vector.broadcast %122 : vector<2x8x1xf32> to vector<2x8x32xf32>
    %124 = arith.mulf %123, %83 : vector<2x8x32xf32>
    %cst_95 = arith.constant dense<0.000000e+00> : vector<2x32xf32>
    %125 = vector.multi_reduction <add>, %124, %cst_95 [1] : vector<2x8x32xf32> to vector<2x32xf32>
    %c2_96 = arith.constant 2 : index
    %c0_97 = arith.constant 0 : index
    %c0_98 = arith.constant 0 : index
    %126 = vector.load %arg0[%c2_96, %c0_97, %c0_98] : memref<16x2x32xf32, #tpu.memory_space<vmem>>, vector<1x2x32xf32>
    %127 = vector.shape_cast %126 : vector<1x2x32xf32> to vector<2x32xf32>
    %128 = arith.addf %127, %125 : vector<2x32xf32>
    %129 = math.tanh %128 : vector<2x32xf32>
    %cst_99 = arith.constant 5.000000e-01 : f32
    %130 = vector.broadcast %cst_99 : f32 to vector<2x32xf32>
    %131 = arith.mulf %130, %129 : vector<2x32xf32>
    %cst_100 = arith.constant 5.000000e-01 : f32
    %132 = vector.broadcast %cst_100 : f32 to vector<2x32xf32>
    %133 = arith.addf %131, %132 : vector<2x32xf32>
    %134 = vector.extract_strided_slice %133 {offsets = [0, 8], sizes = [2, 8], strides = [1, 1]} : vector<2x32xf32> to vector<2x8xf32>
    %135 = arith.mulf %134, %118 : vector<2x8xf32>
    %136 = vector.extract_strided_slice %133 {offsets = [0, 0], sizes = [2, 8], strides = [1, 1]} : vector<2x32xf32> to vector<2x8xf32>
    %137 = vector.extract_strided_slice %129 {offsets = [0, 16], sizes = [2, 8], strides = [1, 1]} : vector<2x32xf32> to vector<2x8xf32>
    %138 = arith.mulf %136, %137 : vector<2x8xf32>
    %139 = arith.addf %135, %138 : vector<2x8xf32>
    %140 = vector.extract_strided_slice %133 {offsets = [0, 24], sizes = [2, 8], strides = [1, 1]} : vector<2x32xf32> to vector<2x8xf32>
    %141 = math.tanh %139 : vector<2x8xf32>
    %142 = arith.mulf %140, %141 : vector<2x8xf32>
    %143 = vector.shape_cast %142 : vector<2x8xf32> to vector<2x8x1xf32>
    %144 = vector.broadcast %143 : vector<2x8x1xf32> to vector<2x8x32xf32>
    %145 = arith.mulf %144, %83 : vector<2x8x32xf32>
    %cst_101 = arith.constant dense<0.000000e+00> : vector<2x32xf32>
    %146 = vector.multi_reduction <add>, %145, %cst_101 [1] : vector<2x8x32xf32> to vector<2x32xf32>
    %c3_102 = arith.constant 3 : index
    %c0_103 = arith.constant 0 : index
    %c0_104 = arith.constant 0 : index
    %147 = vector.load %arg0[%c3_102, %c0_103, %c0_104] : memref<16x2x32xf32, #tpu.memory_space<vmem>>, vector<1x2x32xf32>
    %148 = vector.shape_cast %147 : vector<1x2x32xf32> to vector<2x32xf32>
    %149 = arith.addf %148, %146 : vector<2x32xf32>
    %150 = math.tanh %149 : vector<2x32xf32>
    %cst_105 = arith.constant 5.000000e-01 : f32
    %151 = vector.broadcast %cst_105 : f32 to vector<2x32xf32>
    %152 = arith.mulf %151, %150 : vector<2x32xf32>
    %cst_106 = arith.constant 5.000000e-01 : f32
    %153 = vector.broadcast %cst_106 : f32 to vector<2x32xf32>
    %154 = arith.addf %152, %153 : vector<2x32xf32>
    %155 = vector.extract_strided_slice %154 {offsets = [0, 8], sizes = [2, 8], strides = [1, 1]} : vector<2x32xf32> to vector<2x8xf32>
    %156 = arith.mulf %155, %139 : vector<2x8xf32>
    %157 = vector.extract_strided_slice %154 {offsets = [0, 0], sizes = [2, 8], strides = [1, 1]} : vector<2x32xf32> to vector<2x8xf32>
    %158 = vector.extract_strided_slice %150 {offsets = [0, 16], sizes = [2, 8], strides = [1, 1]} : vector<2x32xf32> to vector<2x8xf32>
    %159 = arith.mulf %157, %158 : vector<2x8xf32>
    %160 = arith.addf %156, %159 : vector<2x8xf32>
    %161 = vector.extract_strided_slice %154 {offsets = [0, 24], sizes = [2, 8], strides = [1, 1]} : vector<2x32xf32> to vector<2x8xf32>
    %162 = math.tanh %160 : vector<2x8xf32>
    %163 = arith.mulf %161, %162 : vector<2x8xf32>
    %164 = vector.shape_cast %163 : vector<2x8xf32> to vector<2x8x1xf32>
    %165 = vector.broadcast %164 : vector<2x8x1xf32> to vector<2x8x32xf32>
    %166 = arith.mulf %165, %83 : vector<2x8x32xf32>
    %cst_107 = arith.constant dense<0.000000e+00> : vector<2x32xf32>
    %167 = vector.multi_reduction <add>, %166, %cst_107 [1] : vector<2x8x32xf32> to vector<2x32xf32>
    %c4_108 = arith.constant 4 : index
    %c0_109 = arith.constant 0 : index
    %c0_110 = arith.constant 0 : index
    %168 = vector.load %arg0[%c4_108, %c0_109, %c0_110] : memref<16x2x32xf32, #tpu.memory_space<vmem>>, vector<1x2x32xf32>
    %169 = vector.shape_cast %168 : vector<1x2x32xf32> to vector<2x32xf32>
    %170 = arith.addf %169, %167 : vector<2x32xf32>
    %171 = math.tanh %170 : vector<2x32xf32>
    %cst_111 = arith.constant 5.000000e-01 : f32
    %172 = vector.broadcast %cst_111 : f32 to vector<2x32xf32>
    %173 = arith.mulf %172, %171 : vector<2x32xf32>
    %cst_112 = arith.constant 5.000000e-01 : f32
    %174 = vector.broadcast %cst_112 : f32 to vector<2x32xf32>
    %175 = arith.addf %173, %174 : vector<2x32xf32>
    %176 = vector.extract_strided_slice %175 {offsets = [0, 8], sizes = [2, 8], strides = [1, 1]} : vector<2x32xf32> to vector<2x8xf32>
    %177 = arith.mulf %176, %160 : vector<2x8xf32>
    %178 = vector.extract_strided_slice %175 {offsets = [0, 0], sizes = [2, 8], strides = [1, 1]} : vector<2x32xf32> to vector<2x8xf32>
    %179 = vector.extract_strided_slice %171 {offsets = [0, 16], sizes = [2, 8], strides = [1, 1]} : vector<2x32xf32> to vector<2x8xf32>
    %180 = arith.mulf %178, %179 : vector<2x8xf32>
    %181 = arith.addf %177, %180 : vector<2x8xf32>
    %182 = vector.extract_strided_slice %175 {offsets = [0, 24], sizes = [2, 8], strides = [1, 1]} : vector<2x32xf32> to vector<2x8xf32>
    %183 = math.tanh %181 : vector<2x8xf32>
    %184 = arith.mulf %182, %183 : vector<2x8xf32>
    %185 = vector.shape_cast %184 : vector<2x8xf32> to vector<2x8x1xf32>
    %186 = vector.broadcast %185 : vector<2x8x1xf32> to vector<2x8x32xf32>
    %187 = arith.mulf %186, %83 : vector<2x8x32xf32>
    %cst_113 = arith.constant dense<0.000000e+00> : vector<2x32xf32>
    %188 = vector.multi_reduction <add>, %187, %cst_113 [1] : vector<2x8x32xf32> to vector<2x32xf32>
    %c5 = arith.constant 5 : index
    %c0_114 = arith.constant 0 : index
    %c0_115 = arith.constant 0 : index
    %189 = vector.load %arg0[%c5, %c0_114, %c0_115] : memref<16x2x32xf32, #tpu.memory_space<vmem>>, vector<1x2x32xf32>
    %190 = vector.shape_cast %189 : vector<1x2x32xf32> to vector<2x32xf32>
    %191 = arith.addf %190, %188 : vector<2x32xf32>
    %192 = math.tanh %191 : vector<2x32xf32>
    %cst_116 = arith.constant 5.000000e-01 : f32
    %193 = vector.broadcast %cst_116 : f32 to vector<2x32xf32>
    %194 = arith.mulf %193, %192 : vector<2x32xf32>
    %cst_117 = arith.constant 5.000000e-01 : f32
    %195 = vector.broadcast %cst_117 : f32 to vector<2x32xf32>
    %196 = arith.addf %194, %195 : vector<2x32xf32>
    %197 = vector.extract_strided_slice %196 {offsets = [0, 8], sizes = [2, 8], strides = [1, 1]} : vector<2x32xf32> to vector<2x8xf32>
    %198 = arith.mulf %197, %181 : vector<2x8xf32>
    %199 = vector.extract_strided_slice %196 {offsets = [0, 0], sizes = [2, 8], strides = [1, 1]} : vector<2x32xf32> to vector<2x8xf32>
    %200 = vector.extract_strided_slice %192 {offsets = [0, 16], sizes = [2, 8], strides = [1, 1]} : vector<2x32xf32> to vector<2x8xf32>
    %201 = arith.mulf %199, %200 : vector<2x8xf32>
    %202 = arith.addf %198, %201 : vector<2x8xf32>
    %203 = vector.extract_strided_slice %196 {offsets = [0, 24], sizes = [2, 8], strides = [1, 1]} : vector<2x32xf32> to vector<2x8xf32>
    %204 = math.tanh %202 : vector<2x8xf32>
    %205 = arith.mulf %203, %204 : vector<2x8xf32>
    %206 = vector.shape_cast %205 : vector<2x8xf32> to vector<2x8x1xf32>
    %207 = vector.broadcast %206 : vector<2x8x1xf32> to vector<2x8x32xf32>
    %208 = arith.mulf %207, %83 : vector<2x8x32xf32>
    %cst_118 = arith.constant dense<0.000000e+00> : vector<2x32xf32>
    %209 = vector.multi_reduction <add>, %208, %cst_118 [1] : vector<2x8x32xf32> to vector<2x32xf32>
    %c6 = arith.constant 6 : index
    %c0_119 = arith.constant 0 : index
    %c0_120 = arith.constant 0 : index
    %210 = vector.load %arg0[%c6, %c0_119, %c0_120] : memref<16x2x32xf32, #tpu.memory_space<vmem>>, vector<1x2x32xf32>
    %211 = vector.shape_cast %210 : vector<1x2x32xf32> to vector<2x32xf32>
    %212 = arith.addf %211, %209 : vector<2x32xf32>
    %213 = math.tanh %212 : vector<2x32xf32>
    %cst_121 = arith.constant 5.000000e-01 : f32
    %214 = vector.broadcast %cst_121 : f32 to vector<2x32xf32>
    %215 = arith.mulf %214, %213 : vector<2x32xf32>
    %cst_122 = arith.constant 5.000000e-01 : f32
    %216 = vector.broadcast %cst_122 : f32 to vector<2x32xf32>
    %217 = arith.addf %215, %216 : vector<2x32xf32>
    %218 = vector.extract_strided_slice %217 {offsets = [0, 8], sizes = [2, 8], strides = [1, 1]} : vector<2x32xf32> to vector<2x8xf32>
    %219 = arith.mulf %218, %202 : vector<2x8xf32>
    %220 = vector.extract_strided_slice %217 {offsets = [0, 0], sizes = [2, 8], strides = [1, 1]} : vector<2x32xf32> to vector<2x8xf32>
    %221 = vector.extract_strided_slice %213 {offsets = [0, 16], sizes = [2, 8], strides = [1, 1]} : vector<2x32xf32> to vector<2x8xf32>
    %222 = arith.mulf %220, %221 : vector<2x8xf32>
    %223 = arith.addf %219, %222 : vector<2x8xf32>
    %224 = vector.extract_strided_slice %217 {offsets = [0, 24], sizes = [2, 8], strides = [1, 1]} : vector<2x32xf32> to vector<2x8xf32>
    %225 = math.tanh %223 : vector<2x8xf32>
    %226 = arith.mulf %224, %225 : vector<2x8xf32>
    %227 = vector.shape_cast %226 : vector<2x8xf32> to vector<2x8x1xf32>
    %228 = vector.broadcast %227 : vector<2x8x1xf32> to vector<2x8x32xf32>
    %229 = arith.mulf %228, %83 : vector<2x8x32xf32>
    %cst_123 = arith.constant dense<0.000000e+00> : vector<2x32xf32>
    %230 = vector.multi_reduction <add>, %229, %cst_123 [1] : vector<2x8x32xf32> to vector<2x32xf32>
    %c7 = arith.constant 7 : index
    %c0_124 = arith.constant 0 : index
    %c0_125 = arith.constant 0 : index
    %231 = vector.load %arg0[%c7, %c0_124, %c0_125] : memref<16x2x32xf32, #tpu.memory_space<vmem>>, vector<1x2x32xf32>
    %232 = vector.shape_cast %231 : vector<1x2x32xf32> to vector<2x32xf32>
    %233 = arith.addf %232, %230 : vector<2x32xf32>
    %234 = math.tanh %233 : vector<2x32xf32>
    %cst_126 = arith.constant 5.000000e-01 : f32
    %235 = vector.broadcast %cst_126 : f32 to vector<2x32xf32>
    %236 = arith.mulf %235, %234 : vector<2x32xf32>
    %cst_127 = arith.constant 5.000000e-01 : f32
    %237 = vector.broadcast %cst_127 : f32 to vector<2x32xf32>
    %238 = arith.addf %236, %237 : vector<2x32xf32>
    %239 = vector.extract_strided_slice %238 {offsets = [0, 8], sizes = [2, 8], strides = [1, 1]} : vector<2x32xf32> to vector<2x8xf32>
    %240 = arith.mulf %239, %223 : vector<2x8xf32>
    %241 = vector.extract_strided_slice %238 {offsets = [0, 0], sizes = [2, 8], strides = [1, 1]} : vector<2x32xf32> to vector<2x8xf32>
    %242 = vector.extract_strided_slice %234 {offsets = [0, 16], sizes = [2, 8], strides = [1, 1]} : vector<2x32xf32> to vector<2x8xf32>
    %243 = arith.mulf %241, %242 : vector<2x8xf32>
    %244 = arith.addf %240, %243 : vector<2x8xf32>
    %245 = vector.extract_strided_slice %238 {offsets = [0, 24], sizes = [2, 8], strides = [1, 1]} : vector<2x32xf32> to vector<2x8xf32>
    %246 = math.tanh %244 : vector<2x8xf32>
    %247 = arith.mulf %245, %246 : vector<2x8xf32>
    %248 = vector.shape_cast %247 : vector<2x8xf32> to vector<2x8x1xf32>
    %249 = vector.broadcast %248 : vector<2x8x1xf32> to vector<2x8x32xf32>
    %250 = arith.mulf %249, %83 : vector<2x8x32xf32>
    %cst_128 = arith.constant dense<0.000000e+00> : vector<2x32xf32>
    %251 = vector.multi_reduction <add>, %250, %cst_128 [1] : vector<2x8x32xf32> to vector<2x32xf32>
    %c8 = arith.constant 8 : index
    %c0_129 = arith.constant 0 : index
    %c0_130 = arith.constant 0 : index
    %252 = vector.load %arg0[%c8, %c0_129, %c0_130] : memref<16x2x32xf32, #tpu.memory_space<vmem>>, vector<1x2x32xf32>
    %253 = vector.shape_cast %252 : vector<1x2x32xf32> to vector<2x32xf32>
    %254 = arith.addf %253, %251 : vector<2x32xf32>
    %255 = math.tanh %254 : vector<2x32xf32>
    %cst_131 = arith.constant 5.000000e-01 : f32
    %256 = vector.broadcast %cst_131 : f32 to vector<2x32xf32>
    %257 = arith.mulf %256, %255 : vector<2x32xf32>
    %cst_132 = arith.constant 5.000000e-01 : f32
    %258 = vector.broadcast %cst_132 : f32 to vector<2x32xf32>
    %259 = arith.addf %257, %258 : vector<2x32xf32>
    %260 = vector.extract_strided_slice %259 {offsets = [0, 8], sizes = [2, 8], strides = [1, 1]} : vector<2x32xf32> to vector<2x8xf32>
    %261 = arith.mulf %260, %244 : vector<2x8xf32>
    %262 = vector.extract_strided_slice %259 {offsets = [0, 0], sizes = [2, 8], strides = [1, 1]} : vector<2x32xf32> to vector<2x8xf32>
    %263 = vector.extract_strided_slice %255 {offsets = [0, 16], sizes = [2, 8], strides = [1, 1]} : vector<2x32xf32> to vector<2x8xf32>
    %264 = arith.mulf %262, %263 : vector<2x8xf32>
    %265 = arith.addf %261, %264 : vector<2x8xf32>
    %266 = vector.extract_strided_slice %259 {offsets = [0, 24], sizes = [2, 8], strides = [1, 1]} : vector<2x32xf32> to vector<2x8xf32>
    %267 = math.tanh %265 : vector<2x8xf32>
    %268 = arith.mulf %266, %267 : vector<2x8xf32>
    %269 = vector.shape_cast %268 : vector<2x8xf32> to vector<2x8x1xf32>
    %270 = vector.broadcast %269 : vector<2x8x1xf32> to vector<2x8x32xf32>
    %271 = arith.mulf %270, %83 : vector<2x8x32xf32>
    %cst_133 = arith.constant dense<0.000000e+00> : vector<2x32xf32>
    %272 = vector.multi_reduction <add>, %271, %cst_133 [1] : vector<2x8x32xf32> to vector<2x32xf32>
    %c9 = arith.constant 9 : index
    %c0_134 = arith.constant 0 : index
    %c0_135 = arith.constant 0 : index
    %273 = vector.load %arg0[%c9, %c0_134, %c0_135] : memref<16x2x32xf32, #tpu.memory_space<vmem>>, vector<1x2x32xf32>
    %274 = vector.shape_cast %273 : vector<1x2x32xf32> to vector<2x32xf32>
    %275 = arith.addf %274, %272 : vector<2x32xf32>
    %276 = math.tanh %275 : vector<2x32xf32>
    %cst_136 = arith.constant 5.000000e-01 : f32
    %277 = vector.broadcast %cst_136 : f32 to vector<2x32xf32>
    %278 = arith.mulf %277, %276 : vector<2x32xf32>
    %cst_137 = arith.constant 5.000000e-01 : f32
    %279 = vector.broadcast %cst_137 : f32 to vector<2x32xf32>
    %280 = arith.addf %278, %279 : vector<2x32xf32>
    %281 = vector.extract_strided_slice %280 {offsets = [0, 8], sizes = [2, 8], strides = [1, 1]} : vector<2x32xf32> to vector<2x8xf32>
    %282 = arith.mulf %281, %265 : vector<2x8xf32>
    %283 = vector.extract_strided_slice %280 {offsets = [0, 0], sizes = [2, 8], strides = [1, 1]} : vector<2x32xf32> to vector<2x8xf32>
    %284 = vector.extract_strided_slice %276 {offsets = [0, 16], sizes = [2, 8], strides = [1, 1]} : vector<2x32xf32> to vector<2x8xf32>
    %285 = arith.mulf %283, %284 : vector<2x8xf32>
    %286 = arith.addf %282, %285 : vector<2x8xf32>
    %287 = vector.extract_strided_slice %280 {offsets = [0, 24], sizes = [2, 8], strides = [1, 1]} : vector<2x32xf32> to vector<2x8xf32>
    %288 = math.tanh %286 : vector<2x8xf32>
    %289 = arith.mulf %287, %288 : vector<2x8xf32>
    %290 = vector.shape_cast %289 : vector<2x8xf32> to vector<2x8x1xf32>
    %291 = vector.broadcast %290 : vector<2x8x1xf32> to vector<2x8x32xf32>
    %292 = arith.mulf %291, %83 : vector<2x8x32xf32>
    %cst_138 = arith.constant dense<0.000000e+00> : vector<2x32xf32>
    %293 = vector.multi_reduction <add>, %292, %cst_138 [1] : vector<2x8x32xf32> to vector<2x32xf32>
    %c10 = arith.constant 10 : index
    %c0_139 = arith.constant 0 : index
    %c0_140 = arith.constant 0 : index
    %294 = vector.load %arg0[%c10, %c0_139, %c0_140] : memref<16x2x32xf32, #tpu.memory_space<vmem>>, vector<1x2x32xf32>
    %295 = vector.shape_cast %294 : vector<1x2x32xf32> to vector<2x32xf32>
    %296 = arith.addf %295, %293 : vector<2x32xf32>
    %297 = math.tanh %296 : vector<2x32xf32>
    %cst_141 = arith.constant 5.000000e-01 : f32
    %298 = vector.broadcast %cst_141 : f32 to vector<2x32xf32>
    %299 = arith.mulf %298, %297 : vector<2x32xf32>
    %cst_142 = arith.constant 5.000000e-01 : f32
    %300 = vector.broadcast %cst_142 : f32 to vector<2x32xf32>
    %301 = arith.addf %299, %300 : vector<2x32xf32>
    %302 = vector.extract_strided_slice %301 {offsets = [0, 8], sizes = [2, 8], strides = [1, 1]} : vector<2x32xf32> to vector<2x8xf32>
    %303 = arith.mulf %302, %286 : vector<2x8xf32>
    %304 = vector.extract_strided_slice %301 {offsets = [0, 0], sizes = [2, 8], strides = [1, 1]} : vector<2x32xf32> to vector<2x8xf32>
    %305 = vector.extract_strided_slice %297 {offsets = [0, 16], sizes = [2, 8], strides = [1, 1]} : vector<2x32xf32> to vector<2x8xf32>
    %306 = arith.mulf %304, %305 : vector<2x8xf32>
    %307 = arith.addf %303, %306 : vector<2x8xf32>
    %308 = vector.extract_strided_slice %301 {offsets = [0, 24], sizes = [2, 8], strides = [1, 1]} : vector<2x32xf32> to vector<2x8xf32>
    %309 = math.tanh %307 : vector<2x8xf32>
    %310 = arith.mulf %308, %309 : vector<2x8xf32>
    %311 = vector.shape_cast %310 : vector<2x8xf32> to vector<2x8x1xf32>
    %312 = vector.broadcast %311 : vector<2x8x1xf32> to vector<2x8x32xf32>
    %313 = arith.mulf %312, %83 : vector<2x8x32xf32>
    %cst_143 = arith.constant dense<0.000000e+00> : vector<2x32xf32>
    %314 = vector.multi_reduction <add>, %313, %cst_143 [1] : vector<2x8x32xf32> to vector<2x32xf32>
    %c11 = arith.constant 11 : index
    %c0_144 = arith.constant 0 : index
    %c0_145 = arith.constant 0 : index
    %315 = vector.load %arg0[%c11, %c0_144, %c0_145] : memref<16x2x32xf32, #tpu.memory_space<vmem>>, vector<1x2x32xf32>
    %316 = vector.shape_cast %315 : vector<1x2x32xf32> to vector<2x32xf32>
    %317 = arith.addf %316, %314 : vector<2x32xf32>
    %318 = math.tanh %317 : vector<2x32xf32>
    %cst_146 = arith.constant 5.000000e-01 : f32
    %319 = vector.broadcast %cst_146 : f32 to vector<2x32xf32>
    %320 = arith.mulf %319, %318 : vector<2x32xf32>
    %cst_147 = arith.constant 5.000000e-01 : f32
    %321 = vector.broadcast %cst_147 : f32 to vector<2x32xf32>
    %322 = arith.addf %320, %321 : vector<2x32xf32>
    %323 = vector.extract_strided_slice %322 {offsets = [0, 8], sizes = [2, 8], strides = [1, 1]} : vector<2x32xf32> to vector<2x8xf32>
    %324 = arith.mulf %323, %307 : vector<2x8xf32>
    %325 = vector.extract_strided_slice %322 {offsets = [0, 0], sizes = [2, 8], strides = [1, 1]} : vector<2x32xf32> to vector<2x8xf32>
    %326 = vector.extract_strided_slice %318 {offsets = [0, 16], sizes = [2, 8], strides = [1, 1]} : vector<2x32xf32> to vector<2x8xf32>
    %327 = arith.mulf %325, %326 : vector<2x8xf32>
    %328 = arith.addf %324, %327 : vector<2x8xf32>
    %329 = vector.extract_strided_slice %322 {offsets = [0, 24], sizes = [2, 8], strides = [1, 1]} : vector<2x32xf32> to vector<2x8xf32>
    %330 = math.tanh %328 : vector<2x8xf32>
    %331 = arith.mulf %329, %330 : vector<2x8xf32>
    %332 = vector.shape_cast %331 : vector<2x8xf32> to vector<2x8x1xf32>
    %333 = vector.broadcast %332 : vector<2x8x1xf32> to vector<2x8x32xf32>
    %334 = arith.mulf %333, %83 : vector<2x8x32xf32>
    %cst_148 = arith.constant dense<0.000000e+00> : vector<2x32xf32>
    %335 = vector.multi_reduction <add>, %334, %cst_148 [1] : vector<2x8x32xf32> to vector<2x32xf32>
    %c12 = arith.constant 12 : index
    %c0_149 = arith.constant 0 : index
    %c0_150 = arith.constant 0 : index
    %336 = vector.load %arg0[%c12, %c0_149, %c0_150] : memref<16x2x32xf32, #tpu.memory_space<vmem>>, vector<1x2x32xf32>
    %337 = vector.shape_cast %336 : vector<1x2x32xf32> to vector<2x32xf32>
    %338 = arith.addf %337, %335 : vector<2x32xf32>
    %339 = math.tanh %338 : vector<2x32xf32>
    %cst_151 = arith.constant 5.000000e-01 : f32
    %340 = vector.broadcast %cst_151 : f32 to vector<2x32xf32>
    %341 = arith.mulf %340, %339 : vector<2x32xf32>
    %cst_152 = arith.constant 5.000000e-01 : f32
    %342 = vector.broadcast %cst_152 : f32 to vector<2x32xf32>
    %343 = arith.addf %341, %342 : vector<2x32xf32>
    %344 = vector.extract_strided_slice %343 {offsets = [0, 8], sizes = [2, 8], strides = [1, 1]} : vector<2x32xf32> to vector<2x8xf32>
    %345 = arith.mulf %344, %328 : vector<2x8xf32>
    %346 = vector.extract_strided_slice %343 {offsets = [0, 0], sizes = [2, 8], strides = [1, 1]} : vector<2x32xf32> to vector<2x8xf32>
    %347 = vector.extract_strided_slice %339 {offsets = [0, 16], sizes = [2, 8], strides = [1, 1]} : vector<2x32xf32> to vector<2x8xf32>
    %348 = arith.mulf %346, %347 : vector<2x8xf32>
    %349 = arith.addf %345, %348 : vector<2x8xf32>
    %350 = vector.extract_strided_slice %343 {offsets = [0, 24], sizes = [2, 8], strides = [1, 1]} : vector<2x32xf32> to vector<2x8xf32>
    %351 = math.tanh %349 : vector<2x8xf32>
    %352 = arith.mulf %350, %351 : vector<2x8xf32>
    %353 = vector.shape_cast %352 : vector<2x8xf32> to vector<2x8x1xf32>
    %354 = vector.broadcast %353 : vector<2x8x1xf32> to vector<2x8x32xf32>
    %355 = arith.mulf %354, %83 : vector<2x8x32xf32>
    %cst_153 = arith.constant dense<0.000000e+00> : vector<2x32xf32>
    %356 = vector.multi_reduction <add>, %355, %cst_153 [1] : vector<2x8x32xf32> to vector<2x32xf32>
    %c13 = arith.constant 13 : index
    %c0_154 = arith.constant 0 : index
    %c0_155 = arith.constant 0 : index
    %357 = vector.load %arg0[%c13, %c0_154, %c0_155] : memref<16x2x32xf32, #tpu.memory_space<vmem>>, vector<1x2x32xf32>
    %358 = vector.shape_cast %357 : vector<1x2x32xf32> to vector<2x32xf32>
    %359 = arith.addf %358, %356 : vector<2x32xf32>
    %360 = math.tanh %359 : vector<2x32xf32>
    %cst_156 = arith.constant 5.000000e-01 : f32
    %361 = vector.broadcast %cst_156 : f32 to vector<2x32xf32>
    %362 = arith.mulf %361, %360 : vector<2x32xf32>
    %cst_157 = arith.constant 5.000000e-01 : f32
    %363 = vector.broadcast %cst_157 : f32 to vector<2x32xf32>
    %364 = arith.addf %362, %363 : vector<2x32xf32>
    %365 = vector.extract_strided_slice %364 {offsets = [0, 8], sizes = [2, 8], strides = [1, 1]} : vector<2x32xf32> to vector<2x8xf32>
    %366 = arith.mulf %365, %349 : vector<2x8xf32>
    %367 = vector.extract_strided_slice %364 {offsets = [0, 0], sizes = [2, 8], strides = [1, 1]} : vector<2x32xf32> to vector<2x8xf32>
    %368 = vector.extract_strided_slice %360 {offsets = [0, 16], sizes = [2, 8], strides = [1, 1]} : vector<2x32xf32> to vector<2x8xf32>
    %369 = arith.mulf %367, %368 : vector<2x8xf32>
    %370 = arith.addf %366, %369 : vector<2x8xf32>
    %371 = vector.extract_strided_slice %364 {offsets = [0, 24], sizes = [2, 8], strides = [1, 1]} : vector<2x32xf32> to vector<2x8xf32>
    %372 = math.tanh %370 : vector<2x8xf32>
    %373 = arith.mulf %371, %372 : vector<2x8xf32>
    %374 = vector.shape_cast %373 : vector<2x8xf32> to vector<2x8x1xf32>
    %375 = vector.broadcast %374 : vector<2x8x1xf32> to vector<2x8x32xf32>
    %376 = arith.mulf %375, %83 : vector<2x8x32xf32>
    %cst_158 = arith.constant dense<0.000000e+00> : vector<2x32xf32>
    %377 = vector.multi_reduction <add>, %376, %cst_158 [1] : vector<2x8x32xf32> to vector<2x32xf32>
    %c14_159 = arith.constant 14 : index
    %c0_160 = arith.constant 0 : index
    %c0_161 = arith.constant 0 : index
    %378 = vector.load %arg0[%c14_159, %c0_160, %c0_161] : memref<16x2x32xf32, #tpu.memory_space<vmem>>, vector<1x2x32xf32>
    %379 = vector.shape_cast %378 : vector<1x2x32xf32> to vector<2x32xf32>
    %380 = arith.addf %379, %377 : vector<2x32xf32>
    %381 = math.tanh %380 : vector<2x32xf32>
    %cst_162 = arith.constant 5.000000e-01 : f32
    %382 = vector.broadcast %cst_162 : f32 to vector<2x32xf32>
    %383 = arith.mulf %382, %381 : vector<2x32xf32>
    %cst_163 = arith.constant 5.000000e-01 : f32
    %384 = vector.broadcast %cst_163 : f32 to vector<2x32xf32>
    %385 = arith.addf %383, %384 : vector<2x32xf32>
    %386 = vector.extract_strided_slice %385 {offsets = [0, 8], sizes = [2, 8], strides = [1, 1]} : vector<2x32xf32> to vector<2x8xf32>
    %387 = arith.mulf %386, %370 : vector<2x8xf32>
    %388 = vector.extract_strided_slice %385 {offsets = [0, 0], sizes = [2, 8], strides = [1, 1]} : vector<2x32xf32> to vector<2x8xf32>
    %389 = vector.extract_strided_slice %381 {offsets = [0, 16], sizes = [2, 8], strides = [1, 1]} : vector<2x32xf32> to vector<2x8xf32>
    %390 = arith.mulf %388, %389 : vector<2x8xf32>
    %391 = arith.addf %387, %390 : vector<2x8xf32>
    %392 = vector.extract_strided_slice %385 {offsets = [0, 24], sizes = [2, 8], strides = [1, 1]} : vector<2x32xf32> to vector<2x8xf32>
    %393 = math.tanh %391 : vector<2x8xf32>
    %394 = arith.mulf %392, %393 : vector<2x8xf32>
    %395 = vector.shape_cast %394 : vector<2x8xf32> to vector<2x8x1xf32>
    %396 = vector.broadcast %395 : vector<2x8x1xf32> to vector<2x8x32xf32>
    %397 = arith.mulf %396, %83 : vector<2x8x32xf32>
    %cst_164 = arith.constant dense<0.000000e+00> : vector<2x32xf32>
    %398 = vector.multi_reduction <add>, %397, %cst_164 [1] : vector<2x8x32xf32> to vector<2x32xf32>
    %c15_165 = arith.constant 15 : index
    %c0_166 = arith.constant 0 : index
    %c0_167 = arith.constant 0 : index
    %399 = vector.load %arg0[%c15_165, %c0_166, %c0_167] : memref<16x2x32xf32, #tpu.memory_space<vmem>>, vector<1x2x32xf32>
    %400 = vector.shape_cast %399 : vector<1x2x32xf32> to vector<2x32xf32>
    %401 = arith.addf %400, %398 : vector<2x32xf32>
    %402 = math.tanh %401 : vector<2x32xf32>
    %cst_168 = arith.constant 5.000000e-01 : f32
    %403 = vector.broadcast %cst_168 : f32 to vector<2x32xf32>
    %404 = arith.mulf %403, %402 : vector<2x32xf32>
    %cst_169 = arith.constant 5.000000e-01 : f32
    %405 = vector.broadcast %cst_169 : f32 to vector<2x32xf32>
    %406 = arith.addf %404, %405 : vector<2x32xf32>
    %407 = vector.extract_strided_slice %406 {offsets = [0, 8], sizes = [2, 8], strides = [1, 1]} : vector<2x32xf32> to vector<2x8xf32>
    %408 = arith.mulf %407, %391 : vector<2x8xf32>
    %409 = vector.extract_strided_slice %406 {offsets = [0, 0], sizes = [2, 8], strides = [1, 1]} : vector<2x32xf32> to vector<2x8xf32>
    %410 = vector.extract_strided_slice %402 {offsets = [0, 16], sizes = [2, 8], strides = [1, 1]} : vector<2x32xf32> to vector<2x8xf32>
    %411 = arith.mulf %409, %410 : vector<2x8xf32>
    %412 = arith.addf %408, %411 : vector<2x8xf32>
    %413 = vector.extract_strided_slice %406 {offsets = [0, 24], sizes = [2, 8], strides = [1, 1]} : vector<2x32xf32> to vector<2x8xf32>
    %414 = math.tanh %412 : vector<2x8xf32>
    %415 = arith.mulf %413, %414 : vector<2x8xf32>
    %c0_170 = arith.constant 0 : index
    %c0_171 = arith.constant 0 : index
    %416 = vector.load %arg9[%c0_170, %c0_171] : memref<8x3xf32, #tpu.memory_space<vmem>>, vector<8x3xf32>
    %cst_172 = arith.constant dense<0.000000e+00> : vector<2x3xf32>
    %417 = tpu.matmul %415, %416, %cst_172 {dimension_numbers = #tpu.dot_dimension_numbers<[1], [0], [0], [1], [0, 0, 1, 1], [], []>} : vector<2x8xf32>, vector<8x3xf32>, vector<2x3xf32> -> vector<2x3xf32>
    %c0_173 = arith.constant 0 : index
    %c0_174 = arith.constant 0 : index
    %418 = vector.load %arg10[%c0_173, %c0_174] : memref<128x3xf32, #tpu.memory_space<vmem>>, vector<128x3xf32>
    %cst_175 = arith.constant dense<0.000000e+00> : vector<2x3xf32>
    %419 = tpu.matmul %79, %418, %cst_175 {dimension_numbers = #tpu.dot_dimension_numbers<[1], [0], [0], [1], [0, 0, 1, 1], [], []>} : vector<2x128xf32>, vector<128x3xf32>, vector<2x3xf32> -> vector<2x3xf32>
    %420 = arith.addf %417, %419 : vector<2x3xf32>
    %c0_176 = arith.constant 0 : index
    %c0_177 = arith.constant 0 : index
    %421 = vector.load %arg11[%c0_176, %c0_177] : memref<1x3xf32, #tpu.memory_space<vmem>>, vector<1x3xf32>
    %422 = vector.broadcast %421 : vector<1x3xf32> to vector<2x3xf32>
    %423 = arith.addf %420, %422 : vector<2x3xf32>
    %c0_178 = arith.constant 0 : index
    %c0_179 = arith.constant 0 : index
    %424 = vector.load %arg12[%c0_178, %c0_179] : memref<2x3xf32, #tpu.memory_space<vmem>>, vector<2x3xf32>
    tpu.vector_store %arg12[%c0_178, %c0_179], %423 {strides = array<i32>} : memref<2x3xf32, #tpu.memory_space<vmem>>, vector<2x3xf32>,
    return
  }
}

</mosaic_0001>

<llo_original>
// kernel: tpu_custom_call.1
$region0: #{tpu_custom_call.1}
  #allocation0 [shape = 'u32[]', space=smem, size = 0x4, offset = 0x4, fixed_abs, tag = 'smem constant byte address 0x4 - core index']
  #allocation1 [shape = 'u32[144,128]{1,0:T(1,128)}', space=vmem, size = 0x12000, scoped, tag = 'internal scratch']
  #allocation2 [shape = 'bf16[2,48,128]{2,1,0:T(16,128)(2,1)}', space=vmem, size = 0x6000, scoped, tag = 'scratch operand']
  #allocation3 [shape = 'bf16[2,48,256]{2,1,0:T(16,128)(2,1)}', space=vmem, size = 0xc000, scoped, tag = 'scratch operand']
  %s0 = inlined_call_operand.vmem [shape: f32[16,2,32], index: 0, kind: input, shape index: {}]
  %s1 = inlined_call_operand.vmem [shape: f32[8,32], index: 1, kind: input, shape index: {}]
  %s2 = inlined_call_operand.vmem [shape: bf16[32,8], index: 2, kind: input, shape index: {}]
  %s3 = inlined_call_operand.vmem [shape: bf16[8,128], index: 3, kind: input, shape index: {}]
  %s4 = inlined_call_operand.vmem [shape: f32[1,128], index: 4, kind: input, shape index: {}]
  %s5 = inlined_call_operand.hbm [shape: bf16[5,128,256], index: 5, kind: input, shape index: {}]
  %s6 = inlined_call_operand.vmem [shape: f32[1,256], index: 6, kind: input, shape index: {}]
  %s7 = inlined_call_operand.hbm [shape: bf16[3,256,128], index: 7, kind: input, shape index: {}]
  %s8 = inlined_call_operand.vmem [shape: f32[1,128], index: 8, kind: input, shape index: {}]
  %s9 = inlined_call_operand.vmem [shape: f32[8,3], index: 9, kind: input, shape index: {}]
  %s10 = inlined_call_operand.vmem [shape: f32[128,3], index: 10, kind: input, shape index: {}]
  %s11 = inlined_call_operand.vmem [shape: f32[1,3], index: 11, kind: input, shape index: {}]
  %s12 = inlined_call_operand.hbm [shape: f32[2,3], index: 12, kind: output, shape index: {}]
  %s13 = sld [smem:[#allocation0]]
  $region66: #{tpu_custom_call.1} parent=0
    _
  %s15 = ssub.s32 1, %s13
  %s16 = scalar_select 0, %s15, %s13
  $region1: #{tpu_custom_call.1} parent=0
    #allocation4 [shape = 'u8[327680]{0}', space=vmem, size = 0x50000, scoped, tag = 'input window, operand 5, single buffered']
    #allocation5 [shape = 's32[1]{0}', space=sflag, size = 0x4, scoped, tag = 'scoped memory for tpu_custom_call.1']
    #allocation6 [shape = 's32[1]{0}', space=sflag, size = 0x4, scoped, tag = 'scoped memory for tpu_custom_call.1']
    #allocation7 [shape = 'u8[196608]{0}', space=vmem, size = 0x30000, scoped, tag = 'input window, operand 7, single buffered']
    #allocation8 [shape = 's32[1]{0}', space=sflag, size = 0x4, scoped, tag = 'scoped memory for tpu_custom_call.1']
    #allocation9 [shape = 'u8[1024]{0}', space=vmem, size = 0x400, scoped, tag = 'output window, operand 0, single buffered']
    %17 = vsyncpa [#allocation5], 0
    %18 = vsyncpa [#allocation8], 0
    %19 = vsyncpa [#allocation6], 0
    // Predicated region
    $region2: #{tpu_custom_call.1} parent=1 // pred_check
      _
    $region3: #{tpu_custom_call.1} parent=1 // pred_check_branch
      %21 = sbr.rel (0) target = $region5
    $region4: #{tpu_custom_call.1} parent=1 // pred_region
      _
    $region5: #{tpu_custom_call.1} parent=1 // pred_fallthru
      _
    // Predicated region
    $region6: #{tpu_custom_call.1} parent=1 // pred_check
      _
    $region7: #{tpu_custom_call.1} parent=1 // pred_check_branch
      %23 = sbr.rel (0) target = $region9
    $region8: #{tpu_custom_call.1} parent=1 // pred_region
      _
    $region9: #{tpu_custom_call.1} parent=1 // pred_fallthru
      _
    // Predicated region
    $region10: #{tpu_custom_call.1} parent=1 // pred_check
      _
    $region11: #{tpu_custom_call.1} parent=1 // pred_check_branch
      %25 = sbr.rel (0) target = $region13
    $region12: #{tpu_custom_call.1} parent=1 // pred_region
      _
    $region13: #{tpu_custom_call.1} parent=1 // pred_fallthru
      _
    // Predicated region
    $region14: #{tpu_custom_call.1} parent=1 // pred_check
      _
    $region15: #{tpu_custom_call.1} parent=1 // pred_check_branch
      %27 = sbr.rel (0) target = $region17
    $region16: #{tpu_custom_call.1} parent=1 // pred_region
      _
    $region17: #{tpu_custom_call.1} parent=1 // pred_fallthru
      _
    // Predicated region
    $region18: #{tpu_custom_call.1} parent=1 // pred_check
      _
    $region19: #{tpu_custom_call.1} parent=1 // pred_check_branch
      %29 = sbr.rel (0) target = $region21
    $region20: #{tpu_custom_call.1} parent=1 // pred_region
      _
    $region21: #{tpu_custom_call.1} parent=1 // pred_fallthru
      _
    // Predicated region
    $region22: #{tpu_custom_call.1} parent=1 // pred_check
      _
    $region23: #{tpu_custom_call.1} parent=1 // pred_check_branch
      %31 = sbr.rel (0) target = $region25
    $region24: #{tpu_custom_call.1} parent=1 // pred_region
      %s33 = ssub.s32 10240, 10240
      %34 = vsyncadd [#allocation5], %s33
      %s35 = sshll.u32 [#allocation4], 4
      %s36 = int_to_ptr.vmem [resolvable:$true] %s35
      %41 = dma.hbm_to_vmem [thread:$0]  %s5, 10240, %s36, [#allocation5], 128, 128, 8
    $region25: #{tpu_custom_call.1} parent=1 // pred_fallthru
      _
    // Predicated region
    $region26: #{tpu_custom_call.1} parent=1 // pred_check
      _
    $region27: #{tpu_custom_call.1} parent=1 // pred_check_branch
      %43 = sbr.rel (0) target = $region29
    $region28: #{tpu_custom_call.1} parent=1 // pred_region
      _
    $region29: #{tpu_custom_call.1} parent=1 // pred_fallthru
      _
    // Predicated region
    $region30: #{tpu_custom_call.1} parent=1 // pred_check
      _
    $region31: #{tpu_custom_call.1} parent=1 // pred_check_branch
      %45 = sbr.rel (0) target = $region33
    $region32: #{tpu_custom_call.1} parent=1 // pred_region
      %s47 = ssub.s32 6144, 6144
      %48 = vsyncadd [#allocation8], %s47
      %s49 = sshll.u32 [#allocation7], 4
      %s50 = int_to_ptr.vmem [resolvable:$true] %s49
      %55 = dma.hbm_to_vmem [thread:$0]  %s7, 6144, %s50, [#allocation8], 64, 64, 4
    $region33: #{tpu_custom_call.1} parent=1 // pred_fallthru
      _
    // Predicated region
    $region34: #{tpu_custom_call.1} parent=1 // pred_check
      _
    $region35: #{tpu_custom_call.1} parent=1 // pred_check_branch
      %57 = sbr.rel (0) target = $region37
    $region36: #{tpu_custom_call.1} parent=1 // pred_region
      _
    $region37: #{tpu_custom_call.1} parent=1 // pred_fallthru
      _
    // Predicated region
    $region38: #{tpu_custom_call.1} parent=1 // pred_check
      _
    $region39: #{tpu_custom_call.1} parent=1 // pred_check_branch
      %59 = sbr.rel (0) target = $region41
    $region40: #{tpu_custom_call.1} parent=1 // pred_region
      _
    $region41: #{tpu_custom_call.1} parent=1 // pred_fallthru
      _
    // Predicated region
    $region42: #{tpu_custom_call.1} parent=1 // pred_check
      _
    $region43: #{tpu_custom_call.1} parent=1 // pred_check_branch
      %61 = sbr.rel (0) target = $region45
    $region44: #{tpu_custom_call.1} parent=1 // pred_region
      _
    $region45: #{tpu_custom_call.1} parent=1 // pred_fallthru
      _
    // Predicated region
    $region46: #{tpu_custom_call.1} parent=1 // pred_check
      _
    $region47: #{tpu_custom_call.1} parent=1 // pred_check_branch
      %63 = sbr.rel (0) target = $region49
    $region48: #{tpu_custom_call.1} parent=1 // pred_region
      _
    $region49: #{tpu_custom_call.1} parent=1 // pred_fallthru
      _
    // Predicated region
    $region50: #{tpu_custom_call.1} parent=1 // pred_check
      _
    $region51: #{tpu_custom_call.1} parent=1 // pred_check_branch
      %65 = sbr.rel (0) target = $region53
    $region52: #{tpu_custom_call.1} parent=1 // pred_region
      %66 = dma.done [#allocation5], 10240
    $region53: #{tpu_custom_call.1} parent=1 // pred_fallthru
      _
    // Predicated region
    $region54: #{tpu_custom_call.1} parent=1 // pred_check
      _
    $region55: #{tpu_custom_call.1} parent=1 // pred_check_branch
      %68 = sbr.rel (0) target = $region57
    $region56: #{tpu_custom_call.1} parent=1 // pred_region
      %69 = dma.done [#allocation8], 6144
    $region57: #{tpu_custom_call.1} parent=1 // pred_fallthru
      _
    %v71 = vld [vmem:[%s2] sm:$0xf]
    %v72 = vld [vmem:[%s2 + $0x4] sm:$0xf]
    %v73 = vld [vmem:[%s2 + $0x8] sm:$0xf]
    %v74 = vld [vmem:[%s2 + $0xc] sm:$0xf]
    %v75 = vld [vmem:[%s3] sm:$0xf]
    %v76 = vld [vmem:[%s4] sm:$0x1]
    %v78 = vlaneseq
    %v79 = vshrl.u32 %v78, 7
    %v80 = vsub.s32 0, %v79
    %v81 = vrot.slane %v76, %v80
    %v87 = vunpack.c.l.b16 %v71
    %v88 = vunpack.c.l.b16 %v72
    %v89 = vunpack.c.l.b16 %v73
    %v90 = vunpack.c.l.b16 %v74
    %v91 = vpack.c.b16 %v88, %v87
    %v92 = vpack.c.b16 %v90, %v89
    %vm93 = vcmask 64512
    %v95 = vsel %vm93, %v91, 0
    %v98 = vsel %vm93, %v92, 0
    %vm100 = vcmask 1043456
    %v102 = vsel %vm100, %v75, 0
    %104 = vmatprep.subr.bf16.mxu0 0
    %105 = vmatpush1.bf16.msra.mxu0 %v102
    %106 = vmatprep.subr.bf16.mxu0 0
    %107 = vmatpush1.bf16.msra.mxu0 0
    %108 = vmatprep.subr.bf16.mxu0 0
    %109 = vmatpush1.bf16.msra.mxu0 0
    %110 = vmatprep.subr.bf16.mxu0 0
    %111 = vmatpush1.bf16.msra.mxu0 0
    %112 = vmatprep.subr.bf16.mxu0 0
    %113 = vmatpush1.bf16.msra.mxu0 0
    %114 = vmatprep.subr.bf16.mxu0 0
    %115 = vmatpush1.bf16.msra.mxu0 0
    %116 = vmatprep.subr.bf16.mxu0 0
    %117 = vmatpush1.bf16.msra.mxu0 0
    %118 = vmatprep.subr.bf16.mxu0 0
    %119 = vmatpush1.bf16.msra.mxu0 0
    %120 = vmatprep.subr.bf16.mxu0 0
    %121 = vmatpush1.bf16.msra.mxu0 0
    %122 = vmatprep.subr.bf16.mxu0 0
    %123 = vmatpush1.bf16.msra.mxu0 0
    %124 = vmatprep.subr.bf16.mxu0 0
    %125 = vmatpush1.bf16.msra.mxu0 0
    %126 = vmatprep.subr.bf16.mxu0 0
    %127 = vmatpush1.bf16.msra.mxu0 0
    %128 = vmatprep.subr.bf16.mxu0 0
    %129 = vmatpush1.bf16.msra.mxu0 0
    %130 = vmatprep.subr.bf16.mxu0 0
    %131 = vmatpush1.bf16.msra.mxu0 0
    %132 = vmatprep.subr.bf16.mxu0 0
    %133 = vmatpush1.bf16.msra.mxu0 0
    %134 = vmatprep.subr.bf16.mxu0 0
    %135 = vmatpush1.bf16.msra.mxu0 0
    %136 = vmatprep.mubr.bf16.mxu0 0
    %137 = vmatmul.mubr.bf16.gmra.mrb[0].mxu0 %v95
    %v138 = vpop.f32.mrb[0].mxu0
    %v139 = vadd.f32 %v81, %v138
    %v140 = vpop.f32.mrb[0].mxu0
    %v141 = vpop.f32.mrb[0].mxu0
    %v142 = vadd.f32 %v81, %v141
    %v143 = vpop.f32.mrb[0].mxu0
    %144 = vmatprep.mubr.bf16.mxu0 0
    %145 = vmatmul.mubr.bf16.gmra.mrb[0].mxu0 %v98
    %v146 = vpop.f32.mrb[0].mxu0
    %v147 = vadd.f32 %v81, %v146
    %v148 = vpop.f32.mrb[0].mxu0
    %v149 = vpop.f32.mrb[0].mxu0
    %v150 = vadd.f32 %v81, %v149
    %v151 = vpop.f32.mrb[0].mxu0
    %152 = vdwg.mxu0
    %v153 = vmax.f32 %v139, 0.0
    %v154 = vmax.f32 %v142, 0.0
    %v155 = vmax.f32 %v147, 0.0
    %v156 = vmax.f32 %v150, 0.0
    %157 = vst [vmem:[#allocation2] sm:$0xff] 0
    %158 = vst [vmem:[#allocation2 + $0x18] sm:$0xff] 0
    %159 = vst [vmem:[#allocation2 + $0x10] sm:$0xff] 0
    %160 = vst [vmem:[#allocation2 + $0x28] sm:$0xff] 0
    %v161 = vpack.c.bf16 %v154, %v153
    %v162 = vpack.c.bf16 %v156, %v155
    %163 = vst [vmem:[#allocation2 + $0x8] sm:$0xff] %v161
    %164 = vst [vmem:[#allocation2 + $0x20] sm:$0xff] %v162
    %v165 = vld [vmem:[#allocation2] sm:$0x80]
    %v166 = vld [vmem:[#allocation2 + $0x8] sm:$0x7f]
    %v167 = vld [vmem:[#allocation2 + $0x18] sm:$0x80]
    %v168 = vld [vmem:[#allocation2 + $0x20] sm:$0x7f]
    %vm173 = vcmask 1040384
    %v174 = vrot.slane %v165, 7
    %v175 = vrot.slane %v166, 7
    %v176 = vsel %vm173, %v174, %v175
    %v177 = vrot.slane %v167, 7
    %v178 = vrot.slane %v168, 7
    %v179 = vsel %vm173, %v177, %v178
    %v182 = vld [vmem:[#allocation4] sm:$0xff]
    %v183 = vld [vmem:[#allocation4 + $0x8] sm:$0xff]
    %v184 = vld [vmem:[#allocation4 + $0x10] sm:$0xff]
    %v185 = vld [vmem:[#allocation4 + $0x18] sm:$0xff]
    %v186 = vld [vmem:[#allocation4 + $0x20] sm:$0xff]
    %v187 = vld [vmem:[#allocation4 + $0x28] sm:$0xff]
    %v188 = vld [vmem:[#allocation4 + $0x30] sm:$0xff]
    %v189 = vld [vmem:[#allocation4 + $0x38] sm:$0xff]
    %v190 = vld [vmem:[#allocation4 + $0x40] sm:$0xff]
    %v191 = vld [vmem:[#allocation4 + $0x48] sm:$0xff]
    %v192 = vld [vmem:[#allocation4 + $0x50] sm:$0xff]
    %v193 = vld [vmem:[#allocation4 + $0x58] sm:$0xff]
    %v194 = vld [vmem:[#allocation4 + $0x60] sm:$0xff]
    %v195 = vld [vmem:[#allocation4 + $0x68] sm:$0xff]
    %v196 = vld [vmem:[#allocation4 + $0x70] sm:$0xff]
    %v197 = vld [vmem:[#allocation4 + $0x78] sm:$0xff]
    %v198 = vld [vmem:[#allocation2 + $0x8] sm:$0xff]
    %v199 = vld [vmem:[#allocation2 + $0x20] sm:$0xff]
    %vm200 = vsmask.f32 256
    %v202 = vshrl.u32 %v165, 16
    %v204 = vrot.slane %v202, 7
    %v206 = vshrl.u32 %v198, 16
    %v208 = vrot.slane %v206, 7
    %v209 = vshll.u32 %v198, 16
    %v211 = vor.u32 %v208, %v209
    %v212 = vsel %vm200, %v204, %v211
    %v214 = vshrl.u32 %v167, 16
    %v216 = vrot.slane %v214, 7
    %v218 = vshrl.u32 %v199, 16
    %v220 = vrot.slane %v218, 7
    %v221 = vshll.u32 %v199, 16
    %v223 = vor.u32 %v220, %v221
    %v224 = vsel %vm200, %v216, %v223
    %s227 = scalar_lea.vmem [#allocation4], 128
    %v228 = vld [vmem:[%s227] sm:$0xff]
    %v229 = vld [vmem:[%s227 + $0x8] sm:$0xff]
    %v230 = vld [vmem:[%s227 + $0x10] sm:$0xff]
    %v231 = vld [vmem:[%s227 + $0x18] sm:$0xff]
    %v232 = vld [vmem:[%s227 + $0x20] sm:$0xff]
    %v233 = vld [vmem:[%s227 + $0x28] sm:$0xff]
    %v234 = vld [vmem:[%s227 + $0x30] sm:$0xff]
    %v235 = vld [vmem:[%s227 + $0x38] sm:$0xff]
    %v236 = vld [vmem:[%s227 + $0x40] sm:$0xff]
    %v237 = vld [vmem:[%s227 + $0x48] sm:$0xff]
    %v238 = vld [vmem:[%s227 + $0x50] sm:$0xff]
    %v239 = vld [vmem:[%s227 + $0x58] sm:$0xff]
    %v240 = vld [vmem:[%s227 + $0x60] sm:$0xff]
    %v241 = vld [vmem:[%s227 + $0x68] sm:$0xff]
    %v242 = vld [vmem:[%s227 + $0x70] sm:$0xff]
    %v243 = vld [vmem:[%s227 + $0x78] sm:$0xff]
    %v260 = vunpack.c.l.b16 %v228
    %v261 = vunpack.c.h.b16 %v228
    %v262 = vunpack.c.l.b16 %v229
    %v263 = vunpack.c.h.b16 %v229
    %v264 = vunpack.c.l.b16 %v230
    %v265 = vunpack.c.h.b16 %v230
    %v266 = vunpack.c.l.b16 %v231
    %v267 = vunpack.c.h.b16 %v231
    %v268 = vunpack.c.l.b16 %v232
    %v269 = vunpack.c.h.b16 %v232
    %v270 = vunpack.c.l.b16 %v233
    %v271 = vunpack.c.h.b16 %v233
    %v272 = vunpack.c.l.b16 %v234
    %v273 = vunpack.c.h.b16 %v234
    %v274 = vunpack.c.l.b16 %v235
    %v275 = vunpack.c.h.b16 %v235
    %v276 = vunpack.c.l.b16 %v236
    %v277 = vunpack.c.h.b16 %v236
    %v278 = vunpack.c.l.b16 %v237
    %v279 = vunpack.c.h.b16 %v237
    %v280 = vunpack.c.l.b16 %v238
    %v281 = vunpack.c.h.b16 %v238
    %v282 = vunpack.c.l.b16 %v239
    %v283 = vunpack.c.h.b16 %v239
    %v284 = vunpack.c.l.b16 %v240
    %v285 = vunpack.c.h.b16 %v240
    %v286 = vunpack.c.l.b16 %v241
    %v287 = vunpack.c.h.b16 %v241
    %v288 = vunpack.c.l.b16 %v242
    %v289 = vunpack.c.h.b16 %v242
    %v290 = vunpack.c.l.b16 %v243
    %v291 = vunpack.c.h.b16 %v243
    %v292 = vpack.c.b16 %v262, %v260
    %v293 = vpack.c.b16 %v263, %v261
    %v294 = vpack.c.b16 %v266, %v264
    %v295 = vpack.c.b16 %v267, %v265
    %v296 = vpack.c.b16 %v270, %v268
    %v297 = vpack.c.b16 %v271, %v269
    %v298 = vpack.c.b16 %v274, %v272
    %v299 = vpack.c.b16 %v275, %v273
    %v300 = vpack.c.b16 %v278, %v276
    %v301 = vpack.c.b16 %v279, %v277
    %v302 = vpack.c.b16 %v282, %v280
    %v303 = vpack.c.b16 %v283, %v281
    %v304 = vpack.c.b16 %v286, %v284
    %v305 = vpack.c.b16 %v287, %v285
    %v306 = vpack.c.b16 %v290, %v288
    %v307 = vpack.c.b16 %v291, %v289
    %324 = vmatprep.subr.bf16.mxu0 %v293
    %325 = vmatpush1.bf16.msra.mxu0 %v292
    %326 = vmatprep.subr.bf16.mxu0 %v295
    %327 = vmatpush1.bf16.msra.mxu0 %v294
    %328 = vmatprep.subr.bf16.mxu0 %v297
    %329 = vmatpush1.bf16.msra.mxu0 %v296
    %330 = vmatprep.subr.bf16.mxu0 %v299
    %331 = vmatpush1.bf16.msra.mxu0 %v298
    %332 = vmatprep.subr.bf16.mxu0 %v301
    %333 = vmatpush1.bf16.msra.mxu0 %v300
    %334 = vmatprep.subr.bf16.mxu0 %v303
    %335 = vmatpush1.bf16.msra.mxu0 %v302
    %336 = vmatprep.subr.bf16.mxu0 %v305
    %337 = vmatpush1.bf16.msra.mxu0 %v304
    %338 = vmatprep.subr.bf16.mxu0 %v307
    %339 = vmatpush1.bf16.msra.mxu0 %v306
    %340 = vmatprep.subr.bf16.mxu0 0
    %341 = vmatpush1.bf16.msra.mxu0 0
    %342 = vmatprep.subr.bf16.mxu0 0
    %343 = vmatpush1.bf16.msra.mxu0 0
    %344 = vmatprep.subr.bf16.mxu0 0
    %345 = vmatpush1.bf16.msra.mxu0 0
    %346 = vmatprep.subr.bf16.mxu0 0
    %347 = vmatpush1.bf16.msra.mxu0 0
    %348 = vmatprep.subr.bf16.mxu0 0
    %349 = vmatpush1.bf16.msra.mxu0 0
    %350 = vmatprep.subr.bf16.mxu0 0
    %351 = vmatpush1.bf16.msra.mxu0 0
    %352 = vmatprep.subr.bf16.mxu0 0
    %353 = vmatpush1.bf16.msra.mxu0 0
    %354 = vmatprep.subr.bf16.mxu0 0
    %355 = vmatpush1.bf16.msra.mxu0 0
    %356 = vmatprep.mubr.bf16.mxu0 0
    %357 = vmatmul.mubr.bf16.gmra.mrb[0].mxu0 %v212
    %v358 = vpop.f32.mrb[0].mxu0
    %v359 = vadd.f32 0.0, %v358
    %v360 = vpop.f32.mrb[0].mxu0
    %v361 = vadd.f32 0.0, %v360
    %v362 = vpop.f32.mrb[0].mxu0
    %v363 = vadd.f32 0.0, %v362
    %v364 = vpop.f32.mrb[0].mxu0
    %v365 = vadd.f32 0.0, %v364
    %366 = vmatprep.mubr.bf16.mxu0 0
    %367 = vmatmul.mubr.bf16.gmra.mrb[0].mxu0 %v224
    %v368 = vpop.f32.mrb[0].mxu0
    %v369 = vadd.f32 0.0, %v368
    %v370 = vpop.f32.mrb[0].mxu0
    %v371 = vadd.f32 0.0, %v370
    %v372 = vpop.f32.mrb[0].mxu0
    %v373 = vadd.f32 0.0, %v372
    %v374 = vpop.f32.mrb[0].mxu0
    %v375 = vadd.f32 0.0, %v374
    %376 = vdwg.mxu0
    %v393 = vunpack.c.l.b16 %v182
    %v394 = vunpack.c.h.b16 %v182
    %v395 = vunpack.c.l.b16 %v183
    %v396 = vunpack.c.h.b16 %v183
    %v397 = vunpack.c.l.b16 %v184
    %v398 = vunpack.c.h.b16 %v184
    %v399 = vunpack.c.l.b16 %v185
    %v400 = vunpack.c.h.b16 %v185
    %v401 = vunpack.c.l.b16 %v186
    %v402 = vunpack.c.h.b16 %v186
    %v403 = vunpack.c.l.b16 %v187
    %v404 = vunpack.c.h.b16 %v187
    %v405 = vunpack.c.l.b16 %v188
    %v406 = vunpack.c.h.b16 %v188
    %v407 = vunpack.c.l.b16 %v189
    %v408 = vunpack.c.h.b16 %v189
    %v409 = vunpack.c.l.b16 %v190
    %v410 = vunpack.c.h.b16 %v190
    %v411 = vunpack.c.l.b16 %v191
    %v412 = vunpack.c.h.b16 %v191
    %v413 = vunpack.c.l.b16 %v192
    %v414 = vunpack.c.h.b16 %v192
    %v415 = vunpack.c.l.b16 %v193
    %v416 = vunpack.c.h.b16 %v193
    %v417 = vunpack.c.l.b16 %v194
    %v418 = vunpack.c.h.b16 %v194
    %v419 = vunpack.c.l.b16 %v195
    %v420 = vunpack.c.h.b16 %v195
    %v421 = vunpack.c.l.b16 %v196
    %v422 = vunpack.c.h.b16 %v196
    %v423 = vunpack.c.l.b16 %v197
    %v424 = vunpack.c.h.b16 %v197
    %v425 = vpack.c.b16 %v395, %v393
    %v426 = vpack.c.b16 %v396, %v394
    %v427 = vpack.c.b16 %v399, %v397
    %v428 = vpack.c.b16 %v400, %v398
    %v429 = vpack.c.b16 %v403, %v401
    %v430 = vpack.c.b16 %v404, %v402
    %v431 = vpack.c.b16 %v407, %v405
    %v432 = vpack.c.b16 %v408, %v406
    %v433 = vpack.c.b16 %v411, %v409
    %v434 = vpack.c.b16 %v412, %v410
    %v435 = vpack.c.b16 %v415, %v413
    %v436 = vpack.c.b16 %v416, %v414
    %v437 = vpack.c.b16 %v419, %v417
    %v438 = vpack.c.b16 %v420, %v418
    %v439 = vpack.c.b16 %v423, %v421
    %v440 = vpack.c.b16 %v424, %v422
    %457 = vmatprep.subr.bf16.mxu0 %v426
    %458 = vmatpush1.bf16.msra.mxu0 %v425
    %459 = vmatprep.subr.bf16.mxu0 %v428
    %460 = vmatpush1.bf16.msra.mxu0 %v427
    %461 = vmatprep.subr.bf16.mxu0 %v430
    %462 = vmatpush1.bf16.msra.mxu0 %v429
    %463 = vmatprep.subr.bf16.mxu0 %v432
    %464 = vmatpush1.bf16.msra.mxu0 %v431
    %465 = vmatprep.subr.bf16.mxu0 %v434
    %466 = vmatpush1.bf16.msra.mxu0 %v433
    %467 = vmatprep.subr.bf16.mxu0 %v436
    %468 = vmatpush1.bf16.msra.mxu0 %v435
    %469 = vmatprep.subr.bf16.mxu0 %v438
    %470 = vmatpush1.bf16.msra.mxu0 %v437
    %471 = vmatprep.subr.bf16.mxu0 %v440
    %472 = vmatpush1.bf16.msra.mxu0 %v439
    %473 = vmatprep.subr.bf16.mxu0 0
    %474 = vmatpush1.bf16.msra.mxu0 0
    %475 = vmatprep.subr.bf16.mxu0 0
    %476 = vmatpush1.bf16.msra.mxu0 0
    %477 = vmatprep.subr.bf16.mxu0 0
    %478 = vmatpush1.bf16.msra.mxu0 0
    %479 = vmatprep.subr.bf16.mxu0 0
    %480 = vmatpush1.bf16.msra.mxu0 0
    %481 = vmatprep.subr.bf16.mxu0 0
    %482 = vmatpush1.bf16.msra.mxu0 0
    %483 = vmatprep.subr.bf16.mxu0 0
    %484 = vmatpush1.bf16.msra.mxu0 0
    %485 = vmatprep.subr.bf16.mxu0 0
    %486 = vmatpush1.bf16.msra.mxu0 0
    %487 = vmatprep.subr.bf16.mxu0 0
    %488 = vmatpush1.bf16.msra.mxu0 0
    %489 = vmatprep.mubr.bf16.mxu0 0
    %490 = vmatmul.mubr.bf16.gmra.mrb[0].mxu0 %v176
    %v491 = vpop.f32.mrb[0].mxu0
    %v492 = vadd.f32 %v359, %v491
    %v493 = vpop.f32.mrb[0].mxu0
    %v494 = vadd.f32 %v361, %v493
    %v495 = vpop.f32.mrb[0].mxu0
    %v496 = vadd.f32 %v363, %v495
    %v497 = vpop.f32.mrb[0].mxu0
    %v498 = vadd.f32 %v365, %v497
    %499 = vmatprep.mubr.bf16.mxu0 0
    %500 = vmatmul.mubr.bf16.gmra.mrb[0].mxu0 %v179
    %v501 = vpop.f32.mrb[0].mxu0
    %v502 = vadd.f32 %v369, %v501
    %v503 = vpop.f32.mrb[0].mxu0
    %v504 = vadd.f32 %v371, %v503
    %v505 = vpop.f32.mrb[0].mxu0
    %v506 = vadd.f32 %v373, %v505
    %v507 = vpop.f32.mrb[0].mxu0
    %v508 = vadd.f32 %v375, %v507
    %509 = vdwg.mxu0
    %s510 = scalar_lea.vmem [#allocation4], 256
    %v511 = vld [vmem:[%s510] sm:$0xff]
    %v512 = vld [vmem:[%s510 + $0x8] sm:$0xff]
    %v513 = vld [vmem:[%s510 + $0x10] sm:$0xff]
    %v514 = vld [vmem:[%s510 + $0x18] sm:$0xff]
    %v515 = vld [vmem:[%s510 + $0x20] sm:$0xff]
    %v516 = vld [vmem:[%s510 + $0x28] sm:$0xff]
    %v517 = vld [vmem:[%s510 + $0x30] sm:$0xff]
    %v518 = vld [vmem:[%s510 + $0x38] sm:$0xff]
    %v519 = vld [vmem:[%s510 + $0x40] sm:$0xff]
    %v520 = vld [vmem:[%s510 + $0x48] sm:$0xff]
    %v521 = vld [vmem:[%s510 + $0x50] sm:$0xff]
    %v522 = vld [vmem:[%s510 + $0x58] sm:$0xff]
    %v523 = vld [vmem:[%s510 + $0x60] sm:$0xff]
    %v524 = vld [vmem:[%s510 + $0x68] sm:$0xff]
    %v525 = vld [vmem:[%s510 + $0x70] sm:$0xff]
    %v526 = vld [vmem:[%s510 + $0x78] sm:$0xff]
    %v543 = vunpack.c.l.b16 %v511
    %v544 = vunpack.c.h.b16 %v511
    %v545 = vunpack.c.l.b16 %v512
    %v546 = vunpack.c.h.b16 %v512
    %v547 = vunpack.c.l.b16 %v513
    %v548 = vunpack.c.h.b16 %v513
    %v549 = vunpack.c.l.b16 %v514
    %v550 = vunpack.c.h.b16 %v514
    %v551 = vunpack.c.l.b16 %v515
    %v552 = vunpack.c.h.b16 %v515
    %v553 = vunpack.c.l.b16 %v516
    %v554 = vunpack.c.h.b16 %v516
    %v555 = vunpack.c.l.b16 %v517
    %v556 = vunpack.c.h.b16 %v517
    %v557 = vunpack.c.l.b16 %v518
    %v558 = vunpack.c.h.b16 %v518
    %v559 = vunpack.c.l.b16 %v519
    %v560 = vunpack.c.h.b16 %v519
    %v561 = vunpack.c.l.b16 %v520
    %v562 = vunpack.c.h.b16 %v520
    %v563 = vunpack.c.l.b16 %v521
    %v564 = vunpack.c.h.b16 %v521
    %v565 = vunpack.c.l.b16 %v522
    %v566 = vunpack.c.h.b16 %v522
    %v567 = vunpack.c.l.b16 %v523
    %v568 = vunpack.c.h.b16 %v523
    %v569 = vunpack.c.l.b16 %v524
    %v570 = vunpack.c.h.b16 %v524
    %v571 = vunpack.c.l.b16 %v525
    %v572 = vunpack.c.h.b16 %v525
    %v573 = vunpack.c.l.b16 %v526
    %v574 = vunpack.c.h.b16 %v526
    %v575 = vpack.c.b16 %v545, %v543
    %v576 = vpack.c.b16 %v546, %v544
    %v577 = vpack.c.b16 %v549, %v547
    %v578 = vpack.c.b16 %v550, %v548
    %v579 = vpack.c.b16 %v553, %v551
    %v580 = vpack.c.b16 %v554, %v552
    %v581 = vpack.c.b16 %v557, %v555
    %v582 = vpack.c.b16 %v558, %v556
    %v583 = vpack.c.b16 %v561, %v559
    %v584 = vpack.c.b16 %v562, %v560
    %v585 = vpack.c.b16 %v565, %v563
    %v586 = vpack.c.b16 %v566, %v564
    %v587 = vpack.c.b16 %v569, %v567
    %v588 = vpack.c.b16 %v570, %v568
    %v589 = vpack.c.b16 %v573, %v571
    %v590 = vpack.c.b16 %v574, %v572
    %607 = vmatprep.subr.bf16.mxu0 %v576
    %608 = vmatpush1.bf16.msra.mxu0 %v575
    %609 = vmatprep.subr.bf16.mxu0 %v578
    %610 = vmatpush1.bf16.msra.mxu0 %v577
    %611 = vmatprep.subr.bf16.mxu0 %v580
    %612 = vmatpush1.bf16.msra.mxu0 %v579
    %613 = vmatprep.subr.bf16.mxu0 %v582
    %614 = vmatpush1.bf16.msra.mxu0 %v581
    %615 = vmatprep.subr.bf16.mxu0 %v584
    %616 = vmatpush1.bf16.msra.mxu0 %v583
    %617 = vmatprep.subr.bf16.mxu0 %v586
    %618 = vmatpush1.bf16.msra.mxu0 %v585
    %619 = vmatprep.subr.bf16.mxu0 %v588
    %620 = vmatpush1.bf16.msra.mxu0 %v587
    %621 = vmatprep.subr.bf16.mxu0 %v590
    %622 = vmatpush1.bf16.msra.mxu0 %v589
    %623 = vmatprep.subr.bf16.mxu0 0
    %624 = vmatpush1.bf16.msra.mxu0 0
    %625 = vmatprep.subr.bf16.mxu0 0
    %626 = vmatpush1.bf16.msra.mxu0 0
    %627 = vmatprep.subr.bf16.mxu0 0
    %628 = vmatpush1.bf16.msra.mxu0 0
    %629 = vmatprep.subr.bf16.mxu0 0
    %630 = vmatpush1.bf16.msra.mxu0 0
    %631 = vmatprep.subr.bf16.mxu0 0
    %632 = vmatpush1.bf16.msra.mxu0 0
    %633 = vmatprep.subr.bf16.mxu0 0
    %634 = vmatpush1.bf16.msra.mxu0 0
    %635 = vmatprep.subr.bf16.mxu0 0
    %636 = vmatpush1.bf16.msra.mxu0 0
    %637 = vmatprep.subr.bf16.mxu0 0
    %638 = vmatpush1.bf16.msra.mxu0 0
    %639 = vmatprep.mubr.bf16.mxu0 0
    %640 = vmatmul.mubr.bf16.gmra.mrb[0].mxu0 %v198
    %v641 = vpop.f32.mrb[0].mxu0
    %v642 = vadd.f32 0.0, %v641
    %v643 = vpop.f32.mrb[0].mxu0
    %v644 = vadd.f32 0.0, %v643
    %v645 = vpop.f32.mrb[0].mxu0
    %v646 = vadd.f32 0.0, %v645
    %v647 = vpop.f32.mrb[0].mxu0
    %v648 = vadd.f32 0.0, %v647
    %649 = vmatprep.mubr.bf16.mxu0 0
    %650 = vmatmul.mubr.bf16.gmra.mrb[0].mxu0 %v199
    %v651 = vpop.f32.mrb[0].mxu0
    %v652 = vadd.f32 0.0, %v651
    %v653 = vpop.f32.mrb[0].mxu0
    %v654 = vadd.f32 0.0, %v653
    %v655 = vpop.f32.mrb[0].mxu0
    %v656 = vadd.f32 0.0, %v655
    %v657 = vpop.f32.mrb[0].mxu0
    %v658 = vadd.f32 0.0, %v657
    %659 = vdwg.mxu0
    %v660 = vadd.f32 %v492, %v642
    %v661 = vadd.f32 %v494, %v644
    %v662 = vadd.f32 %v496, %v646
    %v663 = vadd.f32 %v498, %v648
    %v664 = vadd.f32 %v502, %v652
    %v665 = vadd.f32 %v504, %v654
    %v666 = vadd.f32 %v506, %v656
    %v667 = vadd.f32 %v508, %v658
    %v668 = vld [vmem:[#allocation2 + $0x8] sm:$0xff]
    %v669 = vld [vmem:[#allocation2 + $0x10] sm:$0x1]
    %v670 = vld [vmem:[#allocation2 + $0x20] sm:$0xff]
    %v671 = vld [vmem:[#allocation2 + $0x28] sm:$0x1]
    %vm672 = vsmask.f32 7424
    %v674 = vshrl.u32 %v668, 16
    %v676 = vshll.u32 %v668, 16
    %v678 = vrot.slane %v676, 1
    %v679 = vor.u32 %v674, %v678
    %v681 = vshll.u32 %v669, 16
    %v683 = vrot.slane %v681, 1
    %v684 = vsel %vm672, %v679, %v683
    %v686 = vshrl.u32 %v670, 16
    %v688 = vshll.u32 %v670, 16
    %v690 = vrot.slane %v688, 1
    %v691 = vor.u32 %v686, %v690
    %v693 = vshll.u32 %v671, 16
    %v695 = vrot.slane %v693, 1
    %v696 = vsel %vm672, %v691, %v695
    %s699 = scalar_lea.vmem [#allocation4], 384
    %v700 = vld [vmem:[%s699] sm:$0xff]
    %v701 = vld [vmem:[%s699 + $0x8] sm:$0xff]
    %v702 = vld [vmem:[%s699 + $0x10] sm:$0xff]
    %v703 = vld [vmem:[%s699 + $0x18] sm:$0xff]
    %v704 = vld [vmem:[%s699 + $0x20] sm:$0xff]
    %v705 = vld [vmem:[%s699 + $0x28] sm:$0xff]
    %v706 = vld [vmem:[%s699 + $0x30] sm:$0xff]
    %v707 = vld [vmem:[%s699 + $0x38] sm:$0xff]
    %v708 = vld [vmem:[%s699 + $0x40] sm:$0xff]
    %v709 = vld [vmem:[%s699 + $0x48] sm:$0xff]
    %v710 = vld [vmem:[%s699 + $0x50] sm:$0xff]
    %v711 = vld [vmem:[%s699 + $0x58] sm:$0xff]
    %v712 = vld [vmem:[%s699 + $0x60] sm:$0xff]
    %v713 = vld [vmem:[%s699 + $0x68] sm:$0xff]
    %v714 = vld [vmem:[%s699 + $0x70] sm:$0xff]
    %v715 = vld [vmem:[%s699 + $0x78] sm:$0xff]
    %v732 = vunpack.c.l.b16 %v700
    %v733 = vunpack.c.h.b16 %v700
    %v734 = vunpack.c.l.b16 %v701
    %v735 = vunpack.c.h.b16 %v701
    %v736 = vunpack.c.l.b16 %v702
    %v737 = vunpack.c.h.b16 %v702
    %v738 = vunpack.c.l.b16 %v703
    %v739 = vunpack.c.h.b16 %v703
    %v740 = vunpack.c.l.b16 %v704
    %v741 = vunpack.c.h.b16 %v704
    %v742 = vunpack.c.l.b16 %v705
    %v743 = vunpack.c.h.b16 %v705
    %v744 = vunpack.c.l.b16 %v706
    %v745 = vunpack.c.h.b16 %v706
    %v746 = vunpack.c.l.b16 %v707
    %v747 = vunpack.c.h.b16 %v707
    %v748 = vunpack.c.l.b16 %v708
    %v749 = vunpack.c.h.b16 %v708
    %v750 = vunpack.c.l.b16 %v709
    %v751 = vunpack.c.h.b16 %v709
    %v752 = vunpack.c.l.b16 %v710
    %v753 = vunpack.c.h.b16 %v710
    %v754 = vunpack.c.l.b16 %v711
    %v755 = vunpack.c.h.b16 %v711
    %v756 = vunpack.c.l.b16 %v712
    %v757 = vunpack.c.h.b16 %v712
    %v758 = vunpack.c.l.b16 %v713
    %v759 = vunpack.c.h.b16 %v713
    %v760 = vunpack.c.l.b16 %v714
    %v761 = vunpack.c.h.b16 %v714
    %v762 = vunpack.c.l.b16 %v715
    %v763 = vunpack.c.h.b16 %v715
    %v764 = vpack.c.b16 %v734, %v732
    %v765 = vpack.c.b16 %v735, %v733
    %v766 = vpack.c.b16 %v738, %v736
    %v767 = vpack.c.b16 %v739, %v737
    %v768 = vpack.c.b16 %v742, %v740
    %v769 = vpack.c.b16 %v743, %v741
    %v770 = vpack.c.b16 %v746, %v744
    %v771 = vpack.c.b16 %v747, %v745
    %v772 = vpack.c.b16 %v750, %v748
    %v773 = vpack.c.b16 %v751, %v749
    %v774 = vpack.c.b16 %v754, %v752
    %v775 = vpack.c.b16 %v755, %v753
    %v776 = vpack.c.b16 %v758, %v756
    %v777 = vpack.c.b16 %v759, %v757
    %v778 = vpack.c.b16 %v762, %v760
    %v779 = vpack.c.b16 %v763, %v761
    %796 = vmatprep.subr.bf16.mxu0 %v765
    %797 = vmatpush1.bf16.msra.mxu0 %v764
    %798 = vmatprep.subr.bf16.mxu0 %v767
    %799 = vmatpush1.bf16.msra.mxu0 %v766
    %800 = vmatprep.subr.bf16.mxu0 %v769
    %801 = vmatpush1.bf16.msra.mxu0 %v768
    %802 = vmatprep.subr.bf16.mxu0 %v771
    %803 = vmatpush1.bf16.msra.mxu0 %v770
    %804 = vmatprep.subr.bf16.mxu0 %v773
    %805 = vmatpush1.bf16.msra.mxu0 %v772
    %806 = vmatprep.subr.bf16.mxu0 %v775
    %807 = vmatpush1.bf16.msra.mxu0 %v774
    %808 = vmatprep.subr.bf16.mxu0 %v777
    %809 = vmatpush1.bf16.msra.mxu0 %v776
    %810 = vmatprep.subr.bf16.mxu0 %v779
    %811 = vmatpush1.bf16.msra.mxu0 %v778
    %812 = vmatprep.subr.bf16.mxu0 0
    %813 = vmatpush1.bf16.msra.mxu0 0
    %814 = vmatprep.subr.bf16.mxu0 0
    %815 = vmatpush1.bf16.msra.mxu0 0
    %816 = vmatprep.subr.bf16.mxu0 0
    %817 = vmatpush1.bf16.msra.mxu0 0
    %818 = vmatprep.subr.bf16.mxu0 0
    %819 = vmatpush1.bf16.msra.mxu0 0
    %820 = vmatprep.subr.bf16.mxu0 0
    %821 = vmatpush1.bf16.msra.mxu0 0
    %822 = vmatprep.subr.bf16.mxu0 0
    %823 = vmatpush1.bf16.msra.mxu0 0
    %824 = vmatprep.subr.bf16.mxu0 0
    %825 = vmatpush1.bf16.msra.mxu0 0
    %826 = vmatprep.subr.bf16.mxu0 0
    %827 = vmatpush1.bf16.msra.mxu0 0
    %828 = vmatprep.mubr.bf16.mxu0 0
    %829 = vmatmul.mubr.bf16.gmra.mrb[0].mxu0 %v684
    %v830 = vpop.f32.mrb[0].mxu0
    %v831 = vadd.f32 0.0, %v830
    %v832 = vpop.f32.mrb[0].mxu0
    %v833 = vadd.f32 0.0, %v832
    %v834 = vpop.f32.mrb[0].mxu0
    %v835 = vadd.f32 0.0, %v834
    %v836 = vpop.f32.mrb[0].mxu0
    %v837 = vadd.f32 0.0, %v836
    %838 = vmatprep.mubr.bf16.mxu0 0
    %839 = vmatmul.mubr.bf16.gmra.mrb[0].mxu0 %v696
    %v840 = vpop.f32.mrb[0].mxu0
    %v841 = vadd.f32 0.0, %v840
    %v842 = vpop.f32.mrb[0].mxu0
    %v843 = vadd.f32 0.0, %v842
    %v844 = vpop.f32.mrb[0].mxu0
    %v845 = vadd.f32 0.0, %v844
    %v846 = vpop.f32.mrb[0].mxu0
    %v847 = vadd.f32 0.0, %v846
    %848 = vdwg.mxu0
    %v849 = vadd.f32 %v660, %v831
    %v850 = vadd.f32 %v661, %v833
    %v851 = vadd.f32 %v662, %v835
    %v852 = vadd.f32 %v663, %v837
    %v853 = vadd.f32 %v664, %v841
    %v854 = vadd.f32 %v665, %v843
    %v855 = vadd.f32 %v666, %v845
    %v856 = vadd.f32 %v667, %v847
    %v857 = vld [vmem:[#allocation2 + $0x8] sm:$0xfe]
    %v858 = vld [vmem:[#allocation2 + $0x20] sm:$0xfe]
    %vm863 = vcmask 1046528
    %v864 = vrot.slane %v857, 1
    %v865 = vrot.slane %v669, 1
    %v866 = vsel %vm863, %v864, %v865
    %v867 = vrot.slane %v858, 1
    %v868 = vrot.slane %v671, 1
    %v869 = vsel %vm863, %v867, %v868
    %s872 = scalar_lea.vmem [#allocation4], 512
    %v873 = vld [vmem:[%s872] sm:$0xff]
    %v874 = vld [vmem:[%s872 + $0x8] sm:$0xff]
    %v875 = vld [vmem:[%s872 + $0x10] sm:$0xff]
    %v876 = vld [vmem:[%s872 + $0x18] sm:$0xff]
    %v877 = vld [vmem:[%s872 + $0x20] sm:$0xff]
    %v878 = vld [vmem:[%s872 + $0x28] sm:$0xff]
    %v879 = vld [vmem:[%s872 + $0x30] sm:$0xff]
    %v880 = vld [vmem:[%s872 + $0x38] sm:$0xff]
    %v881 = vld [vmem:[%s872 + $0x40] sm:$0xff]
    %v882 = vld [vmem:[%s872 + $0x48] sm:$0xff]
    %v883 = vld [vmem:[%s872 + $0x50] sm:$0xff]
    %v884 = vld [vmem:[%s872 + $0x58] sm:$0xff]
    %v885 = vld [vmem:[%s872 + $0x60] sm:$0xff]
    %v886 = vld [vmem:[%s872 + $0x68] sm:$0xff]
    %v887 = vld [vmem:[%s872 + $0x70] sm:$0xff]
    %v888 = vld [vmem:[%s872 + $0x78] sm:$0xff]
    %v905 = vunpack.c.l.b16 %v873
    %v906 = vunpack.c.h.b16 %v873
    %v907 = vunpack.c.l.b16 %v874
    %v908 = vunpack.c.h.b16 %v874
    %v909 = vunpack.c.l.b16 %v875
    %v910 = vunpack.c.h.b16 %v875
    %v911 = vunpack.c.l.b16 %v876
    %v912 = vunpack.c.h.b16 %v876
    %v913 = vunpack.c.l.b16 %v877
    %v914 = vunpack.c.h.b16 %v877
    %v915 = vunpack.c.l.b16 %v878
    %v916 = vunpack.c.h.b16 %v878
    %v917 = vunpack.c.l.b16 %v879
    %v918 = vunpack.c.h.b16 %v879
    %v919 = vunpack.c.l.b16 %v880
    %v920 = vunpack.c.h.b16 %v880
    %v921 = vunpack.c.l.b16 %v881
    %v922 = vunpack.c.h.b16 %v881
    %v923 = vunpack.c.l.b16 %v882
    %v924 = vunpack.c.h.b16 %v882
    %v925 = vunpack.c.l.b16 %v883
    %v926 = vunpack.c.h.b16 %v883
    %v927 = vunpack.c.l.b16 %v884
    %v928 = vunpack.c.h.b16 %v884
    %v929 = vunpack.c.l.b16 %v885
    %v930 = vunpack.c.h.b16 %v885
    %v931 = vunpack.c.l.b16 %v886
    %v932 = vunpack.c.h.b16 %v886
    %v933 = vunpack.c.l.b16 %v887
    %v934 = vunpack.c.h.b16 %v887
    %v935 = vunpack.c.l.b16 %v888
    %v936 = vunpack.c.h.b16 %v888
    %v937 = vpack.c.b16 %v907, %v905
    %v938 = vpack.c.b16 %v908, %v906
    %v939 = vpack.c.b16 %v911, %v909
    %v940 = vpack.c.b16 %v912, %v910
    %v941 = vpack.c.b16 %v915, %v913
    %v942 = vpack.c.b16 %v916, %v914
    %v943 = vpack.c.b16 %v919, %v917
    %v944 = vpack.c.b16 %v920, %v918
    %v945 = vpack.c.b16 %v923, %v921
    %v946 = vpack.c.b16 %v924, %v922
    %v947 = vpack.c.b16 %v927, %v925
    %v948 = vpack.c.b16 %v928, %v926
    %v949 = vpack.c.b16 %v931, %v929
    %v950 = vpack.c.b16 %v932, %v930
    %v951 = vpack.c.b16 %v935, %v933
    %v952 = vpack.c.b16 %v936, %v934
    %969 = vmatprep.subr.bf16.mxu0 %v938
    %970 = vmatpush1.bf16.msra.mxu0 %v937
    %971 = vmatprep.subr.bf16.mxu0 %v940
    %972 = vmatpush1.bf16.msra.mxu0 %v939
    %973 = vmatprep.subr.bf16.mxu0 %v942
    %974 = vmatpush1.bf16.msra.mxu0 %v941
    %975 = vmatprep.subr.bf16.mxu0 %v944
    %976 = vmatpush1.bf16.msra.mxu0 %v943
    %977 = vmatprep.subr.bf16.mxu0 %v946
    %978 = vmatpush1.bf16.msra.mxu0 %v945
    %979 = vmatprep.subr.bf16.mxu0 %v948
    %980 = vmatpush1.bf16.msra.mxu0 %v947
    %981 = vmatprep.subr.bf16.mxu0 %v950
    %982 = vmatpush1.bf16.msra.mxu0 %v949
    %983 = vmatprep.subr.bf16.mxu0 %v952
    %984 = vmatpush1.bf16.msra.mxu0 %v951
    %985 = vmatprep.subr.bf16.mxu0 0
    %986 = vmatpush1.bf16.msra.mxu0 0
    %987 = vmatprep.subr.bf16.mxu0 0
    %988 = vmatpush1.bf16.msra.mxu0 0
    %989 = vmatprep.subr.bf16.mxu0 0
    %990 = vmatpush1.bf16.msra.mxu0 0
    %991 = vmatprep.subr.bf16.mxu0 0
    %992 = vmatpush1.bf16.msra.mxu0 0
    %993 = vmatprep.subr.bf16.mxu0 0
    %994 = vmatpush1.bf16.msra.mxu0 0
    %995 = vmatprep.subr.bf16.mxu0 0
    %996 = vmatpush1.bf16.msra.mxu0 0
    %997 = vmatprep.subr.bf16.mxu0 0
    %998 = vmatpush1.bf16.msra.mxu0 0
    %999 = vmatprep.subr.bf16.mxu0 0
    %1000 = vmatpush1.bf16.msra.mxu0 0
    %1001 = vmatprep.mubr.bf16.mxu0 0
    %1002 = vmatmul.mubr.bf16.gmra.mrb[0].mxu0 %v866
    %v1003 = vpop.f32.mrb[0].mxu0
    %v1004 = vadd.f32 0.0, %v1003
    %v1005 = vpop.f32.mrb[0].mxu0
    %v1006 = vadd.f32 0.0, %v1005
    %v1007 = vpop.f32.mrb[0].mxu0
    %v1008 = vadd.f32 0.0, %v1007
    %v1009 = vpop.f32.mrb[0].mxu0
    %v1010 = vadd.f32 0.0, %v1009
    %1011 = vmatprep.mubr.bf16.mxu0 0
    %1012 = vmatmul.mubr.bf16.gmra.mrb[0].mxu0 %v869
    %v1013 = vpop.f32.mrb[0].mxu0
    %v1014 = vadd.f32 0.0, %v1013
    %v1015 = vpop.f32.mrb[0].mxu0
    %v1016 = vadd.f32 0.0, %v1015
    %v1017 = vpop.f32.mrb[0].mxu0
    %v1018 = vadd.f32 0.0, %v1017
    %v1019 = vpop.f32.mrb[0].mxu0
    %v1020 = vadd.f32 0.0, %v1019
    %1021 = vdwg.mxu0
    %v1022 = vadd.f32 %v849, %v1004
    %v1023 = vadd.f32 %v850, %v1006
    %v1024 = vadd.f32 %v851, %v1008
    %v1025 = vadd.f32 %v852, %v1010
    %v1026 = vadd.f32 %v853, %v1014
    %v1027 = vadd.f32 %v854, %v1016
    %v1028 = vadd.f32 %v855, %v1018
    %v1029 = vadd.f32 %v856, %v1020
    %v1030 = vld [vmem:[%s6] sm:$0x3]
    %v1032 = vlaneseq
    %v1033 = vshrl.u32 %v1032, 7
    %v1034 = vsub.s32 0, %v1033
    %v1035 = vrot.slane %v1030, %v1034
    %v1036 = vlaneseq
    %v1037 = vshrl.u32 %v1036, 7
    %v1038 = vsub.s32 1, %v1037
    %v1039 = vrot.slane %v1030, %v1038
    %v1042 = vadd.f32 %v1022, %v1035
    %v1043 = vadd.f32 %v1023, %v1039
    %v1044 = vadd.f32 %v1024, %v1035
    %v1045 = vadd.f32 %v1025, %v1039
    %v1046 = vadd.f32 %v1026, %v1035
    %v1047 = vadd.f32 %v1027, %v1039
    %v1048 = vadd.f32 %v1028, %v1035
    %v1049 = vadd.f32 %v1029, %v1039
    %v1050 = vmax.f32 %v1042, 0.0
    %v1051 = vmax.f32 %v1043, 0.0
    %v1052 = vmax.f32 %v1044, 0.0
    %v1053 = vmax.f32 %v1045, 0.0
    %v1054 = vmax.f32 %v1046, 0.0
    %v1055 = vmax.f32 %v1047, 0.0
    %v1056 = vmax.f32 %v1048, 0.0
    %v1057 = vmax.f32 %v1049, 0.0
    %1058 = vst [vmem:[#allocation3] sm:$0xff] 0
    %1059 = vst [vmem:[#allocation3 + $0x8] sm:$0xff] 0
    %1060 = vst [vmem:[#allocation3 + $0x30] sm:$0xff] 0
    %1061 = vst [vmem:[#allocation3 + $0x38] sm:$0xff] 0
    %1062 = vst [vmem:[#allocation3 + $0x20] sm:$0xff] 0
    %1063 = vst [vmem:[#allocation3 + $0x28] sm:$0xff] 0
    %1064 = vst [vmem:[#allocation3 + $0x50] sm:$0xff] 0
    %1065 = vst [vmem:[#allocation3 + $0x58] sm:$0xff] 0
    %v1066 = vpack.c.bf16 %v1052, %v1050
    %v1067 = vpack.c.bf16 %v1053, %v1051
    %v1068 = vpack.c.bf16 %v1056, %v1054
    %v1069 = vpack.c.bf16 %v1057, %v1055
    %1070 = vst [vmem:[#allocation3 + $0x10] sm:$0xff] %v1066
    %1071 = vst [vmem:[#allocation3 + $0x18] sm:$0xff] %v1067
    %1072 = vst [vmem:[#allocation3 + $0x40] sm:$0xff] %v1068
    %1073 = vst [vmem:[#allocation3 + $0x48] sm:$0xff] %v1069
    %v1074 = vld [vmem:[#allocation3] sm:$0x80]
    %v1075 = vld [vmem:[#allocation3 + $0x8] sm:$0x80]
    %v1076 = vld [vmem:[#allocation3 + $0x10] sm:$0xff]
    %v1077 = vld [vmem:[#allocation3 + $0x18] sm:$0xff]
    %v1078 = vld [vmem:[#allocation3 + $0x30] sm:$0x80]
    %v1079 = vld [vmem:[#allocation3 + $0x38] sm:$0x80]
    %v1080 = vld [vmem:[#allocation3 + $0x40] sm:$0xff]
    %v1081 = vld [vmem:[#allocation3 + $0x48] sm:$0xff]
    %v1083 = vshrl.u32 %v1074, 16
    %v1085 = vrot.slane %v1083, 7
    %v1087 = vshrl.u32 %v1076, 16
    %v1089 = vrot.slane %v1087, 7
    %v1090 = vshll.u32 %v1076, 16
    %v1092 = vor.u32 %v1089, %v1090
    %v1093 = vsel %vm200, %v1085, %v1092
    %v1095 = vshrl.u32 %v1075, 16
    %v1097 = vrot.slane %v1095, 7
    %v1099 = vshrl.u32 %v1077, 16
    %v1101 = vrot.slane %v1099, 7
    %v1102 = vshll.u32 %v1077, 16
    %v1104 = vor.u32 %v1101, %v1102
    %v1105 = vsel %vm200, %v1097, %v1104
    %v1107 = vshrl.u32 %v1078, 16
    %v1109 = vrot.slane %v1107, 7
    %v1111 = vshrl.u32 %v1080, 16
    %v1113 = vrot.slane %v1111, 7
    %v1114 = vshll.u32 %v1080, 16
    %v1116 = vor.u32 %v1113, %v1114
    %v1117 = vsel %vm200, %v1109, %v1116
    %v1119 = vshrl.u32 %v1079, 16
    %v1121 = vrot.slane %v1119, 7
    %v1123 = vshrl.u32 %v1081, 16
    %v1125 = vrot.slane %v1123, 7
    %v1126 = vshll.u32 %v1081, 16
    %v1128 = vor.u32 %v1125, %v1126
    %v1129 = vsel %vm200, %v1121, %v1128
    %v1134 = vld [vmem:[#allocation7] sm:$0xf]
    %v1135 = vld [vmem:[#allocation7 + $0x4] sm:$0xf]
    %v1136 = vld [vmem:[#allocation7 + $0x8] sm:$0xf]
    %v1137 = vld [vmem:[#allocation7 + $0xc] sm:$0xf]
    %v1138 = vld [vmem:[#allocation7 + $0x10] sm:$0xf]
    %v1139 = vld [vmem:[#allocation7 + $0x14] sm:$0xf]
    %v1140 = vld [vmem:[#allocation7 + $0x18] sm:$0xf]
    %v1141 = vld [vmem:[#allocation7 + $0x1c] sm:$0xf]
    %v1142 = vld [vmem:[#allocation7 + $0x20] sm:$0xf]
    %v1143 = vld [vmem:[#allocation7 + $0x24] sm:$0xf]
    %v1144 = vld [vmem:[#allocation7 + $0x28] sm:$0xf]
    %v1145 = vld [vmem:[#allocation7 + $0x2c] sm:$0xf]
    %v1146 = vld [vmem:[#allocation7 + $0x30] sm:$0xf]
    %v1147 = vld [vmem:[#allocation7 + $0x34] sm:$0xf]
    %v1148 = vld [vmem:[#allocation7 + $0x38] sm:$0xf]
    %v1149 = vld [vmem:[#allocation7 + $0x3c] sm:$0xf]
    %v1150 = vld [vmem:[#allocation7 + $0x40] sm:$0xf]
    %v1151 = vld [vmem:[#allocation7 + $0x44] sm:$0xf]
    %v1152 = vld [vmem:[#allocation7 + $0x48] sm:$0xf]
    %v1153 = vld [vmem:[#allocation7 + $0x4c] sm:$0xf]
    %v1154 = vld [vmem:[#allocation7 + $0x50] sm:$0xf]
    %v1155 = vld [vmem:[#allocation7 + $0x54] sm:$0xf]
    %v1156 = vld [vmem:[#allocation7 + $0x58] sm:$0xf]
    %v1157 = vld [vmem:[#allocation7 + $0x5c] sm:$0xf]
    %v1158 = vld [vmem:[#allocation7 + $0x60] sm:$0xf]
    %v1159 = vld [vmem:[#allocation7 + $0x64] sm:$0xf]
    %v1160 = vld [vmem:[#allocation7 + $0x68] sm:$0xf]
    %v1161 = vld [vmem:[#allocation7 + $0x6c] sm:$0xf]
    %v1162 = vld [vmem:[#allocation7 + $0x70] sm:$0xf]
    %v1163 = vld [vmem:[#allocation7 + $0x74] sm:$0xf]
    %v1164 = vld [vmem:[#allocation7 + $0x78] sm:$0xf]
    %v1165 = vld [vmem:[#allocation7 + $0x7c] sm:$0xf]
    %s1166 = scalar_lea.vmem [#allocation7], 128
    %v1167 = vld [vmem:[%s1166] sm:$0xf]
    %v1168 = vld [vmem:[%s1166 + $0x4] sm:$0xf]
    %v1169 = vld [vmem:[%s1166 + $0x8] sm:$0xf]
    %v1170 = vld [vmem:[%s1166 + $0xc] sm:$0xf]
    %v1171 = vld [vmem:[%s1166 + $0x10] sm:$0xf]
    %v1172 = vld [vmem:[%s1166 + $0x14] sm:$0xf]
    %v1173 = vld [vmem:[%s1166 + $0x18] sm:$0xf]
    %v1174 = vld [vmem:[%s1166 + $0x1c] sm:$0xf]
    %v1175 = vld [vmem:[%s1166 + $0x20] sm:$0xf]
    %v1176 = vld [vmem:[%s1166 + $0x24] sm:$0xf]
    %v1177 = vld [vmem:[%s1166 + $0x28] sm:$0xf]
    %v1178 = vld [vmem:[%s1166 + $0x2c] sm:$0xf]
    %v1179 = vld [vmem:[%s1166 + $0x30] sm:$0xf]
    %v1180 = vld [vmem:[%s1166 + $0x34] sm:$0xf]
    %v1181 = vld [vmem:[%s1166 + $0x38] sm:$0xf]
    %v1182 = vld [vmem:[%s1166 + $0x3c] sm:$0xf]
    %v1183 = vld [vmem:[%s1166 + $0x40] sm:$0xf]
    %v1184 = vld [vmem:[%s1166 + $0x44] sm:$0xf]
    %v1185 = vld [vmem:[%s1166 + $0x48] sm:$0xf]
    %v1186 = vld [vmem:[%s1166 + $0x4c] sm:$0xf]
    %v1187 = vld [vmem:[%s1166 + $0x50] sm:$0xf]
    %v1188 = vld [vmem:[%s1166 + $0x54] sm:$0xf]
    %v1189 = vld [vmem:[%s1166 + $0x58] sm:$0xf]
    %v1190 = vld [vmem:[%s1166 + $0x5c] sm:$0xf]
    %v1191 = vld [vmem:[%s1166 + $0x60] sm:$0xf]
    %v1192 = vld [vmem:[%s1166 + $0x64] sm:$0xf]
    %v1193 = vld [vmem:[%s1166 + $0x68] sm:$0xf]
    %v1194 = vld [vmem:[%s1166 + $0x6c] sm:$0xf]
    %v1195 = vld [vmem:[%s1166 + $0x70] sm:$0xf]
    %v1196 = vld [vmem:[%s1166 + $0x74] sm:$0xf]
    %v1197 = vld [vmem:[%s1166 + $0x78] sm:$0xf]
    %v1198 = vld [vmem:[%s1166 + $0x7c] sm:$0xf]
    %v1231 = vunpack.c.l.b16 %v1167
    %v1232 = vunpack.c.l.b16 %v1168
    %v1233 = vunpack.c.l.b16 %v1169
    %v1234 = vunpack.c.l.b16 %v1170
    %v1235 = vunpack.c.l.b16 %v1171
    %v1236 = vunpack.c.l.b16 %v1172
    %v1237 = vunpack.c.l.b16 %v1173
    %v1238 = vunpack.c.l.b16 %v1174
    %v1239 = vunpack.c.l.b16 %v1175
    %v1240 = vunpack.c.l.b16 %v1176
    %v1241 = vunpack.c.l.b16 %v1177
    %v1242 = vunpack.c.l.b16 %v1178
    %v1243 = vunpack.c.l.b16 %v1179
    %v1244 = vunpack.c.l.b16 %v1180
    %v1245 = vunpack.c.l.b16 %v1181
    %v1246 = vunpack.c.l.b16 %v1182
    %v1247 = vunpack.c.l.b16 %v1183
    %v1248 = vunpack.c.l.b16 %v1184
    %v1249 = vunpack.c.l.b16 %v1185
    %v1250 = vunpack.c.l.b16 %v1186
    %v1251 = vunpack.c.l.b16 %v1187
    %v1252 = vunpack.c.l.b16 %v1188
    %v1253 = vunpack.c.l.b16 %v1189
    %v1254 = vunpack.c.l.b16 %v1190
    %v1255 = vunpack.c.l.b16 %v1191
    %v1256 = vunpack.c.l.b16 %v1192
    %v1257 = vunpack.c.l.b16 %v1193
    %v1258 = vunpack.c.l.b16 %v1194
    %v1259 = vunpack.c.l.b16 %v1195
    %v1260 = vunpack.c.l.b16 %v1196
    %v1261 = vunpack.c.l.b16 %v1197
    %v1262 = vunpack.c.l.b16 %v1198
    %v1263 = vpack.c.b16 %v1232, %v1231
    %v1264 = vpack.c.b16 %v1234, %v1233
    %v1265 = vpack.c.b16 %v1236, %v1235
    %v1266 = vpack.c.b16 %v1238, %v1237
    %v1267 = vpack.c.b16 %v1240, %v1239
    %v1268 = vpack.c.b16 %v1242, %v1241
    %v1269 = vpack.c.b16 %v1244, %v1243
    %v1270 = vpack.c.b16 %v1246, %v1245
    %v1271 = vpack.c.b16 %v1248, %v1247
    %v1272 = vpack.c.b16 %v1250, %v1249
    %v1273 = vpack.c.b16 %v1252, %v1251
    %v1274 = vpack.c.b16 %v1254, %v1253
    %v1275 = vpack.c.b16 %v1256, %v1255
    %v1276 = vpack.c.b16 %v1258, %v1257
    %v1277 = vpack.c.b16 %v1260, %v1259
    %v1278 = vpack.c.b16 %v1262, %v1261
    %1295 = vmatprep.subr.bf16.mxu0 0
    %1296 = vmatpush1.bf16.msra.mxu0 %v1263
    %1297 = vmatprep.subr.bf16.mxu0 0
    %1298 = vmatpush1.bf16.msra.mxu0 %v1264
    %1299 = vmatprep.subr.bf16.mxu0 0
    %1300 = vmatpush1.bf16.msra.mxu0 %v1265
    %1301 = vmatprep.subr.bf16.mxu0 0
    %1302 = vmatpush1.bf16.msra.mxu0 %v1266
    %1303 = vmatprep.subr.bf16.mxu0 0
    %1304 = vmatpush1.bf16.msra.mxu0 %v1267
    %1305 = vmatprep.subr.bf16.mxu0 0
    %1306 = vmatpush1.bf16.msra.mxu0 %v1268
    %1307 = vmatprep.subr.bf16.mxu0 0
    %1308 = vmatpush1.bf16.msra.mxu0 %v1269
    %1309 = vmatprep.subr.bf16.mxu0 0
    %1310 = vmatpush1.bf16.msra.mxu0 %v1270
    %1311 = vmatprep.subr.bf16.mxu0 0
    %1312 = vmatpush1.bf16.msra.mxu0 %v1271
    %1313 = vmatprep.subr.bf16.mxu0 0
    %1314 = vmatpush1.bf16.msra.mxu0 %v1272
    %1315 = vmatprep.subr.bf16.mxu0 0
    %1316 = vmatpush1.bf16.msra.mxu0 %v1273
    %1317 = vmatprep.subr.bf16.mxu0 0
    %1318 = vmatpush1.bf16.msra.mxu0 %v1274
    %1319 = vmatprep.subr.bf16.mxu0 0
    %1320 = vmatpush1.bf16.msra.mxu0 %v1275
    %1321 = vmatprep.subr.bf16.mxu0 0
    %1322 = vmatpush1.bf16.msra.mxu0 %v1276
    %1323 = vmatprep.subr.bf16.mxu0 0
    %1324 = vmatpush1.bf16.msra.mxu0 %v1277
    %1325 = vmatprep.subr.bf16.mxu0 0
    %1326 = vmatpush1.bf16.msra.mxu0 %v1278
    %1327 = vmatprep.mubr.bf16.mxu0 %v1077
    %1328 = vmatmul.mubr.bf16.gmra.mrb[0].mxu0 %v1076
    %v1329 = vpop.f32.mrb[0].mxu0
    %v1330 = vadd.f32 0.0, %v1329
    %v1331 = vpop.f32.mrb[0].mxu0
    %v1332 = vpop.f32.mrb[0].mxu0
    %v1333 = vadd.f32 0.0, %v1332
    %v1334 = vpop.f32.mrb[0].mxu0
    %1335 = vmatprep.mubr.bf16.mxu0 %v1081
    %1336 = vmatmul.mubr.bf16.gmra.mrb[0].mxu0 %v1080
    %v1337 = vpop.f32.mrb[0].mxu0
    %v1338 = vadd.f32 0.0, %v1337
    %v1339 = vpop.f32.mrb[0].mxu0
    %v1340 = vpop.f32.mrb[0].mxu0
    %v1341 = vadd.f32 0.0, %v1340
    %v1342 = vpop.f32.mrb[0].mxu0
    %1343 = vdwg.mxu0
    %v1376 = vunpack.c.l.b16 %v1134
    %v1377 = vunpack.c.l.b16 %v1135
    %v1378 = vunpack.c.l.b16 %v1136
    %v1379 = vunpack.c.l.b16 %v1137
    %v1380 = vunpack.c.l.b16 %v1138
    %v1381 = vunpack.c.l.b16 %v1139
    %v1382 = vunpack.c.l.b16 %v1140
    %v1383 = vunpack.c.l.b16 %v1141
    %v1384 = vunpack.c.l.b16 %v1142
    %v1385 = vunpack.c.l.b16 %v1143
    %v1386 = vunpack.c.l.b16 %v1144
    %v1387 = vunpack.c.l.b16 %v1145
    %v1388 = vunpack.c.l.b16 %v1146
    %v1389 = vunpack.c.l.b16 %v1147
    %v1390 = vunpack.c.l.b16 %v1148
    %v1391 = vunpack.c.l.b16 %v1149
    %v1392 = vunpack.c.l.b16 %v1150
    %v1393 = vunpack.c.l.b16 %v1151
    %v1394 = vunpack.c.l.b16 %v1152
    %v1395 = vunpack.c.l.b16 %v1153
    %v1396 = vunpack.c.l.b16 %v1154
    %v1397 = vunpack.c.l.b16 %v1155
    %v1398 = vunpack.c.l.b16 %v1156
    %v1399 = vunpack.c.l.b16 %v1157
    %v1400 = vunpack.c.l.b16 %v1158
    %v1401 = vunpack.c.l.b16 %v1159
    %v1402 = vunpack.c.l.b16 %v1160
    %v1403 = vunpack.c.l.b16 %v1161
    %v1404 = vunpack.c.l.b16 %v1162
    %v1405 = vunpack.c.l.b16 %v1163
    %v1406 = vunpack.c.l.b16 %v1164
    %v1407 = vunpack.c.l.b16 %v1165
    %v1408 = vpack.c.b16 %v1377, %v1376
    %v1409 = vpack.c.b16 %v1379, %v1378
    %v1410 = vpack.c.b16 %v1381, %v1380
    %v1411 = vpack.c.b16 %v1383, %v1382
    %v1412 = vpack.c.b16 %v1385, %v1384
    %v1413 = vpack.c.b16 %v1387, %v1386
    %v1414 = vpack.c.b16 %v1389, %v1388
    %v1415 = vpack.c.b16 %v1391, %v1390
    %v1416 = vpack.c.b16 %v1393, %v1392
    %v1417 = vpack.c.b16 %v1395, %v1394
    %v1418 = vpack.c.b16 %v1397, %v1396
    %v1419 = vpack.c.b16 %v1399, %v1398
    %v1420 = vpack.c.b16 %v1401, %v1400
    %v1421 = vpack.c.b16 %v1403, %v1402
    %v1422 = vpack.c.b16 %v1405, %v1404
    %v1423 = vpack.c.b16 %v1407, %v1406
    %1440 = vmatprep.subr.bf16.mxu0 0
    %1441 = vmatpush1.bf16.msra.mxu0 %v1408
    %1442 = vmatprep.subr.bf16.mxu0 0
    %1443 = vmatpush1.bf16.msra.mxu0 %v1409
    %1444 = vmatprep.subr.bf16.mxu0 0
    %1445 = vmatpush1.bf16.msra.mxu0 %v1410
    %1446 = vmatprep.subr.bf16.mxu0 0
    %1447 = vmatpush1.bf16.msra.mxu0 %v1411
    %1448 = vmatprep.subr.bf16.mxu0 0
    %1449 = vmatpush1.bf16.msra.mxu0 %v1412
    %1450 = vmatprep.subr.bf16.mxu0 0
    %1451 = vmatpush1.bf16.msra.mxu0 %v1413
    %1452 = vmatprep.subr.bf16.mxu0 0
    %1453 = vmatpush1.bf16.msra.mxu0 %v1414
    %1454 = vmatprep.subr.bf16.mxu0 0
    %1455 = vmatpush1.bf16.msra.mxu0 %v1415
    %1456 = vmatprep.subr.bf16.mxu0 0
    %1457 = vmatpush1.bf16.msra.mxu0 %v1416
    %1458 = vmatprep.subr.bf16.mxu0 0
    %1459 = vmatpush1.bf16.msra.mxu0 %v1417
    %1460 = vmatprep.subr.bf16.mxu0 0
    %1461 = vmatpush1.bf16.msra.mxu0 %v1418
    %1462 = vmatprep.subr.bf16.mxu0 0
    %1463 = vmatpush1.bf16.msra.mxu0 %v1419
    %1464 = vmatprep.subr.bf16.mxu0 0
    %1465 = vmatpush1.bf16.msra.mxu0 %v1420
    %1466 = vmatprep.subr.bf16.mxu0 0
    %1467 = vmatpush1.bf16.msra.mxu0 %v1421
    %1468 = vmatprep.subr.bf16.mxu0 0
    %1469 = vmatpush1.bf16.msra.mxu0 %v1422
    %1470 = vmatprep.subr.bf16.mxu0 0
    %1471 = vmatpush1.bf16.msra.mxu0 %v1423
    %1472 = vmatprep.mubr.bf16.mxu0 %v1105
    %1473 = vmatmul.mubr.bf16.gmra.mrb[0].mxu0 %v1093
    %v1474 = vpop.f32.mrb[0].mxu0
    %v1475 = vadd.f32 %v1330, %v1474
    %v1476 = vpop.f32.mrb[0].mxu0
    %v1477 = vpop.f32.mrb[0].mxu0
    %v1478 = vadd.f32 %v1333, %v1477
    %v1479 = vpop.f32.mrb[0].mxu0
    %1480 = vmatprep.mubr.bf16.mxu0 %v1129
    %1481 = vmatmul.mubr.bf16.gmra.mrb[0].mxu0 %v1117
    %v1482 = vpop.f32.mrb[0].mxu0
    %v1483 = vadd.f32 %v1338, %v1482
    %v1484 = vpop.f32.mrb[0].mxu0
    %v1485 = vpop.f32.mrb[0].mxu0
    %v1486 = vadd.f32 %v1341, %v1485
    %v1487 = vpop.f32.mrb[0].mxu0
    %1488 = vdwg.mxu0
    %v1489 = vld [vmem:[#allocation3 + $0x10] sm:$0xff]
    %v1490 = vld [vmem:[#allocation3 + $0x18] sm:$0xff]
    %v1491 = vld [vmem:[#allocation3 + $0x20] sm:$0x1]
    %v1492 = vld [vmem:[#allocation3 + $0x28] sm:$0x1]
    %v1493 = vld [vmem:[#allocation3 + $0x40] sm:$0xff]
    %v1494 = vld [vmem:[#allocation3 + $0x48] sm:$0xff]
    %v1495 = vld [vmem:[#allocation3 + $0x50] sm:$0x1]
    %v1496 = vld [vmem:[#allocation3 + $0x58] sm:$0x1]
    %v1498 = vshrl.u32 %v1489, 16
    %v1500 = vshll.u32 %v1489, 16
    %v1502 = vrot.slane %v1500, 1
    %v1503 = vor.u32 %v1498, %v1502
    %v1505 = vshll.u32 %v1491, 16
    %v1507 = vrot.slane %v1505, 1
    %v1508 = vsel %vm672, %v1503, %v1507
    %v1510 = vshrl.u32 %v1490, 16
    %v1512 = vshll.u32 %v1490, 16
    %v1514 = vrot.slane %v1512, 1
    %v1515 = vor.u32 %v1510, %v1514
    %v1517 = vshll.u32 %v1492, 16
    %v1519 = vrot.slane %v1517, 1
    %v1520 = vsel %vm672, %v1515, %v1519
    %v1522 = vshrl.u32 %v1493, 16
    %v1524 = vshll.u32 %v1493, 16
    %v1526 = vrot.slane %v1524, 1
    %v1527 = vor.u32 %v1522, %v1526
    %v1529 = vshll.u32 %v1495, 16
    %v1531 = vrot.slane %v1529, 1
    %v1532 = vsel %vm672, %v1527, %v1531
    %v1534 = vshrl.u32 %v1494, 16
    %v1536 = vshll.u32 %v1494, 16
    %v1538 = vrot.slane %v1536, 1
    %v1539 = vor.u32 %v1534, %v1538
    %v1541 = vshll.u32 %v1496, 16
    %v1543 = vrot.slane %v1541, 1
    %v1544 = vsel %vm672, %v1539, %v1543
    %s1549 = scalar_lea.vmem [#allocation7], 256
    %v1550 = vld [vmem:[%s1549] sm:$0xf]
    %v1551 = vld [vmem:[%s1549 + $0x4] sm:$0xf]
    %v1552 = vld [vmem:[%s1549 + $0x8] sm:$0xf]
    %v1553 = vld [vmem:[%s1549 + $0xc] sm:$0xf]
    %v1554 = vld [vmem:[%s1549 + $0x10] sm:$0xf]
    %v1555 = vld [vmem:[%s1549 + $0x14] sm:$0xf]
    %v1556 = vld [vmem:[%s1549 + $0x18] sm:$0xf]
    %v1557 = vld [vmem:[%s1549 + $0x1c] sm:$0xf]
    %v1558 = vld [vmem:[%s1549 + $0x20] sm:$0xf]
    %v1559 = vld [vmem:[%s1549 + $0x24] sm:$0xf]
    %v1560 = vld [vmem:[%s1549 + $0x28] sm:$0xf]
    %v1561 = vld [vmem:[%s1549 + $0x2c] sm:$0xf]
    %v1562 = vld [vmem:[%s1549 + $0x30] sm:$0xf]
    %v1563 = vld [vmem:[%s1549 + $0x34] sm:$0xf]
    %v1564 = vld [vmem:[%s1549 + $0x38] sm:$0xf]
    %v1565 = vld [vmem:[%s1549 + $0x3c] sm:$0xf]
    %v1566 = vld [vmem:[%s1549 + $0x40] sm:$0xf]
    %v1567 = vld [vmem:[%s1549 + $0x44] sm:$0xf]
    %v1568 = vld [vmem:[%s1549 + $0x48] sm:$0xf]
    %v1569 = vld [vmem:[%s1549 + $0x4c] sm:$0xf]
    %v1570 = vld [vmem:[%s1549 + $0x50] sm:$0xf]
    %v1571 = vld [vmem:[%s1549 + $0x54] sm:$0xf]
    %v1572 = vld [vmem:[%s1549 + $0x58] sm:$0xf]
    %v1573 = vld [vmem:[%s1549 + $0x5c] sm:$0xf]
    %v1574 = vld [vmem:[%s1549 + $0x60] sm:$0xf]
    %v1575 = vld [vmem:[%s1549 + $0x64] sm:$0xf]
    %v1576 = vld [vmem:[%s1549 + $0x68] sm:$0xf]
    %v1577 = vld [vmem:[%s1549 + $0x6c] sm:$0xf]
    %v1578 = vld [vmem:[%s1549 + $0x70] sm:$0xf]
    %v1579 = vld [vmem:[%s1549 + $0x74] sm:$0xf]
    %v1580 = vld [vmem:[%s1549 + $0x78] sm:$0xf]
    %v1581 = vld [vmem:[%s1549 + $0x7c] sm:$0xf]
    %v1614 = vunpack.c.l.b16 %v1550
    %v1615 = vunpack.c.l.b16 %v1551
    %v1616 = vunpack.c.l.b16 %v1552
    %v1617 = vunpack.c.l.b16 %v1553
    %v1618 = vunpack.c.l.b16 %v1554
    %v1619 = vunpack.c.l.b16 %v1555
    %v1620 = vunpack.c.l.b16 %v1556
    %v1621 = vunpack.c.l.b16 %v1557
    %v1622 = vunpack.c.l.b16 %v1558
    %v1623 = vunpack.c.l.b16 %v1559
    %v1624 = vunpack.c.l.b16 %v1560
    %v1625 = vunpack.c.l.b16 %v1561
    %v1626 = vunpack.c.l.b16 %v1562
    %v1627 = vunpack.c.l.b16 %v1563
    %v1628 = vunpack.c.l.b16 %v1564
    %v1629 = vunpack.c.l.b16 %v1565
    %v1630 = vunpack.c.l.b16 %v1566
    %v1631 = vunpack.c.l.b16 %v1567
    %v1632 = vunpack.c.l.b16 %v1568
    %v1633 = vunpack.c.l.b16 %v1569
    %v1634 = vunpack.c.l.b16 %v1570
    %v1635 = vunpack.c.l.b16 %v1571
    %v1636 = vunpack.c.l.b16 %v1572
    %v1637 = vunpack.c.l.b16 %v1573
    %v1638 = vunpack.c.l.b16 %v1574
    %v1639 = vunpack.c.l.b16 %v1575
    %v1640 = vunpack.c.l.b16 %v1576
    %v1641 = vunpack.c.l.b16 %v1577
    %v1642 = vunpack.c.l.b16 %v1578
    %v1643 = vunpack.c.l.b16 %v1579
    %v1644 = vunpack.c.l.b16 %v1580
    %v1645 = vunpack.c.l.b16 %v1581
    %v1646 = vpack.c.b16 %v1615, %v1614
    %v1647 = vpack.c.b16 %v1617, %v1616
    %v1648 = vpack.c.b16 %v1619, %v1618
    %v1649 = vpack.c.b16 %v1621, %v1620
    %v1650 = vpack.c.b16 %v1623, %v1622
    %v1651 = vpack.c.b16 %v1625, %v1624
    %v1652 = vpack.c.b16 %v1627, %v1626
    %v1653 = vpack.c.b16 %v1629, %v1628
    %v1654 = vpack.c.b16 %v1631, %v1630
    %v1655 = vpack.c.b16 %v1633, %v1632
    %v1656 = vpack.c.b16 %v1635, %v1634
    %v1657 = vpack.c.b16 %v1637, %v1636
    %v1658 = vpack.c.b16 %v1639, %v1638
    %v1659 = vpack.c.b16 %v1641, %v1640
    %v1660 = vpack.c.b16 %v1643, %v1642
    %v1661 = vpack.c.b16 %v1645, %v1644
    %1678 = vmatprep.subr.bf16.mxu0 0
    %1679 = vmatpush1.bf16.msra.mxu0 %v1646
    %1680 = vmatprep.subr.bf16.mxu0 0
    %1681 = vmatpush1.bf16.msra.mxu0 %v1647
    %1682 = vmatprep.subr.bf16.mxu0 0
    %1683 = vmatpush1.bf16.msra.mxu0 %v1648
    %1684 = vmatprep.subr.bf16.mxu0 0
    %1685 = vmatpush1.bf16.msra.mxu0 %v1649
    %1686 = vmatprep.subr.bf16.mxu0 0
    %1687 = vmatpush1.bf16.msra.mxu0 %v1650
    %1688 = vmatprep.subr.bf16.mxu0 0
    %1689 = vmatpush1.bf16.msra.mxu0 %v1651
    %1690 = vmatprep.subr.bf16.mxu0 0
    %1691 = vmatpush1.bf16.msra.mxu0 %v1652
    %1692 = vmatprep.subr.bf16.mxu0 0
    %1693 = vmatpush1.bf16.msra.mxu0 %v1653
    %1694 = vmatprep.subr.bf16.mxu0 0
    %1695 = vmatpush1.bf16.msra.mxu0 %v1654
    %1696 = vmatprep.subr.bf16.mxu0 0
    %1697 = vmatpush1.bf16.msra.mxu0 %v1655
    %1698 = vmatprep.subr.bf16.mxu0 0
    %1699 = vmatpush1.bf16.msra.mxu0 %v1656
    %1700 = vmatprep.subr.bf16.mxu0 0
    %1701 = vmatpush1.bf16.msra.mxu0 %v1657
    %1702 = vmatprep.subr.bf16.mxu0 0
    %1703 = vmatpush1.bf16.msra.mxu0 %v1658
    %1704 = vmatprep.subr.bf16.mxu0 0
    %1705 = vmatpush1.bf16.msra.mxu0 %v1659
    %1706 = vmatprep.subr.bf16.mxu0 0
    %1707 = vmatpush1.bf16.msra.mxu0 %v1660
    %1708 = vmatprep.subr.bf16.mxu0 0
    %1709 = vmatpush1.bf16.msra.mxu0 %v1661
    %1710 = vmatprep.mubr.bf16.mxu0 %v1520
    %1711 = vmatmul.mubr.bf16.gmra.mrb[0].mxu0 %v1508
    %v1712 = vpop.f32.mrb[0].mxu0
    %v1713 = vadd.f32 0.0, %v1712
    %v1714 = vpop.f32.mrb[0].mxu0
    %v1715 = vpop.f32.mrb[0].mxu0
    %v1716 = vadd.f32 0.0, %v1715
    %v1717 = vpop.f32.mrb[0].mxu0
    %1718 = vmatprep.mubr.bf16.mxu0 %v1544
    %1719 = vmatmul.mubr.bf16.gmra.mrb[0].mxu0 %v1532
    %v1720 = vpop.f32.mrb[0].mxu0
    %v1721 = vadd.f32 0.0, %v1720
    %v1722 = vpop.f32.mrb[0].mxu0
    %v1723 = vpop.f32.mrb[0].mxu0
    %v1724 = vadd.f32 0.0, %v1723
    %v1725 = vpop.f32.mrb[0].mxu0
    %1726 = vdwg.mxu0
    %v1727 = vadd.f32 %v1475, %v1713
    %v1728 = vadd.f32 %v1478, %v1716
    %v1729 = vadd.f32 %v1483, %v1721
    %v1730 = vadd.f32 %v1486, %v1724
    %v1731 = vld [vmem:[%s8] sm:$0x1]
    %v1733 = vlaneseq
    %v1734 = vshrl.u32 %v1733, 7
    %v1735 = vsub.s32 0, %v1734
    %v1736 = vrot.slane %v1731, %v1735
    %v1738 = vadd.f32 %v1727, %v1736
    %v1739 = vadd.f32 %v1728, %v1736
    %v1740 = vadd.f32 %v1729, %v1736
    %v1741 = vadd.f32 %v1730, %v1736
    %v1742 = vmax.f32 %v1738, 0.0
    %v1743 = vmax.f32 %v1739, 0.0
    %v1744 = vmax.f32 %v1740, 0.0
    %v1745 = vmax.f32 %v1741, 0.0
    %v1746 = vadd.f32 %v1742, %v1743
    %v1747 = vrot.slane %v1746, 4
    %v1748 = vadd.f32 %v1746, %v1747
    %v1749 = vrot.slane %v1748, 2
    %v1750 = vadd.f32 %v1748, %v1749
    %v1751 = vrot.slane %v1750, 1
    %v1752 = vadd.f32 %v1750, %v1751
    %v1753 = vadd.f32 %v1744, %v1745
    %v1754 = vrot.slane %v1753, 4
    %v1755 = vadd.f32 %v1753, %v1754
    %v1756 = vrot.slane %v1755, 2
    %v1757 = vadd.f32 %v1755, %v1756
    %v1758 = vrot.slane %v1757, 1
    %v1759 = vadd.f32 %v1757, %v1758
    %v1760 = vld [vmem:[%s1] sm:$0xff]
    %v1761 = vld [vmem:[%s0] sm:$0x3]
    %v1762 = vtanh.pop %v1761
    %v1763 = vmul.f32 %v1762, 0.5
    %v1764 = vadd.f32 %v1763, 0.5
    %v1765 = vmul.f32 %v1764, 0.0
    %1767 = vrot.lane.b32.xlu0 %v1762, 112
    %v1768 = vpop.permute.xlu0 %1767
    %v1770 = vmul.f32 %v1764, %v1768
    %1772 = vrot.lane.b32.xlu0 %v1770, 8
    %v1773 = vpop.permute.xlu0 %1772
    %v1775 = vadd.f32 %v1765, %v1773
    %v1776 = vtanh.pop %v1775
    %1778 = vrot.lane.b32.xlu0 %v1776, 16
    %v1779 = vpop.permute.xlu0 %1778
    %v1781 = vmul.f32 %v1764, %v1779
    %v1782 = vlaneseq
    %v1783 = vshrl.u32 %v1782, 7
    %v1784 = vsub.s32 0, %v1783
    %v1785 = vrot.slane %v1781, %v1784
    %s1787 = sor.u32 256, 24
    %1788 = vbcast.lane.b32.xlu0 %v1785, %s1787
    %v1789 = vpop.permute.xlu0 %1788
    %v1790 = vlaneseq
    %v1791 = vshrl.u32 %v1790, 7
    %v1792 = vsub.s32 1, %v1791
    %v1793 = vrot.slane %v1781, %v1792
    %s1795 = sor.u32 256, 24
    %1796 = vbcast.lane.b32.xlu0 %v1793, %s1795
    %v1797 = vpop.permute.xlu0 %1796
    %v1798 = vmul.f32 %v1789, %v1760
    %v1799 = vmul.f32 %v1797, %v1760
    %vm1800 = vcmask 261120
    %v1801 = vsel %vm1800, %v1798, 0.0
    %v1802 = vrot.slane %v1801, 4
    %v1803 = vadd.f32 %v1801, %v1802
    %v1804 = vrot.slane %v1803, 2
    %v1805 = vadd.f32 %v1803, %v1804
    %v1806 = vrot.slane %v1805, 1
    %v1807 = vadd.f32 %v1805, %v1806
    %v1808 = vsel %vm1800, %v1799, 0.0
    %v1809 = vrot.slane %v1808, 4
    %v1810 = vadd.f32 %v1808, %v1809
    %v1811 = vrot.slane %v1810, 2
    %v1812 = vadd.f32 %v1810, %v1811
    %v1813 = vrot.slane %v1812, 1
    %v1814 = vadd.f32 %v1812, %v1813
    %s1815 = scalar_lea.vmem %s0, 2
    %v1816 = vld [vmem:[%s1815] sm:$0x3]
    %vm1819 = vcmask 1041409
    %v1820 = vsel %vm1819, %v1814, %v1807
    %v1822 = vadd.f32 %v1816, %v1820
    %v1823 = vtanh.pop %v1822
    %v1824 = vmul.f32 %v1823, 0.5
    %v1825 = vadd.f32 %v1824, 0.5
    %v1826 = vmul.f32 %v1825, %v1775
    %1828 = vrot.lane.b32.xlu0 %v1823, 112
    %v1829 = vpop.permute.xlu0 %1828
    %v1831 = vmul.f32 %v1825, %v1829
    %1833 = vrot.lane.b32.xlu0 %v1831, 8
    %v1834 = vpop.permute.xlu0 %1833
    %v1836 = vadd.f32 %v1826, %v1834
    %v1837 = vtanh.pop %v1836
    %1839 = vrot.lane.b32.xlu0 %v1837, 16
    %v1840 = vpop.permute.xlu0 %1839
    %v1842 = vmul.f32 %v1825, %v1840
    %v1843 = vlaneseq
    %v1844 = vshrl.u32 %v1843, 7
    %v1845 = vsub.s32 0, %v1844
    %v1846 = vrot.slane %v1842, %v1845
    %s1848 = sor.u32 256, 24
    %1849 = vbcast.lane.b32.xlu0 %v1846, %s1848
    %v1850 = vpop.permute.xlu0 %1849
    %v1851 = vlaneseq
    %v1852 = vshrl.u32 %v1851, 7
    %v1853 = vsub.s32 1, %v1852
    %v1854 = vrot.slane %v1842, %v1853
    %s1856 = sor.u32 256, 24
    %1857 = vbcast.lane.b32.xlu0 %v1854, %s1856
    %v1858 = vpop.permute.xlu0 %1857
    %v1859 = vmul.f32 %v1850, %v1760
    %v1860 = vmul.f32 %v1858, %v1760
    %v1861 = vsel %vm1800, %v1859, 0.0
    %v1862 = vrot.slane %v1861, 4
    %v1863 = vadd.f32 %v1861, %v1862
    %v1864 = vrot.slane %v1863, 2
    %v1865 = vadd.f32 %v1863, %v1864
    %v1866 = vrot.slane %v1865, 1
    %v1867 = vadd.f32 %v1865, %v1866
    %v1868 = vsel %vm1800, %v1860, 0.0
    %v1869 = vrot.slane %v1868, 4
    %v1870 = vadd.f32 %v1868, %v1869
    %v1871 = vrot.slane %v1870, 2
    %v1872 = vadd.f32 %v1870, %v1871
    %v1873 = vrot.slane %v1872, 1
    %v1874 = vadd.f32 %v1872, %v1873
    %s1875 = scalar_lea.vmem %s0, 4
    %v1876 = vld [vmem:[%s1875] sm:$0x3]
    %v1879 = vsel %vm1819, %v1874, %v1867
    %v1881 = vadd.f32 %v1876, %v1879
    %v1882 = vtanh.pop %v1881
    %v1883 = vmul.f32 %v1882, 0.5
    %v1884 = vadd.f32 %v1883, 0.5
    %v1885 = vmul.f32 %v1884, %v1836
    %1887 = vrot.lane.b32.xlu0 %v1882, 112
    %v1888 = vpop.permute.xlu0 %1887
    %v1890 = vmul.f32 %v1884, %v1888
    %1892 = vrot.lane.b32.xlu0 %v1890, 8
    %v1893 = vpop.permute.xlu0 %1892
    %v1895 = vadd.f32 %v1885, %v1893
    %v1896 = vtanh.pop %v1895
    %1898 = vrot.lane.b32.xlu0 %v1896, 16
    %v1899 = vpop.permute.xlu0 %1898
    %v1901 = vmul.f32 %v1884, %v1899
    %v1902 = vlaneseq
    %v1903 = vshrl.u32 %v1902, 7
    %v1904 = vsub.s32 0, %v1903
    %v1905 = vrot.slane %v1901, %v1904
    %s1907 = sor.u32 256, 24
    %1908 = vbcast.lane.b32.xlu0 %v1905, %s1907
    %v1909 = vpop.permute.xlu0 %1908
    %v1910 = vlaneseq
    %v1911 = vshrl.u32 %v1910, 7
    %v1912 = vsub.s32 1, %v1911
    %v1913 = vrot.slane %v1901, %v1912
    %s1915 = sor.u32 256, 24
    %1916 = vbcast.lane.b32.xlu0 %v1913, %s1915
    %v1917 = vpop.permute.xlu0 %1916
    %v1918 = vmul.f32 %v1909, %v1760
    %v1919 = vmul.f32 %v1917, %v1760
    %v1920 = vsel %vm1800, %v1918, 0.0
    %v1921 = vrot.slane %v1920, 4
    %v1922 = vadd.f32 %v1920, %v1921
    %v1923 = vrot.slane %v1922, 2
    %v1924 = vadd.f32 %v1922, %v1923
    %v1925 = vrot.slane %v1924, 1
    %v1926 = vadd.f32 %v1924, %v1925
    %v1927 = vsel %vm1800, %v1919, 0.0
    %v1928 = vrot.slane %v1927, 4
    %v1929 = vadd.f32 %v1927, %v1928
    %v1930 = vrot.slane %v1929, 2
    %v1931 = vadd.f32 %v1929, %v1930
    %v1932 = vrot.slane %v1931, 1
    %v1933 = vadd.f32 %v1931, %v1932
    %s1934 = scalar_lea.vmem %s0, 6
    %v1935 = vld [vmem:[%s1934] sm:$0x3]
    %v1938 = vsel %vm1819, %v1933, %v1926
    %v1940 = vadd.f32 %v1935, %v1938
    %v1941 = vtanh.pop %v1940
    %v1942 = vmul.f32 %v1941, 0.5
    %v1943 = vadd.f32 %v1942, 0.5
    %v1944 = vmul.f32 %v1943, %v1895
    %1946 = vrot.lane.b32.xlu0 %v1941, 112
    %v1947 = vpop.permute.xlu0 %1946
    %v1949 = vmul.f32 %v1943, %v1947
    %1951 = vrot.lane.b32.xlu0 %v1949, 8
    %v1952 = vpop.permute.xlu0 %1951
    %v1954 = vadd.f32 %v1944, %v1952
    %v1955 = vtanh.pop %v1954
    %1957 = vrot.lane.b32.xlu0 %v1955, 16
    %v1958 = vpop.permute.xlu0 %1957
    %v1960 = vmul.f32 %v1943, %v1958
    %v1961 = vlaneseq
    %v1962 = vshrl.u32 %v1961, 7
    %v1963 = vsub.s32 0, %v1962
    %v1964 = vrot.slane %v1960, %v1963
    %s1966 = sor.u32 256, 24
    %1967 = vbcast.lane.b32.xlu0 %v1964, %s1966
    %v1968 = vpop.permute.xlu0 %1967
    %v1969 = vlaneseq
    %v1970 = vshrl.u32 %v1969, 7
    %v1971 = vsub.s32 1, %v1970
    %v1972 = vrot.slane %v1960, %v1971
    %s1974 = sor.u32 256, 24
    %1975 = vbcast.lane.b32.xlu0 %v1972, %s1974
    %v1976 = vpop.permute.xlu0 %1975
    %v1977 = vmul.f32 %v1968, %v1760
    %v1978 = vmul.f32 %v1976, %v1760
    %v1979 = vsel %vm1800, %v1977, 0.0
    %v1980 = vrot.slane %v1979, 4
    %v1981 = vadd.f32 %v1979, %v1980
    %v1982 = vrot.slane %v1981, 2
    %v1983 = vadd.f32 %v1981, %v1982
    %v1984 = vrot.slane %v1983, 1
    %v1985 = vadd.f32 %v1983, %v1984
    %v1986 = vsel %vm1800, %v1978, 0.0
    %v1987 = vrot.slane %v1986, 4
    %v1988 = vadd.f32 %v1986, %v1987
    %v1989 = vrot.slane %v1988, 2
    %v1990 = vadd.f32 %v1988, %v1989
    %v1991 = vrot.slane %v1990, 1
    %v1992 = vadd.f32 %v1990, %v1991
    %s1993 = scalar_lea.vmem %s0, 8
    %v1994 = vld [vmem:[%s1993] sm:$0x3]
    %v1997 = vsel %vm1819, %v1992, %v1985
    %v1999 = vadd.f32 %v1994, %v1997
    %v2000 = vtanh.pop %v1999
    %v2001 = vmul.f32 %v2000, 0.5
    %v2002 = vadd.f32 %v2001, 0.5
    %v2003 = vmul.f32 %v2002, %v1954
    %2005 = vrot.lane.b32.xlu0 %v2000, 112
    %v2006 = vpop.permute.xlu0 %2005
    %v2008 = vmul.f32 %v2002, %v2006
    %2010 = vrot.lane.b32.xlu0 %v2008, 8
    %v2011 = vpop.permute.xlu0 %2010
    %v2013 = vadd.f32 %v2003, %v2011
    %v2014 = vtanh.pop %v2013
    %2016 = vrot.lane.b32.xlu0 %v2014, 16
    %v2017 = vpop.permute.xlu0 %2016
    %v2019 = vmul.f32 %v2002, %v2017
    %v2020 = vlaneseq
    %v2021 = vshrl.u32 %v2020, 7
    %v2022 = vsub.s32 0, %v2021
    %v2023 = vrot.slane %v2019, %v2022
    %s2025 = sor.u32 256, 24
    %2026 = vbcast.lane.b32.xlu0 %v2023, %s2025
    %v2027 = vpop.permute.xlu0 %2026
    %v2028 = vlaneseq
    %v2029 = vshrl.u32 %v2028, 7
    %v2030 = vsub.s32 1, %v2029
    %v2031 = vrot.slane %v2019, %v2030
    %s2033 = sor.u32 256, 24
    %2034 = vbcast.lane.b32.xlu0 %v2031, %s2033
    %v2035 = vpop.permute.xlu0 %2034
    %v2036 = vmul.f32 %v2027, %v1760
    %v2037 = vmul.f32 %v2035, %v1760
    %v2038 = vsel %vm1800, %v2036, 0.0
    %v2039 = vrot.slane %v2038, 4
    %v2040 = vadd.f32 %v2038, %v2039
    %v2041 = vrot.slane %v2040, 2
    %v2042 = vadd.f32 %v2040, %v2041
    %v2043 = vrot.slane %v2042, 1
    %v2044 = vadd.f32 %v2042, %v2043
    %v2045 = vsel %vm1800, %v2037, 0.0
    %v2046 = vrot.slane %v2045, 4
    %v2047 = vadd.f32 %v2045, %v2046
    %v2048 = vrot.slane %v2047, 2
    %v2049 = vadd.f32 %v2047, %v2048
    %v2050 = vrot.slane %v2049, 1
    %v2051 = vadd.f32 %v2049, %v2050
    %s2052 = scalar_lea.vmem %s0, 10
    %v2053 = vld [vmem:[%s2052] sm:$0x3]
    %v2056 = vsel %vm1819, %v2051, %v2044
    %v2058 = vadd.f32 %v2053, %v2056
    %v2059 = vtanh.pop %v2058
    %v2060 = vmul.f32 %v2059, 0.5
    %v2061 = vadd.f32 %v2060, 0.5
    %v2062 = vmul.f32 %v2061, %v2013
    %2064 = vrot.lane.b32.xlu0 %v2059, 112
    %v2065 = vpop.permute.xlu0 %2064
    %v2067 = vmul.f32 %v2061, %v2065
    %2069 = vrot.lane.b32.xlu0 %v2067, 8
    %v2070 = vpop.permute.xlu0 %2069
    %v2072 = vadd.f32 %v2062, %v2070
    %v2073 = vtanh.pop %v2072
    %2075 = vrot.lane.b32.xlu0 %v2073, 16
    %v2076 = vpop.permute.xlu0 %2075
    %v2078 = vmul.f32 %v2061, %v2076
    %v2079 = vlaneseq
    %v2080 = vshrl.u32 %v2079, 7
    %v2081 = vsub.s32 0, %v2080
    %v2082 = vrot.slane %v2078, %v2081
    %s2084 = sor.u32 256, 24
    %2085 = vbcast.lane.b32.xlu0 %v2082, %s2084
    %v2086 = vpop.permute.xlu0 %2085
    %v2087 = vlaneseq
    %v2088 = vshrl.u32 %v2087, 7
    %v2089 = vsub.s32 1, %v2088
    %v2090 = vrot.slane %v2078, %v2089
    %s2092 = sor.u32 256, 24
    %2093 = vbcast.lane.b32.xlu0 %v2090, %s2092
    %v2094 = vpop.permute.xlu0 %2093
    %v2095 = vmul.f32 %v2086, %v1760
    %v2096 = vmul.f32 %v2094, %v1760
    %v2097 = vsel %vm1800, %v2095, 0.0
    %v2098 = vrot.slane %v2097, 4
    %v2099 = vadd.f32 %v2097, %v2098
    %v2100 = vrot.slane %v2099, 2
    %v2101 = vadd.f32 %v2099, %v2100
    %v2102 = vrot.slane %v2101, 1
    %v2103 = vadd.f32 %v2101, %v2102
    %v2104 = vsel %vm1800, %v2096, 0.0
    %v2105 = vrot.slane %v2104, 4
    %v2106 = vadd.f32 %v2104, %v2105
    %v2107 = vrot.slane %v2106, 2
    %v2108 = vadd.f32 %v2106, %v2107
    %v2109 = vrot.slane %v2108, 1
    %v2110 = vadd.f32 %v2108, %v2109
    %s2111 = scalar_lea.vmem %s0, 12
    %v2112 = vld [vmem:[%s2111] sm:$0x3]
    %v2115 = vsel %vm1819, %v2110, %v2103
    %v2117 = vadd.f32 %v2112, %v2115
    %v2118 = vtanh.pop %v2117
    %v2119 = vmul.f32 %v2118, 0.5
    %v2120 = vadd.f32 %v2119, 0.5
    %v2121 = vmul.f32 %v2120, %v2072
    %2123 = vrot.lane.b32.xlu0 %v2118, 112
    %v2124 = vpop.permute.xlu0 %2123
    %v2126 = vmul.f32 %v2120, %v2124
    %2128 = vrot.lane.b32.xlu0 %v2126, 8
    %v2129 = vpop.permute.xlu0 %2128
    %v2131 = vadd.f32 %v2121, %v2129
    %v2132 = vtanh.pop %v2131
    %2134 = vrot.lane.b32.xlu0 %v2132, 16
    %v2135 = vpop.permute.xlu0 %2134
    %v2137 = vmul.f32 %v2120, %v2135
    %v2138 = vlaneseq
    %v2139 = vshrl.u32 %v2138, 7
    %v2140 = vsub.s32 0, %v2139
    %v2141 = vrot.slane %v2137, %v2140
    %s2143 = sor.u32 256, 24
    %2144 = vbcast.lane.b32.xlu0 %v2141, %s2143
    %v2145 = vpop.permute.xlu0 %2144
    %v2146 = vlaneseq
    %v2147 = vshrl.u32 %v2146, 7
    %v2148 = vsub.s32 1, %v2147
    %v2149 = vrot.slane %v2137, %v2148
    %s2151 = sor.u32 256, 24
    %2152 = vbcast.lane.b32.xlu0 %v2149, %s2151
    %v2153 = vpop.permute.xlu0 %2152
    %v2154 = vmul.f32 %v2145, %v1760
    %v2155 = vmul.f32 %v2153, %v1760
    %v2156 = vsel %vm1800, %v2154, 0.0
    %v2157 = vrot.slane %v2156, 4
    %v2158 = vadd.f32 %v2156, %v2157
    %v2159 = vrot.slane %v2158, 2
    %v2160 = vadd.f32 %v2158, %v2159
    %v2161 = vrot.slane %v2160, 1
    %v2162 = vadd.f32 %v2160, %v2161
    %v2163 = vsel %vm1800, %v2155, 0.0
    %v2164 = vrot.slane %v2163, 4
    %v2165 = vadd.f32 %v2163, %v2164
    %v2166 = vrot.slane %v2165, 2
    %v2167 = vadd.f32 %v2165, %v2166
    %v2168 = vrot.slane %v2167, 1
    %v2169 = vadd.f32 %v2167, %v2168
    %s2170 = scalar_lea.vmem %s0, 14
    %v2171 = vld [vmem:[%s2170] sm:$0x3]
    %v2174 = vsel %vm1819, %v2169, %v2162
    %v2176 = vadd.f32 %v2171, %v2174
    %v2177 = vtanh.pop %v2176
    %v2178 = vmul.f32 %v2177, 0.5
    %v2179 = vadd.f32 %v2178, 0.5
    %v2180 = vmul.f32 %v2179, %v2131
    %2182 = vrot.lane.b32.xlu0 %v2177, 112
    %v2183 = vpop.permute.xlu0 %2182
    %v2185 = vmul.f32 %v2179, %v2183
    %2187 = vrot.lane.b32.xlu0 %v2185, 8
    %v2188 = vpop.permute.xlu0 %2187
    %v2190 = vadd.f32 %v2180, %v2188
    %v2191 = vtanh.pop %v2190
    %2193 = vrot.lane.b32.xlu0 %v2191, 16
    %v2194 = vpop.permute.xlu0 %2193
    %v2196 = vmul.f32 %v2179, %v2194
    %v2197 = vlaneseq
    %v2198 = vshrl.u32 %v2197, 7
    %v2199 = vsub.s32 0, %v2198
    %v2200 = vrot.slane %v2196, %v2199
    %s2202 = sor.u32 256, 24
    %2203 = vbcast.lane.b32.xlu0 %v2200, %s2202
    %v2204 = vpop.permute.xlu0 %2203
    %v2205 = vlaneseq
    %v2206 = vshrl.u32 %v2205, 7
    %v2207 = vsub.s32 1, %v2206
    %v2208 = vrot.slane %v2196, %v2207
    %s2210 = sor.u32 256, 24
    %2211 = vbcast.lane.b32.xlu0 %v2208, %s2210
    %v2212 = vpop.permute.xlu0 %2211
    %v2213 = vmul.f32 %v2204, %v1760
    %v2214 = vmul.f32 %v2212, %v1760
    %v2215 = vsel %vm1800, %v2213, 0.0
    %v2216 = vrot.slane %v2215, 4
    %v2217 = vadd.f32 %v2215, %v2216
    %v2218 = vrot.slane %v2217, 2
    %v2219 = vadd.f32 %v2217, %v2218
    %v2220 = vrot.slane %v2219, 1
    %v2221 = vadd.f32 %v2219, %v2220
    %v2222 = vsel %vm1800, %v2214, 0.0
    %v2223 = vrot.slane %v2222, 4
    %v2224 = vadd.f32 %v2222, %v2223
    %v2225 = vrot.slane %v2224, 2
    %v2226 = vadd.f32 %v2224, %v2225
    %v2227 = vrot.slane %v2226, 1
    %v2228 = vadd.f32 %v2226, %v2227
    %s2229 = scalar_lea.vmem %s0, 16
    %v2230 = vld [vmem:[%s2229] sm:$0x3]
    %v2233 = vsel %vm1819, %v2228, %v2221
    %v2235 = vadd.f32 %v2230, %v2233
    %v2236 = vtanh.pop %v2235
    %v2237 = vmul.f32 %v2236, 0.5
    %v2238 = vadd.f32 %v2237, 0.5
    %v2239 = vmul.f32 %v2238, %v2190
    %2241 = vrot.lane.b32.xlu0 %v2236, 112
    %v2242 = vpop.permute.xlu0 %2241
    %v2244 = vmul.f32 %v2238, %v2242
    %2246 = vrot.lane.b32.xlu0 %v2244, 8
    %v2247 = vpop.permute.xlu0 %2246
    %v2249 = vadd.f32 %v2239, %v2247
    %v2250 = vtanh.pop %v2249
    %2252 = vrot.lane.b32.xlu0 %v2250, 16
    %v2253 = vpop.permute.xlu0 %2252
    %v2255 = vmul.f32 %v2238, %v2253
    %v2256 = vlaneseq
    %v2257 = vshrl.u32 %v2256, 7
    %v2258 = vsub.s32 0, %v2257
    %v2259 = vrot.slane %v2255, %v2258
    %s2261 = sor.u32 256, 24
    %2262 = vbcast.lane.b32.xlu0 %v2259, %s2261
    %v2263 = vpop.permute.xlu0 %2262
    %v2264 = vlaneseq
    %v2265 = vshrl.u32 %v2264, 7
    %v2266 = vsub.s32 1, %v2265
    %v2267 = vrot.slane %v2255, %v2266
    %s2269 = sor.u32 256, 24
    %2270 = vbcast.lane.b32.xlu0 %v2267, %s2269
    %v2271 = vpop.permute.xlu0 %2270
    %v2272 = vmul.f32 %v2263, %v1760
    %v2273 = vmul.f32 %v2271, %v1760
    %v2274 = vsel %vm1800, %v2272, 0.0
    %v2275 = vrot.slane %v2274, 4
    %v2276 = vadd.f32 %v2274, %v2275
    %v2277 = vrot.slane %v2276, 2
    %v2278 = vadd.f32 %v2276, %v2277
    %v2279 = vrot.slane %v2278, 1
    %v2280 = vadd.f32 %v2278, %v2279
    %v2281 = vsel %vm1800, %v2273, 0.0
    %v2282 = vrot.slane %v2281, 4
    %v2283 = vadd.f32 %v2281, %v2282
    %v2284 = vrot.slane %v2283, 2
    %v2285 = vadd.f32 %v2283, %v2284
    %v2286 = vrot.slane %v2285, 1
    %v2287 = vadd.f32 %v2285, %v2286
    %s2288 = scalar_lea.vmem %s0, 18
    %v2289 = vld [vmem:[%s2288] sm:$0x3]
    %v2292 = vsel %vm1819, %v2287, %v2280
    %v2294 = vadd.f32 %v2289, %v2292
    %v2295 = vtanh.pop %v2294
    %v2296 = vmul.f32 %v2295, 0.5
    %v2297 = vadd.f32 %v2296, 0.5
    %v2298 = vmul.f32 %v2297, %v2249
    %2300 = vrot.lane.b32.xlu0 %v2295, 112
    %v2301 = vpop.permute.xlu0 %2300
    %v2303 = vmul.f32 %v2297, %v2301
    %2305 = vrot.lane.b32.xlu0 %v2303, 8
    %v2306 = vpop.permute.xlu0 %2305
    %v2308 = vadd.f32 %v2298, %v2306
    %v2309 = vtanh.pop %v2308
    %2311 = vrot.lane.b32.xlu0 %v2309, 16
    %v2312 = vpop.permute.xlu0 %2311
    %v2314 = vmul.f32 %v2297, %v2312
    %v2315 = vlaneseq
    %v2316 = vshrl.u32 %v2315, 7
    %v2317 = vsub.s32 0, %v2316
    %v2318 = vrot.slane %v2314, %v2317
    %s2320 = sor.u32 256, 24
    %2321 = vbcast.lane.b32.xlu0 %v2318, %s2320
    %v2322 = vpop.permute.xlu0 %2321
    %v2323 = vlaneseq
    %v2324 = vshrl.u32 %v2323, 7
    %v2325 = vsub.s32 1, %v2324
    %v2326 = vrot.slane %v2314, %v2325
    %s2328 = sor.u32 256, 24
    %2329 = vbcast.lane.b32.xlu0 %v2326, %s2328
    %v2330 = vpop.permute.xlu0 %2329
    %v2331 = vmul.f32 %v2322, %v1760
    %v2332 = vmul.f32 %v2330, %v1760
    %v2333 = vsel %vm1800, %v2331, 0.0
    %v2334 = vrot.slane %v2333, 4
    %v2335 = vadd.f32 %v2333, %v2334
    %v2336 = vrot.slane %v2335, 2
    %v2337 = vadd.f32 %v2335, %v2336
    %v2338 = vrot.slane %v2337, 1
    %v2339 = vadd.f32 %v2337, %v2338
    %v2340 = vsel %vm1800, %v2332, 0.0
    %v2341 = vrot.slane %v2340, 4
    %v2342 = vadd.f32 %v2340, %v2341
    %v2343 = vrot.slane %v2342, 2
    %v2344 = vadd.f32 %v2342, %v2343
    %v2345 = vrot.slane %v2344, 1
    %v2346 = vadd.f32 %v2344, %v2345
    %s2347 = scalar_lea.vmem %s0, 20
    %v2348 = vld [vmem:[%s2347] sm:$0x3]
    %v2351 = vsel %vm1819, %v2346, %v2339
    %v2353 = vadd.f32 %v2348, %v2351
    %v2354 = vtanh.pop %v2353
    %v2355 = vmul.f32 %v2354, 0.5
    %v2356 = vadd.f32 %v2355, 0.5
    %v2357 = vmul.f32 %v2356, %v2308
    %2359 = vrot.lane.b32.xlu0 %v2354, 112
    %v2360 = vpop.permute.xlu0 %2359
    %v2362 = vmul.f32 %v2356, %v2360
    %2364 = vrot.lane.b32.xlu0 %v2362, 8
    %v2365 = vpop.permute.xlu0 %2364
    %v2367 = vadd.f32 %v2357, %v2365
    %v2368 = vtanh.pop %v2367
    %2370 = vrot.lane.b32.xlu0 %v2368, 16
    %v2371 = vpop.permute.xlu0 %2370
    %v2373 = vmul.f32 %v2356, %v2371
    %v2374 = vlaneseq
    %v2375 = vshrl.u32 %v2374, 7
    %v2376 = vsub.s32 0, %v2375
    %v2377 = vrot.slane %v2373, %v2376
    %s2379 = sor.u32 256, 24
    %2380 = vbcast.lane.b32.xlu0 %v2377, %s2379
    %v2381 = vpop.permute.xlu0 %2380
    %v2382 = vlaneseq
    %v2383 = vshrl.u32 %v2382, 7
    %v2384 = vsub.s32 1, %v2383
    %v2385 = vrot.slane %v2373, %v2384
    %s2387 = sor.u32 256, 24
    %2388 = vbcast.lane.b32.xlu0 %v2385, %s2387
    %v2389 = vpop.permute.xlu0 %2388
    %v2390 = vmul.f32 %v2381, %v1760
    %v2391 = vmul.f32 %v2389, %v1760
    %v2392 = vsel %vm1800, %v2390, 0.0
    %v2393 = vrot.slane %v2392, 4
    %v2394 = vadd.f32 %v2392, %v2393
    %v2395 = vrot.slane %v2394, 2
    %v2396 = vadd.f32 %v2394, %v2395
    %v2397 = vrot.slane %v2396, 1
    %v2398 = vadd.f32 %v2396, %v2397
    %v2399 = vsel %vm1800, %v2391, 0.0
    %v2400 = vrot.slane %v2399, 4
    %v2401 = vadd.f32 %v2399, %v2400
    %v2402 = vrot.slane %v2401, 2
    %v2403 = vadd.f32 %v2401, %v2402
    %v2404 = vrot.slane %v2403, 1
    %v2405 = vadd.f32 %v2403, %v2404
    %s2406 = scalar_lea.vmem %s0, 22
    %v2407 = vld [vmem:[%s2406] sm:$0x3]
    %v2410 = vsel %vm1819, %v2405, %v2398
    %v2412 = vadd.f32 %v2407, %v2410
    %v2413 = vtanh.pop %v2412
    %v2414 = vmul.f32 %v2413, 0.5
    %v2415 = vadd.f32 %v2414, 0.5
    %v2416 = vmul.f32 %v2415, %v2367
    %2418 = vrot.lane.b32.xlu0 %v2413, 112
    %v2419 = vpop.permute.xlu0 %2418
    %v2421 = vmul.f32 %v2415, %v2419
    %2423 = vrot.lane.b32.xlu0 %v2421, 8
    %v2424 = vpop.permute.xlu0 %2423
    %v2426 = vadd.f32 %v2416, %v2424
    %v2427 = vtanh.pop %v2426
    %2429 = vrot.lane.b32.xlu0 %v2427, 16
    %v2430 = vpop.permute.xlu0 %2429
    %v2432 = vmul.f32 %v2415, %v2430
    %v2433 = vlaneseq
    %v2434 = vshrl.u32 %v2433, 7
    %v2435 = vsub.s32 0, %v2434
    %v2436 = vrot.slane %v2432, %v2435
    %s2438 = sor.u32 256, 24
    %2439 = vbcast.lane.b32.xlu0 %v2436, %s2438
    %v2440 = vpop.permute.xlu0 %2439
    %v2441 = vlaneseq
    %v2442 = vshrl.u32 %v2441, 7
    %v2443 = vsub.s32 1, %v2442
    %v2444 = vrot.slane %v2432, %v2443
    %s2446 = sor.u32 256, 24
    %2447 = vbcast.lane.b32.xlu0 %v2444, %s2446
    %v2448 = vpop.permute.xlu0 %2447
    %v2449 = vmul.f32 %v2440, %v1760
    %v2450 = vmul.f32 %v2448, %v1760
    %v2451 = vsel %vm1800, %v2449, 0.0
    %v2452 = vrot.slane %v2451, 4
    %v2453 = vadd.f32 %v2451, %v2452
    %v2454 = vrot.slane %v2453, 2
    %v2455 = vadd.f32 %v2453, %v2454
    %v2456 = vrot.slane %v2455, 1
    %v2457 = vadd.f32 %v2455, %v2456
    %v2458 = vsel %vm1800, %v2450, 0.0
    %v2459 = vrot.slane %v2458, 4
    %v2460 = vadd.f32 %v2458, %v2459
    %v2461 = vrot.slane %v2460, 2
    %v2462 = vadd.f32 %v2460, %v2461
    %v2463 = vrot.slane %v2462, 1
    %v2464 = vadd.f32 %v2462, %v2463
    %s2465 = scalar_lea.vmem %s0, 24
    %v2466 = vld [vmem:[%s2465] sm:$0x3]
    %v2469 = vsel %vm1819, %v2464, %v2457
    %v2471 = vadd.f32 %v2466, %v2469
    %v2472 = vtanh.pop %v2471
    %v2473 = vmul.f32 %v2472, 0.5
    %v2474 = vadd.f32 %v2473, 0.5
    %v2475 = vmul.f32 %v2474, %v2426
    %2477 = vrot.lane.b32.xlu0 %v2472, 112
    %v2478 = vpop.permute.xlu0 %2477
    %v2480 = vmul.f32 %v2474, %v2478
    %2482 = vrot.lane.b32.xlu0 %v2480, 8
    %v2483 = vpop.permute.xlu0 %2482
    %v2485 = vadd.f32 %v2475, %v2483
    %v2486 = vtanh.pop %v2485
    %2488 = vrot.lane.b32.xlu0 %v2486, 16
    %v2489 = vpop.permute.xlu0 %2488
    %v2491 = vmul.f32 %v2474, %v2489
    %v2492 = vlaneseq
    %v2493 = vshrl.u32 %v2492, 7
    %v2494 = vsub.s32 0, %v2493
    %v2495 = vrot.slane %v2491, %v2494
    %s2497 = sor.u32 256, 24
    %2498 = vbcast.lane.b32.xlu0 %v2495, %s2497
    %v2499 = vpop.permute.xlu0 %2498
    %v2500 = vlaneseq
    %v2501 = vshrl.u32 %v2500, 7
    %v2502 = vsub.s32 1, %v2501
    %v2503 = vrot.slane %v2491, %v2502
    %s2505 = sor.u32 256, 24
    %2506 = vbcast.lane.b32.xlu0 %v2503, %s2505
    %v2507 = vpop.permute.xlu0 %2506
    %v2508 = vmul.f32 %v2499, %v1760
    %v2509 = vmul.f32 %v2507, %v1760
    %v2510 = vsel %vm1800, %v2508, 0.0
    %v2511 = vrot.slane %v2510, 4
    %v2512 = vadd.f32 %v2510, %v2511
    %v2513 = vrot.slane %v2512, 2
    %v2514 = vadd.f32 %v2512, %v2513
    %v2515 = vrot.slane %v2514, 1
    %v2516 = vadd.f32 %v2514, %v2515
    %v2517 = vsel %vm1800, %v2509, 0.0
    %v2518 = vrot.slane %v2517, 4
    %v2519 = vadd.f32 %v2517, %v2518
    %v2520 = vrot.slane %v2519, 2
    %v2521 = vadd.f32 %v2519, %v2520
    %v2522 = vrot.slane %v2521, 1
    %v2523 = vadd.f32 %v2521, %v2522
    %s2524 = scalar_lea.vmem %s0, 26
    %v2525 = vld [vmem:[%s2524] sm:$0x3]
    %v2528 = vsel %vm1819, %v2523, %v2516
    %v2530 = vadd.f32 %v2525, %v2528
    %v2531 = vtanh.pop %v2530
    %v2532 = vmul.f32 %v2531, 0.5
    %v2533 = vadd.f32 %v2532, 0.5
    %v2534 = vmul.f32 %v2533, %v2485
    %2536 = vrot.lane.b32.xlu0 %v2531, 112
    %v2537 = vpop.permute.xlu0 %2536
    %v2539 = vmul.f32 %v2533, %v2537
    %2541 = vrot.lane.b32.xlu0 %v2539, 8
    %v2542 = vpop.permute.xlu0 %2541
    %v2544 = vadd.f32 %v2534, %v2542
    %v2545 = vtanh.pop %v2544
    %2547 = vrot.lane.b32.xlu0 %v2545, 16
    %v2548 = vpop.permute.xlu0 %2547
    %v2550 = vmul.f32 %v2533, %v2548
    %v2551 = vlaneseq
    %v2552 = vshrl.u32 %v2551, 7
    %v2553 = vsub.s32 0, %v2552
    %v2554 = vrot.slane %v2550, %v2553
    %s2556 = sor.u32 256, 24
    %2557 = vbcast.lane.b32.xlu0 %v2554, %s2556
    %v2558 = vpop.permute.xlu0 %2557
    %v2559 = vlaneseq
    %v2560 = vshrl.u32 %v2559, 7
    %v2561 = vsub.s32 1, %v2560
    %v2562 = vrot.slane %v2550, %v2561
    %s2564 = sor.u32 256, 24
    %2565 = vbcast.lane.b32.xlu0 %v2562, %s2564
    %v2566 = vpop.permute.xlu0 %2565
    %v2567 = vmul.f32 %v2558, %v1760
    %v2568 = vmul.f32 %v2566, %v1760
    %v2569 = vsel %vm1800, %v2567, 0.0
    %v2570 = vrot.slane %v2569, 4
    %v2571 = vadd.f32 %v2569, %v2570
    %v2572 = vrot.slane %v2571, 2
    %v2573 = vadd.f32 %v2571, %v2572
    %v2574 = vrot.slane %v2573, 1
    %v2575 = vadd.f32 %v2573, %v2574
    %v2576 = vsel %vm1800, %v2568, 0.0
    %v2577 = vrot.slane %v2576, 4
    %v2578 = vadd.f32 %v2576, %v2577
    %v2579 = vrot.slane %v2578, 2
    %v2580 = vadd.f32 %v2578, %v2579
    %v2581 = vrot.slane %v2580, 1
    %v2582 = vadd.f32 %v2580, %v2581
    %s2583 = scalar_lea.vmem %s0, 28
    %v2584 = vld [vmem:[%s2583] sm:$0x3]
    %v2587 = vsel %vm1819, %v2582, %v2575
    %v2589 = vadd.f32 %v2584, %v2587
    %v2590 = vtanh.pop %v2589
    %v2591 = vmul.f32 %v2590, 0.5
    %v2592 = vadd.f32 %v2591, 0.5
    %v2593 = vmul.f32 %v2592, %v2544
    %2595 = vrot.lane.b32.xlu0 %v2590, 112
    %v2596 = vpop.permute.xlu0 %2595
    %v2598 = vmul.f32 %v2592, %v2596
    %2600 = vrot.lane.b32.xlu0 %v2598, 8
    %v2601 = vpop.permute.xlu0 %2600
    %v2603 = vadd.f32 %v2593, %v2601
    %v2604 = vtanh.pop %v2603
    %2606 = vrot.lane.b32.xlu0 %v2604, 16
    %v2607 = vpop.permute.xlu0 %2606
    %v2609 = vmul.f32 %v2592, %v2607
    %v2610 = vlaneseq
    %v2611 = vshrl.u32 %v2610, 7
    %v2612 = vsub.s32 0, %v2611
    %v2613 = vrot.slane %v2609, %v2612
    %s2615 = sor.u32 256, 24
    %2616 = vbcast.lane.b32.xlu0 %v2613, %s2615
    %v2617 = vpop.permute.xlu0 %2616
    %v2618 = vlaneseq
    %v2619 = vshrl.u32 %v2618, 7
    %v2620 = vsub.s32 1, %v2619
    %v2621 = vrot.slane %v2609, %v2620
    %s2623 = sor.u32 256, 24
    %2624 = vbcast.lane.b32.xlu0 %v2621, %s2623
    %v2625 = vpop.permute.xlu0 %2624
    %v2626 = vmul.f32 %v2617, %v1760
    %v2627 = vmul.f32 %v2625, %v1760
    %v2628 = vsel %vm1800, %v2626, 0.0
    %v2629 = vrot.slane %v2628, 4
    %v2630 = vadd.f32 %v2628, %v2629
    %v2631 = vrot.slane %v2630, 2
    %v2632 = vadd.f32 %v2630, %v2631
    %v2633 = vrot.slane %v2632, 1
    %v2634 = vadd.f32 %v2632, %v2633
    %v2635 = vsel %vm1800, %v2627, 0.0
    %v2636 = vrot.slane %v2635, 4
    %v2637 = vadd.f32 %v2635, %v2636
    %v2638 = vrot.slane %v2637, 2
    %v2639 = vadd.f32 %v2637, %v2638
    %v2640 = vrot.slane %v2639, 1
    %v2641 = vadd.f32 %v2639, %v2640
    %s2642 = scalar_lea.vmem %s0, 30
    %v2643 = vld [vmem:[%s2642] sm:$0x3]
    %v2646 = vsel %vm1819, %v2641, %v2634
    %v2648 = vadd.f32 %v2643, %v2646
    %v2649 = vtanh.pop %v2648
    %v2650 = vmul.f32 %v2649, 0.5
    %v2651 = vadd.f32 %v2650, 0.5
    %v2652 = vmul.f32 %v2651, %v2603
    %2654 = vrot.lane.b32.xlu0 %v2649, 112
    %v2655 = vpop.permute.xlu0 %2654
    %v2657 = vmul.f32 %v2651, %v2655
    %2659 = vrot.lane.b32.xlu0 %v2657, 8
    %v2660 = vpop.permute.xlu0 %2659
    %v2662 = vadd.f32 %v2652, %v2660
    %v2663 = vtanh.pop %v2662
    %2665 = vrot.lane.b32.xlu0 %v2663, 16
    %v2666 = vpop.permute.xlu0 %2665
    %v2668 = vmul.f32 %v2651, %v2666
    %v2669 = vld [vmem:[%s9] sm:$0xff]
    %v2670 = vld [vmem:[%s10] sm:$0xff]
    %v2671 = vld [vmem:[%s10 + $0x8] sm:$0xff]
    %v2672 = vld [vmem:[%s10 + $0x10] sm:$0xff]
    %v2673 = vld [vmem:[%s10 + $0x18] sm:$0xff]
    %v2674 = vld [vmem:[%s10 + $0x20] sm:$0xff]
    %v2675 = vld [vmem:[%s10 + $0x28] sm:$0xff]
    %v2676 = vld [vmem:[%s10 + $0x30] sm:$0xff]
    %v2677 = vld [vmem:[%s10 + $0x38] sm:$0xff]
    %v2678 = vld [vmem:[%s10 + $0x40] sm:$0xff]
    %v2679 = vld [vmem:[%s10 + $0x48] sm:$0xff]
    %v2680 = vld [vmem:[%s10 + $0x50] sm:$0xff]
    %v2681 = vld [vmem:[%s10 + $0x58] sm:$0xff]
    %v2682 = vld [vmem:[%s10 + $0x60] sm:$0xff]
    %v2683 = vld [vmem:[%s10 + $0x68] sm:$0xff]
    %v2684 = vld [vmem:[%s10 + $0x70] sm:$0xff]
    %v2685 = vld [vmem:[%s10 + $0x78] sm:$0xff]
    %v2688 = vsel %vm1819, %v1759, %v1752
    %2690 = vmatprep.subr.mxu0 0.0
    %2691 = vmatpush1.msra.mxu0 %v2670
    %2692 = vmatprep.subr.mxu0 0.0
    %2693 = vmatpush1.msra.mxu0 %v2671
    %2694 = vmatprep.subr.mxu0 0.0
    %2695 = vmatpush1.msra.mxu0 %v2672
    %2696 = vmatprep.subr.mxu0 0.0
    %2697 = vmatpush1.msra.mxu0 %v2673
    %2698 = vmatprep.subr.mxu0 0.0
    %2699 = vmatpush1.msra.mxu0 %v2674
    %2700 = vmatprep.subr.mxu0 0.0
    %2701 = vmatpush1.msra.mxu0 %v2675
    %2702 = vmatprep.subr.mxu0 0.0
    %2703 = vmatpush1.msra.mxu0 %v2676
    %2704 = vmatprep.subr.mxu0 0.0
    %2705 = vmatpush1.msra.mxu0 %v2677
    %2706 = vmatprep.subr.mxu0 0.0
    %2707 = vmatpush1.msra.mxu0 %v2678
    %2708 = vmatprep.subr.mxu0 0.0
    %2709 = vmatpush1.msra.mxu0 %v2679
    %2710 = vmatprep.subr.mxu0 0.0
    %2711 = vmatpush1.msra.mxu0 %v2680
    %2712 = vmatprep.subr.mxu0 0.0
    %2713 = vmatpush1.msra.mxu0 %v2681
    %2714 = vmatprep.subr.mxu0 0.0
    %2715 = vmatpush1.msra.mxu0 %v2682
    %2716 = vmatprep.subr.mxu0 0.0
    %2717 = vmatpush1.msra.mxu0 %v2683
    %2718 = vmatprep.subr.mxu0 0.0
    %2719 = vmatpush1.msra.mxu0 %v2684
    %2720 = vmatprep.subr.mxu0 0.0
    %2721 = vmatpush1.msra.mxu0 %v2685
    %2722 = vmatprep.subr.mxu0 0.0
    %2723 = vmatpush1.msra.mxu0 0.0
    %2724 = vmatprep.subr.mxu0 0.0
    %2725 = vmatpush1.msra.mxu0 0.0
    %2726 = vmatprep.subr.mxu0 0.0
    %2727 = vmatpush1.msra.mxu0 0.0
    %2728 = vmatprep.subr.mxu0 0.0
    %2729 = vmatpush1.msra.mxu0 0.0
    %2730 = vmatprep.subr.mxu0 0.0
    %2731 = vmatpush1.msra.mxu0 0.0
    %2732 = vmatprep.subr.mxu0 0.0
    %2733 = vmatpush1.msra.mxu0 0.0
    %2734 = vmatprep.subr.mxu0 0.0
    %2735 = vmatpush1.msra.mxu0 0.0
    %2736 = vmatprep.subr.mxu0 0.0
    %2737 = vmatpush1.msra.mxu0 0.0
    %2738 = vmatprep.subr.mxu0 0.0
    %2739 = vmatpush1.msra.mxu0 0.0
    %2740 = vmatprep.subr.mxu0 0.0
    %2741 = vmatpush1.msra.mxu0 0.0
    %2742 = vmatprep.subr.mxu0 0.0
    %2743 = vmatpush1.msra.mxu0 0.0
    %2744 = vmatprep.subr.mxu0 0.0
    %2745 = vmatpush1.msra.mxu0 0.0
    %2746 = vmatprep.subr.mxu0 0.0
    %2747 = vmatpush1.msra.mxu0 0.0
    %2748 = vmatprep.subr.mxu0 0.0
    %2749 = vmatpush1.msra.mxu0 0.0
    %2750 = vmatprep.subr.mxu0 0.0
    %2751 = vmatpush1.msra.mxu0 0.0
    %2752 = vmatprep.subr.mxu0 0.0
    %2753 = vmatpush1.msra.mxu0 0.0
    %2754 = vmatprep.mubr.f32.mxu0 0.0
    %2755 = vmatmul.mubr.f32.gmra.mrb[0].mxu0 %v2688
    %v2756 = vpop.f32.mrb[0].mxu0
    %v2757 = vadd.f32 0.0, %v2756
    %v2758 = vpop.f32.mrb[0].mxu0
    %2759 = vdwg.mxu0
    %2761 = vrot.lane.b32.xlu0 %v2668, 104
    %v2762 = vpop.permute.xlu0 %2761
    %v2763 = vsel %vm93, %v2762, 0
    %2765 = vmatprep.subr.mxu0 0.0
    %2766 = vmatpush1.msra.mxu0 %v2669
    %2767 = vmatprep.subr.mxu0 0.0
    %2768 = vmatpush1.msra.mxu0 0.0
    %2769 = vmatprep.subr.mxu0 0.0
    %2770 = vmatpush1.msra.mxu0 0.0
    %2771 = vmatprep.subr.mxu0 0.0
    %2772 = vmatpush1.msra.mxu0 0.0
    %2773 = vmatprep.subr.mxu0 0.0
    %2774 = vmatpush1.msra.mxu0 0.0
    %2775 = vmatprep.subr.mxu0 0.0
    %2776 = vmatpush1.msra.mxu0 0.0
    %2777 = vmatprep.subr.mxu0 0.0
    %2778 = vmatpush1.msra.mxu0 0.0
    %2779 = vmatprep.subr.mxu0 0.0
    %2780 = vmatpush1.msra.mxu0 0.0
    %2781 = vmatprep.subr.mxu0 0.0
    %2782 = vmatpush1.msra.mxu0 0.0
    %2783 = vmatprep.subr.mxu0 0.0
    %2784 = vmatpush1.msra.mxu0 0.0
    %2785 = vmatprep.subr.mxu0 0.0
    %2786 = vmatpush1.msra.mxu0 0.0
    %2787 = vmatprep.subr.mxu0 0.0
    %2788 = vmatpush1.msra.mxu0 0.0
    %2789 = vmatprep.subr.mxu0 0.0
    %2790 = vmatpush1.msra.mxu0 0.0
    %2791 = vmatprep.subr.mxu0 0.0
    %2792 = vmatpush1.msra.mxu0 0.0
    %2793 = vmatprep.subr.mxu0 0.0
    %2794 = vmatpush1.msra.mxu0 0.0
    %2795 = vmatprep.subr.mxu0 0.0
    %2796 = vmatpush1.msra.mxu0 0.0
    %2797 = vmatprep.subr.mxu0 0.0
    %2798 = vmatpush1.msra.mxu0 0.0
    %2799 = vmatprep.subr.mxu0 0.0
    %2800 = vmatpush1.msra.mxu0 0.0
    %2801 = vmatprep.subr.mxu0 0.0
    %2802 = vmatpush1.msra.mxu0 0.0
    %2803 = vmatprep.subr.mxu0 0.0
    %2804 = vmatpush1.msra.mxu0 0.0
    %2805 = vmatprep.subr.mxu0 0.0
    %2806 = vmatpush1.msra.mxu0 0.0
    %2807 = vmatprep.subr.mxu0 0.0
    %2808 = vmatpush1.msra.mxu0 0.0
    %2809 = vmatprep.subr.mxu0 0.0
    %2810 = vmatpush1.msra.mxu0 0.0
    %2811 = vmatprep.subr.mxu0 0.0
    %2812 = vmatpush1.msra.mxu0 0.0
    %2813 = vmatprep.subr.mxu0 0.0
    %2814 = vmatpush1.msra.mxu0 0.0
    %2815 = vmatprep.subr.mxu0 0.0
    %2816 = vmatpush1.msra.mxu0 0.0
    %2817 = vmatprep.subr.mxu0 0.0
    %2818 = vmatpush1.msra.mxu0 0.0
    %2819 = vmatprep.subr.mxu0 0.0
    %2820 = vmatpush1.msra.mxu0 0.0
    %2821 = vmatprep.subr.mxu0 0.0
    %2822 = vmatpush1.msra.mxu0 0.0
    %2823 = vmatprep.subr.mxu0 0.0
    %2824 = vmatpush1.msra.mxu0 0.0
    %2825 = vmatprep.subr.mxu0 0.0
    %2826 = vmatpush1.msra.mxu0 0.0
    %2827 = vmatprep.subr.mxu0 0.0
    %2828 = vmatpush1.msra.mxu0 0.0
    %2829 = vmatprep.mubr.f32.mxu0 0.0
    %2830 = vmatmul.mubr.f32.gmra.mrb[0].mxu0 %v2763
    %v2831 = vpop.f32.mrb[0].mxu0
    %v2832 = vadd.f32 %v2757, %v2831
    %v2833 = vpop.f32.mrb[0].mxu0
    %2834 = vdwg.mxu0
    %v2835 = vld [vmem:[%s11] sm:$0x1]
    %v2837 = vlaneseq
    %v2838 = vshrl.u32 %v2837, 7
    %v2839 = vsub.s32 0, %v2838
    %v2840 = vrot.slane %v2835, %v2839
    %v2842 = vadd.f32 %v2832, %v2840
    %vm2843 = vcmask 17408
    %2844 = vst.msk [vmem:[#allocation9] sm:$0x3] %vm2843, %v2842
    // Predicated region
    $region58: #{tpu_custom_call.1} parent=1 // pred_check
      _
    $region59: #{tpu_custom_call.1} parent=1 // pred_check_branch
      %2846 = sbr.rel (0) target = $region61
    $region60: #{tpu_custom_call.1} parent=1 // pred_region
      %s2848 = ssub.s32 32, 32
      %2849 = vsyncadd [#allocation6], %s2848
      %s2851 = sshll.u32 [#allocation9], 4
      %s2852 = int_to_ptr.vmem [resolvable:$true] %s2851
      %2854 = dma.vmem_to_hbm [thread:$0]  %s2852, 32, %s12, [#allocation6]
    $region61: #{tpu_custom_call.1} parent=1 // pred_fallthru
      _
    // Predicated region
    $region62: #{tpu_custom_call.1} parent=1 // pred_check
      _
    $region63: #{tpu_custom_call.1} parent=1 // pred_check_branch
      %2856 = sbr.rel (0) target = $region65
    $region64: #{tpu_custom_call.1} parent=1 // pred_region
      %2857 = dma.done [#allocation6], 32
    $region65: #{tpu_custom_call.1} parent=1 // pred_fallthru
      _
    %2858 = vsyncpa [#allocation5], 1
    %2859 = vsyncpa [#allocation8], 1
    %2860 = vsyncpa [#allocation6], 1

</llo_original>
